<compile_context>
chip_gen: v6e
topology: v6e:2x2x1
jax: 0.10.0
libtpu: 0.0.40
codegen_flags: <defaults>
</compile_context>

<pallas_src>
import functools
import numpy as np
import jax
import jax.numpy as jnp
from jax.experimental import pallas as pl
from jax.experimental.pallas import tpu as pltpu

H = 128                 # LSTM hidden size
D = 512                 # MLP width
EMB_N, EMB_D = 32, 5
LSTM_IN = EMB_D * 7     # 35
T = 6                   # LSTM sequence length
FEAT_PAD = 128          # fixed, zero-padded per-state feature width
HEAD_PAD = 128          # fused policy+value head, zero-padded to 128 lanes
P_OUT = 32              # policy logits
BT_MAX = 256            # default max batch tile (matches v6e/v7x 256-deep MXU)


def _round_up(n, m):
    return ((n + m - 1) // m) * m


def _layernorm(x, g, b, eps=1e-5):
    mu = jnp.mean(x, axis=-1, keepdims=True)
    var = jnp.mean(jnp.square(x - mu), axis=-1, keepdims=True)
    return (x - mu) * jax.lax.rsqrt(var + eps) * g + b


def model_kernel(z_ref, xf_ref,
                 wih_ref, whh_ref, bl_ref,
                 w1_ref, b1_ref, g1_ref, be1_ref,
                 w2_ref, b2_ref, g2_ref, be2_ref,
                 w3_ref, b3_ref, g3_ref, be3_ref,
                 w4_ref, b4_ref, g4_ref, be4_ref,
                 whv_ref, bhv_ref,
                 pv_ref):
    bt = z_ref.shape[1]                       # batch tile

    # ---- hoisted LSTM input projection (one matmul for all 6 timesteps) ----
    # z block is time-major (T, bt, 35); timestep t is rows [t*bt, (t+1)*bt).
    zf = z_ref[...].reshape(T * bt, LSTM_IN).astype(jnp.bfloat16)
    xz = jnp.dot(zf, wih_ref[...],
                 preferred_element_type=jnp.float32) + bl_ref[...]   # (T*bt,4H)

    # ---- LSTM recurrence over T=6 steps (statically unrolled) --------------
    # Gate / state math stays in f32 (v5e VPU/EUP have no bf16); only the
    # matmul operands are bf16.
    whh = whh_ref[...]
    h = jnp.zeros((bt, H), jnp.float32)
    c = jnp.zeros((bt, H), jnp.float32)
    for t in range(T):
        gates = xz[t * bt:(t + 1) * bt, :] + jnp.dot(
            h.astype(jnp.bfloat16), whh, preferred_element_type=jnp.float32)
        i_g = jax.nn.sigmoid(gates[:, 0 * H:1 * H])
        f_g = jax.nn.sigmoid(gates[:, 1 * H:2 * H])
        g_g = jnp.tanh(gates[:, 2 * H:3 * H])
        o_g = jax.nn.sigmoid(gates[:, 3 * H:4 * H])
        c = f_g * c + i_g * g_g
        h = o_g * jnp.tanh(c)

    # ---- fc1 on cat([h_n, x]): single fused K=256 matmul -------------------
    # 128-lane-aligned concat of h (128 lanes) and zero-padded x (128 lanes).
    hx = jnp.concatenate([h, xf_ref[...]], axis=-1).astype(jnp.bfloat16)
    y = jnp.dot(hx, w1_ref[...], preferred_element_type=jnp.float32) + b1_ref[...]
    y = jnp.maximum(_layernorm(y, g1_ref[...], be1_ref[...]), 0.0)

    y = jnp.dot(y.astype(jnp.bfloat16), w2_ref[...],
                preferred_element_type=jnp.float32) + b2_ref[...]
    y = jnp.maximum(_layernorm(y, g2_ref[...], be2_ref[...]), 0.0)

    y = jnp.dot(y.astype(jnp.bfloat16), w3_ref[...],
                preferred_element_type=jnp.float32) + b3_ref[...]
    y = jnp.maximum(_layernorm(y, g3_ref[...], be3_ref[...]), 0.0)

    y = jnp.dot(y.astype(jnp.bfloat16), w4_ref[...],
                preferred_element_type=jnp.float32) + b4_ref[...]
    y = jnp.maximum(_layernorm(y, g4_ref[...], be4_ref[...]), 0.0)

    # TODO(synk): nn.Dropout(0.2) is implemented as inference-mode identity.

    # ---- fused policy+value head: lane-dense (bt, 128) output --------------
    pv_ref[...] = jnp.dot(y.astype(jnp.bfloat16), whv_ref[...],
                          preferred_element_type=jnp.float32) + bhv_ref[...]


# ---------------------------------------------------------------------------
# Parameter init (deterministic, mirrors the PyTorch module's shapes).
# ---------------------------------------------------------------------------
def init_params(key, nth):
    feat = (9 + nth) * EMB_D + 16
    ks = jax.random.split(key, 17)

    def u(k, shape, fan_in):
        bound = 1.0 / np.sqrt(fan_in)
        return jax.random.uniform(k, shape, jnp.float32, -bound, bound)

    p = {}
    p['emb'] = jax.random.normal(ks[0], (EMB_N, EMB_D), jnp.float32)
    p['w_ih'] = u(ks[1], (4 * H, LSTM_IN), H)
    p['w_hh'] = u(ks[2], (4 * H, H), H)
    p['b_ih'] = u(ks[3], (4 * H,), H)
    p['b_hh'] = u(ks[4], (4 * H,), H)
    p['w1'] = u(ks[5], (D, H + feat), H + feat)
    p['b1'] = u(ks[6], (D,), H + feat)
    p['w2'] = u(ks[7], (D, D), D)
    p['b2'] = u(ks[8], (D,), D)
    p['w3'] = u(ks[9], (D, D), D)
    p['b3'] = u(ks[10], (D,), D)
    p['w4'] = u(ks[11], (D, D), D)
    p['b4'] = u(ks[12], (D,), D)
    p['wp'] = u(ks[13], (32, D), D)
    p['bp'] = u(ks[14], (32,), D)
    p['wv'] = u(ks[15], (1, D), D)
    p['bv'] = u(ks[16], (1,), D)
    for i in range(1, 5):
        p[f'g{i}'] = jnp.ones((D,), jnp.float32)     # LayerNorm weight
        p[f'be{i}'] = jnp.zeros((D,), jnp.float32)   # LayerNorm bias
    return p


# ---------------------------------------------------------------------------
# One-time weight packing (transpose / fuse biases / pad / cast) — cached.
# ---------------------------------------------------------------------------
def pack_weights(params):
    bf = lambda a: jnp.asarray(a, jnp.bfloat16)
    f32r = lambda a: jnp.asarray(np.asarray(a, np.float32)[None, :], jnp.float32)

    w1 = np.asarray(params['w1'], np.float32)          # (D, H + feat)
    feat = w1.shape[1] - H
    assert feat <= FEAT_PAD
    # Fused fc1 weight: rows [0,128) act on h, rows [128,128+feat) on x.
    w1hx = np.zeros((H + FEAT_PAD, D), np.float32)
    w1hx[:H, :] = w1[:, :H].T
    w1hx[H:H + feat, :] = w1[:, H:].T

    whv = np.zeros((D, HEAD_PAD), np.float32)
    whv[:, :P_OUT] = np.asarray(params['wp'], np.float32).T
    whv[:, P_OUT:P_OUT + 1] = np.asarray(params['wv'], np.float32).T
    bhv = np.zeros((1, HEAD_PAD), np.float32)
    bhv[0, :P_OUT] = np.asarray(params['bp'], np.float32)
    bhv[0, P_OUT] = float(np.asarray(params['bv'], np.float32)[0])

    packed = (
        bf(np.asarray(params['w_ih']).T),                       # (35, 4H)
        bf(np.asarray(params['w_hh']).T),                       # (H, 4H)
        f32r(np.asarray(params['b_ih'])
             + np.asarray(params['b_hh'])),                     # (1, 4H)
        bf(w1hx), f32r(params['b1']), f32r(params['g1']), f32r(params['be1']),
        bf(np.asarray(params['w2']).T), f32r(params['b2']),
        f32r(params['g2']), f32r(params['be2']),
        bf(np.asarray(params['w3']).T), f32r(params['b3']),
        f32r(params['g3']), f32r(params['be3']),
        bf(np.asarray(params['w4']).T), f32r(params['b4']),
        f32r(params['g4']), f32r(params['be4']),
        bf(whv), jnp.asarray(bhv, jnp.float32),
    )
    return packed, feat


# ---------------------------------------------------------------------------
# Encoder glue (replicates Model.encoder semantics with NumPy gathers).
# ---------------------------------------------------------------------------
def encoder_np(emb_w, host, order, card_revealed, cards, cards_played, outof,
               history):
    emb_w = np.asarray(emb_w, np.float32)
    played = history[-1]['played']
    seat = (host + order) % 4
    seats = [(seat + i) % 4 for i in range(4)]

    revealed_emb = np.zeros((4, EMB_D), np.float32)
    revealed_emb[(-seat) % 4] = emb_w[int(card_revealed)]

    def emb_sum(idxs):
        return emb_w[np.asarray(idxs, np.int64)].sum(axis=-2)[None, :]

    hands_emb = emb_sum(cards[seat])
    n1 = emb_sum(cards_played[seats[1]])
    n2 = emb_sum(cards_played[seats[2]])
    n3 = emb_sum(cards_played[seats[3]])
    remains = emb_sum(cards[seats[1]] + cards[seats[2]] + cards[seats[3]])
    played_emb = emb_w[np.asarray(played, np.int64)]            # (nth, 5)

    x = np.concatenate([revealed_emb, hands_emb, n1, n2, n3, remains,
                        played_emb], axis=0).reshape(1, -1)
    x = np.concatenate([x, np.asarray(outof, np.float32)[seats].reshape(1, 16)],
                       axis=-1)

    h = np.zeros((T, 7), np.int64)
    for i in range(min(T, len(history))):
        hst, pld = history[i]['host'], history[i]['played']
        for j, card in enumerate(pld):
            h[i, (hst + j) % 4] = card
    z = emb_w[h].reshape(T, LSTM_IN)                             # (6, 35)
    return z.astype(np.float32), x.astype(np.float32)


def encode_batch(emb_w, states):
    """Returns z time-major (T, B, 35) and x (B, feat) — no host transpose."""
    emb_w = np.asarray(emb_w, np.float32)
    zs, xs = [], []
    for s in states:
        z, x = encoder_np(emb_w, **s)
        zs.append(z)
        xs.append(x)
    z = np.stack(zs, axis=1)                         # (T, B, 35)  time-major
    x = np.concatenate(xs, axis=0)                   # (B, feat)
    return z, x


# ---------------------------------------------------------------------------
# Batched forward: grid over batch tiles, weights VMEM-resident.
# ---------------------------------------------------------------------------
@functools.partial(jax.jit, static_argnames=('bt',))
def _forward_pallas(packed, z, xf, bt):
    B = z.shape[1]                                   # already padded to bt
    in_specs = (
        [pl.BlockSpec((T, bt, LSTM_IN), lambda i: (0, i, 0)),
         pl.BlockSpec((bt, FEAT_PAD), lambda i: (i, 0))]
        # Weights: constant index_map -> fetched once, VMEM-resident, revisited
        # every grid step (second pipeline buffer is idle but negligible).
        + [pl.BlockSpec(w.shape, lambda i: (0, 0)) for w in packed]
    )
    return pl.pallas_call(
        model_kernel,
        out_shape=jax.ShapeDtypeStruct((B, HEAD_PAD), jnp.float32),
        grid=(B // bt,),
        in_specs=in_specs,
        out_specs=pl.BlockSpec((bt, HEAD_PAD), lambda i: (i, 0)),
        compiler_params=pltpu.CompilerParams(
            dimension_semantics=("parallel",)),
    )(z, xf, *packed)


def forward_batched(packed, z, xf, bt_max=BT_MAX):
    """z: (T, B, 35) f32 time-major, xf: (B, feat) f32.

    Returns (policy_logits (B, 32), value (B, 1)).
    """
    z = jnp.asarray(z, jnp.float32)
    xf = jnp.asarray(xf, jnp.float32)
    B = z.shape[1]
    feat = xf.shape[1]
    assert feat <= FEAT_PAD
    # Batch tile: as large as possible (fills the MXU M dimension), capped at
    # bt_max; small batches run in a single grid step.  (On v7x with tiny B,
    # bt ~= B/2 would feed both TensorCores — not needed for this demo.)
    bt = int(min(bt_max, _round_up(B, 8)))
    B_pad = _round_up(B, bt)
    z = jnp.pad(z, ((0, 0), (0, B_pad - B), (0, 0)))
    xf = jnp.pad(xf, ((0, B_pad - B), (0, FEAT_PAD - feat)))
    pv = _forward_pallas(packed, z, xf, bt=bt)
    return pv[:B, :P_OUT], pv[:B, P_OUT:P_OUT + 1]


# ---------------------------------------------------------------------------
# Pure-JAX f32 reference (post-encoder forward), for tolerance validation.
# ---------------------------------------------------------------------------
def reference_forward(params, z, xf):
    z = jnp.asarray(z, jnp.float32)          # (T, B, 35)
    xf = jnp.asarray(xf, jnp.float32)        # (B, feat)
    B = z.shape[1]
    w_ih, w_hh = params['w_ih'], params['w_hh']
    b = params['b_ih'] + params['b_hh']
    h = jnp.zeros((B, H), jnp.float32)
    c = jnp.zeros((B, H), jnp.float32)
    for t in range(T):
        gates = z[t] @ w_ih.T + h @ w_hh.T + b
        i_g = jax.nn.sigmoid(gates[:, 0 * H:1 * H])
        f_g = jax.nn.sigmoid(gates[:, 1 * H:2 * H])
        g_g = jnp.tanh(gates[:, 2 * H:3 * H])
        o_g = jax.nn.sigmoid(gates[:, 3 * H:4 * H])
        c = f_g * c + i_g * g_g
        h = o_g * jnp.tanh(c)
    y = jnp.concatenate([h, xf], axis=-1)

    def block(y, w, bb, g, be):
        y = y @ w.T + bb
        mu = y.mean(-1, keepdims=True)
        var = jnp.mean(jnp.square(y - mu), -1, keepdims=True)
        y = (y - mu) / jnp.sqrt(var + 1e-5) * g + be
        return jnp.maximum(y, 0.0)

    y = block(y, params['w1'], params['b1'], params['g1'], params['be1'])
    y = block(y, params['w2'], params['b2'], params['g2'], params['be2'])
    y = block(y, params['w3'], params['b3'], params['g3'], params['be3'])
    y = block(y, params['w4'], params['b4'], params['g4'], params['be4'])
    p = y @ params['wp'].T + params['bp']
    v = y @ params['wv'].T + params['bv']
    return p, v


if __name__ == "__main__":
    nth = 3                                    # len(history[-1]['played'])
    key = jax.random.PRNGKey(0)
    params = init_params(key, nth)
    packed, feat = pack_weights(params)        # packed once, reused per call

    B = 16
    base_outof = (np.arange(16, dtype=np.float32).reshape(4, 4)) / 16.0
    states = []
    for b in range(B):
        history = [
            {'host': b % 4, 'played': [3, 9, 21]},
            {'host': (b + 2) % 4, 'played': [5, 11]},
            {'host': (b + 1) % 4, 'played': [2, 7, (b % 28) + 1]},  # nth = 3
        ]
        states.append(dict(
            host=(b + 1) % 4,
            order=(b + 2) % 4,
            card_revealed=(b % 31) + 1,
            cards=[[1, 2, 3, 4], [5, 6, 7, 8], [9, 10, 11, 12], [13, 14, 15, 16]],
            cards_played=[[17, 18], [19], [20, 21], [22]],
            outof=base_outof,
            history=history,
        ))

    z, xf = encode_batch(params['emb'], states)          # (6,B,35), (B,feat)
    p_logits, v_val = forward_batched(packed, z, xf)
    jax.block_until_ready((p_logits, v_val))

    assert p_logits.shape == (B, P_OUT) and v_val.shape == (B, 1)
    assert np.all(np.isfinite(np.asarray(p_logits)))
    assert np.all(np.isfinite(np.asarray(v_val)))

    # Tolerance check vs pure-JAX f32 reference (kernel uses bf16 matmul
    # operands with f32 accumulation -> small, bounded numerical difference).
    p_ref, v_ref = reference_forward(params, z, xf)
    np.testing.assert_allclose(np.asarray(p_logits), np.asarray(p_ref),
                               rtol=0.0, atol=0.25)
    np.testing.assert_allclose(np.asarray(v_val), np.asarray(v_ref),
                               rtol=0.0, atol=0.25)
    print("KERNEL_OK")
</pallas_src>

<mosaic_0001>
module attributes {stable_mosaic.version = 11 : i64} {
  func.func @model_kernel(%arg0: i32, %arg1: memref<6x16x35xf32, #tpu.memory_space<vmem>>, %arg2: memref<16x128xf32, #tpu.memory_space<vmem>>, %arg3: memref<35x512xbf16, #tpu.memory_space<vmem>>, %arg4: memref<128x512xbf16, #tpu.memory_space<vmem>>, %arg5: memref<1x512xf32, #tpu.memory_space<vmem>>, %arg6: memref<256x512xbf16, #tpu.memory_space<vmem>>, %arg7: memref<1x512xf32, #tpu.memory_space<vmem>>, %arg8: memref<1x512xf32, #tpu.memory_space<vmem>>, %arg9: memref<1x512xf32, #tpu.memory_space<vmem>>, %arg10: memref<512x512xbf16, #tpu.memory_space<vmem>>, %arg11: memref<1x512xf32, #tpu.memory_space<vmem>>, %arg12: memref<1x512xf32, #tpu.memory_space<vmem>>, %arg13: memref<1x512xf32, #tpu.memory_space<vmem>>, %arg14: memref<512x512xbf16, #tpu.memory_space<vmem>>, %arg15: memref<1x512xf32, #tpu.memory_space<vmem>>, %arg16: memref<1x512xf32, #tpu.memory_space<vmem>>, %arg17: memref<1x512xf32, #tpu.memory_space<vmem>>, %arg18: memref<512x512xbf16, #tpu.memory_space<vmem>>, %arg19: memref<1x512xf32, #tpu.memory_space<vmem>>, %arg20: memref<1x512xf32, #tpu.memory_space<vmem>>, %arg21: memref<1x512xf32, #tpu.memory_space<vmem>>, %arg22: memref<512x128xbf16, #tpu.memory_space<vmem>>, %arg23: memref<1x128xf32, #tpu.memory_space<vmem>>, %arg24: memref<16x128xf32, #tpu.memory_space<vmem>>) attributes {dimension_semantics = [#tpu.dimension_semantics<parallel>], iteration_bounds = array<i64: 1>, scalar_prefetch = 0 : i64, scratch_operands = 0 : i64, tpu.core_type = #tpu.core_type<tc>, window_params = [{transform_indices = @transform_0, window_bounds = array<i64: 6, 16, 35>}, {transform_indices = @transform_1, window_bounds = array<i64: 16, 128>}, {pipeline_mode = #tpu.pipeline_mode<synchronous>, transform_indices = @transform_2, window_bounds = array<i64: 35, 512>}, {pipeline_mode = #tpu.pipeline_mode<synchronous>, transform_indices = @transform_3, window_bounds = array<i64: 128, 512>}, {pipeline_mode = #tpu.pipeline_mode<synchronous>, transform_indices = @transform_4, window_bounds = array<i64: 1, 512>}, {pipeline_mode = #tpu.pipeline_mode<synchronous>, transform_indices = @transform_5, window_bounds = array<i64: 256, 512>}, {pipeline_mode = #tpu.pipeline_mode<synchronous>, transform_indices = @transform_6, window_bounds = array<i64: 1, 512>}, {pipeline_mode = #tpu.pipeline_mode<synchronous>, transform_indices = @transform_7, window_bounds = array<i64: 1, 512>}, {pipeline_mode = #tpu.pipeline_mode<synchronous>, transform_indices = @transform_8, window_bounds = array<i64: 1, 512>}, {pipeline_mode = #tpu.pipeline_mode<synchronous>, transform_indices = @transform_9, window_bounds = array<i64: 512, 512>}, {pipeline_mode = #tpu.pipeline_mode<synchronous>, transform_indices = @transform_10, window_bounds = array<i64: 1, 512>}, {pipeline_mode = #tpu.pipeline_mode<synchronous>, transform_indices = @transform_11, window_bounds = array<i64: 1, 512>}, {pipeline_mode = #tpu.pipeline_mode<synchronous>, transform_indices = @transform_12, window_bounds = array<i64: 1, 512>}, {pipeline_mode = #tpu.pipeline_mode<synchronous>, transform_indices = @transform_13, window_bounds = array<i64: 512, 512>}, {pipeline_mode = #tpu.pipeline_mode<synchronous>, transform_indices = @transform_14, window_bounds = array<i64: 1, 512>}, {pipeline_mode = #tpu.pipeline_mode<synchronous>, transform_indices = @transform_15, window_bounds = array<i64: 1, 512>}, {pipeline_mode = #tpu.pipeline_mode<synchronous>, transform_indices = @transform_16, window_bounds = array<i64: 1, 512>}, {pipeline_mode = #tpu.pipeline_mode<synchronous>, transform_indices = @transform_17, window_bounds = array<i64: 512, 512>}, {pipeline_mode = #tpu.pipeline_mode<synchronous>, transform_indices = @transform_18, window_bounds = array<i64: 1, 512>}, {pipeline_mode = #tpu.pipeline_mode<synchronous>, transform_indices = @transform_19, window_bounds = array<i64: 1, 512>}, {pipeline_mode = #tpu.pipeline_mode<synchronous>, transform_indices = @transform_20, window_bounds = array<i64: 1, 512>}, {pipeline_mode = #tpu.pipeline_mode<synchronous>, transform_indices = @transform_21, window_bounds = array<i64: 512, 128>}, {pipeline_mode = #tpu.pipeline_mode<synchronous>, transform_indices = @transform_22, window_bounds = array<i64: 1, 128>}, {transform_indices = @transform_23, window_bounds = array<i64: 16, 128>}]} {
    %c0 = arith.constant 0 : index
    %c0_0 = arith.constant 0 : index
    %c0_1 = arith.constant 0 : index
    %0 = vector.load %arg1[%c0, %c0_0, %c0_1] : memref<6x16x35xf32, #tpu.memory_space<vmem>>, vector<6x16x35xf32>
    %1 = vector.shape_cast %0 : vector<6x16x35xf32> to vector<96x35xf32>
    %2 = arith.truncf %1 : vector<96x35xf32> to vector<96x35xbf16>
    %c0_2 = arith.constant 0 : index
    %c0_3 = arith.constant 0 : index
    %3 = vector.load %arg3[%c0_2, %c0_3] : memref<35x512xbf16, #tpu.memory_space<vmem>>, vector<35x512xbf16>
    %cst = arith.constant dense<0.000000e+00> : vector<96x512xf32>
    %4 = tpu.matmul %2, %3, %cst {dimension_numbers = #tpu.dot_dimension_numbers<[1], [0], [0], [1], [0, 0, 1, 1], [], []>} : vector<96x35xbf16>, vector<35x512xbf16>, vector<96x512xf32> -> vector<96x512xf32>
    %c0_4 = arith.constant 0 : index
    %c0_5 = arith.constant 0 : index
    %5 = vector.load %arg5[%c0_4, %c0_5] : memref<1x512xf32, #tpu.memory_space<vmem>>, vector<1x512xf32>
    %6 = vector.broadcast %5 : vector<1x512xf32> to vector<96x512xf32>
    %7 = arith.addf %4, %6 : vector<96x512xf32>
    %c0_6 = arith.constant 0 : index
    %c0_7 = arith.constant 0 : index
    %8 = vector.load %arg4[%c0_6, %c0_7] : memref<128x512xbf16, #tpu.memory_space<vmem>>, vector<128x512xbf16>
    %cst_8 = arith.constant 0.000000e+00 : f32
    %9 = vector.broadcast %cst_8 : f32 to vector<16x128xf32>
    %cst_9 = arith.constant 0.000000e+00 : f32
    %10 = vector.broadcast %cst_9 : f32 to vector<16x128xf32>
    %11 = vector.extract_strided_slice %7 {offsets = [0, 0], sizes = [16, 512], strides = [1, 1]} : vector<96x512xf32> to vector<16x512xf32>
    %12 = arith.truncf %9 : vector<16x128xf32> to vector<16x128xbf16>
    %cst_10 = arith.constant dense<0.000000e+00> : vector<16x512xf32>
    %13 = tpu.matmul %12, %8, %cst_10 {dimension_numbers = #tpu.dot_dimension_numbers<[1], [0], [0], [1], [0, 0, 1, 1], [], []>} : vector<16x128xbf16>, vector<128x512xbf16>, vector<16x512xf32> -> vector<16x512xf32>
    %14 = arith.addf %11, %13 : vector<16x512xf32>
    %15 = vector.extract_strided_slice %14 {offsets = [0, 0], sizes = [16, 128], strides = [1, 1]} : vector<16x512xf32> to vector<16x128xf32>
    %16 = arith.negf %15 : vector<16x128xf32>
    %17 = math.exp %16 : vector<16x128xf32>
    %cst_11 = arith.constant 1.000000e+00 : f32
    %18 = vector.broadcast %cst_11 : f32 to vector<16x128xf32>
    %19 = arith.addf %18, %17 : vector<16x128xf32>
    %20 = arith.divf %18, %19 : vector<16x128xf32>
    %21 = vector.extract_strided_slice %14 {offsets = [0, 128], sizes = [16, 128], strides = [1, 1]} : vector<16x512xf32> to vector<16x128xf32>
    %22 = arith.negf %21 : vector<16x128xf32>
    %23 = math.exp %22 : vector<16x128xf32>
    %cst_12 = arith.constant 1.000000e+00 : f32
    %24 = vector.broadcast %cst_12 : f32 to vector<16x128xf32>
    %25 = arith.addf %24, %23 : vector<16x128xf32>
    %26 = arith.divf %24, %25 : vector<16x128xf32>
    %27 = vector.extract_strided_slice %14 {offsets = [0, 256], sizes = [16, 128], strides = [1, 1]} : vector<16x512xf32> to vector<16x128xf32>
    %28 = math.tanh %27 : vector<16x128xf32>
    %29 = vector.extract_strided_slice %14 {offsets = [0, 384], sizes = [16, 128], strides = [1, 1]} : vector<16x512xf32> to vector<16x128xf32>
    %30 = arith.negf %29 : vector<16x128xf32>
    %31 = math.exp %30 : vector<16x128xf32>
    %cst_13 = arith.constant 1.000000e+00 : f32
    %32 = vector.broadcast %cst_13 : f32 to vector<16x128xf32>
    %33 = arith.addf %32, %31 : vector<16x128xf32>
    %34 = arith.divf %32, %33 : vector<16x128xf32>
    %35 = arith.mulf %26, %10 : vector<16x128xf32>
    %36 = arith.mulf %20, %28 : vector<16x128xf32>
    %37 = arith.addf %35, %36 : vector<16x128xf32>
    %38 = math.tanh %37 : vector<16x128xf32>
    %39 = arith.mulf %34, %38 : vector<16x128xf32>
    %40 = vector.extract_strided_slice %7 {offsets = [16, 0], sizes = [16, 512], strides = [1, 1]} : vector<96x512xf32> to vector<16x512xf32>
    %41 = arith.truncf %39 : vector<16x128xf32> to vector<16x128xbf16>
    %cst_14 = arith.constant dense<0.000000e+00> : vector<16x512xf32>
    %42 = tpu.matmul %41, %8, %cst_14 {dimension_numbers = #tpu.dot_dimension_numbers<[1], [0], [0], [1], [0, 0, 1, 1], [], []>} : vector<16x128xbf16>, vector<128x512xbf16>, vector<16x512xf32> -> vector<16x512xf32>
    %43 = arith.addf %40, %42 : vector<16x512xf32>
    %44 = vector.extract_strided_slice %43 {offsets = [0, 0], sizes = [16, 128], strides = [1, 1]} : vector<16x512xf32> to vector<16x128xf32>
    %45 = arith.negf %44 : vector<16x128xf32>
    %46 = math.exp %45 : vector<16x128xf32>
    %cst_15 = arith.constant 1.000000e+00 : f32
    %47 = vector.broadcast %cst_15 : f32 to vector<16x128xf32>
    %48 = arith.addf %47, %46 : vector<16x128xf32>
    %49 = arith.divf %47, %48 : vector<16x128xf32>
    %50 = vector.extract_strided_slice %43 {offsets = [0, 128], sizes = [16, 128], strides = [1, 1]} : vector<16x512xf32> to vector<16x128xf32>
    %51 = arith.negf %50 : vector<16x128xf32>
    %52 = math.exp %51 : vector<16x128xf32>
    %cst_16 = arith.constant 1.000000e+00 : f32
    %53 = vector.broadcast %cst_16 : f32 to vector<16x128xf32>
    %54 = arith.addf %53, %52 : vector<16x128xf32>
    %55 = arith.divf %53, %54 : vector<16x128xf32>
    %56 = vector.extract_strided_slice %43 {offsets = [0, 256], sizes = [16, 128], strides = [1, 1]} : vector<16x512xf32> to vector<16x128xf32>
    %57 = math.tanh %56 : vector<16x128xf32>
    %58 = vector.extract_strided_slice %43 {offsets = [0, 384], sizes = [16, 128], strides = [1, 1]} : vector<16x512xf32> to vector<16x128xf32>
    %59 = arith.negf %58 : vector<16x128xf32>
    %60 = math.exp %59 : vector<16x128xf32>
    %cst_17 = arith.constant 1.000000e+00 : f32
    %61 = vector.broadcast %cst_17 : f32 to vector<16x128xf32>
    %62 = arith.addf %61, %60 : vector<16x128xf32>
    %63 = arith.divf %61, %62 : vector<16x128xf32>
    %64 = arith.mulf %55, %37 : vector<16x128xf32>
    %65 = arith.mulf %49, %57 : vector<16x128xf32>
    %66 = arith.addf %64, %65 : vector<16x128xf32>
    %67 = math.tanh %66 : vector<16x128xf32>
    %68 = arith.mulf %63, %67 : vector<16x128xf32>
    %69 = vector.extract_strided_slice %7 {offsets = [32, 0], sizes = [16, 512], strides = [1, 1]} : vector<96x512xf32> to vector<16x512xf32>
    %70 = arith.truncf %68 : vector<16x128xf32> to vector<16x128xbf16>
    %cst_18 = arith.constant dense<0.000000e+00> : vector<16x512xf32>
    %71 = tpu.matmul %70, %8, %cst_18 {dimension_numbers = #tpu.dot_dimension_numbers<[1], [0], [0], [1], [0, 0, 1, 1], [], []>} : vector<16x128xbf16>, vector<128x512xbf16>, vector<16x512xf32> -> vector<16x512xf32>
    %72 = arith.addf %69, %71 : vector<16x512xf32>
    %73 = vector.extract_strided_slice %72 {offsets = [0, 0], sizes = [16, 128], strides = [1, 1]} : vector<16x512xf32> to vector<16x128xf32>
    %74 = arith.negf %73 : vector<16x128xf32>
    %75 = math.exp %74 : vector<16x128xf32>
    %cst_19 = arith.constant 1.000000e+00 : f32
    %76 = vector.broadcast %cst_19 : f32 to vector<16x128xf32>
    %77 = arith.addf %76, %75 : vector<16x128xf32>
    %78 = arith.divf %76, %77 : vector<16x128xf32>
    %79 = vector.extract_strided_slice %72 {offsets = [0, 128], sizes = [16, 128], strides = [1, 1]} : vector<16x512xf32> to vector<16x128xf32>
    %80 = arith.negf %79 : vector<16x128xf32>
    %81 = math.exp %80 : vector<16x128xf32>
    %cst_20 = arith.constant 1.000000e+00 : f32
    %82 = vector.broadcast %cst_20 : f32 to vector<16x128xf32>
    %83 = arith.addf %82, %81 : vector<16x128xf32>
    %84 = arith.divf %82, %83 : vector<16x128xf32>
    %85 = vector.extract_strided_slice %72 {offsets = [0, 256], sizes = [16, 128], strides = [1, 1]} : vector<16x512xf32> to vector<16x128xf32>
    %86 = math.tanh %85 : vector<16x128xf32>
    %87 = vector.extract_strided_slice %72 {offsets = [0, 384], sizes = [16, 128], strides = [1, 1]} : vector<16x512xf32> to vector<16x128xf32>
    %88 = arith.negf %87 : vector<16x128xf32>
    %89 = math.exp %88 : vector<16x128xf32>
    %cst_21 = arith.constant 1.000000e+00 : f32
    %90 = vector.broadcast %cst_21 : f32 to vector<16x128xf32>
    %91 = arith.addf %90, %89 : vector<16x128xf32>
    %92 = arith.divf %90, %91 : vector<16x128xf32>
    %93 = arith.mulf %84, %66 : vector<16x128xf32>
    %94 = arith.mulf %78, %86 : vector<16x128xf32>
    %95 = arith.addf %93, %94 : vector<16x128xf32>
    %96 = math.tanh %95 : vector<16x128xf32>
    %97 = arith.mulf %92, %96 : vector<16x128xf32>
    %98 = vector.extract_strided_slice %7 {offsets = [48, 0], sizes = [16, 512], strides = [1, 1]} : vector<96x512xf32> to vector<16x512xf32>
    %99 = arith.truncf %97 : vector<16x128xf32> to vector<16x128xbf16>
    %cst_22 = arith.constant dense<0.000000e+00> : vector<16x512xf32>
    %100 = tpu.matmul %99, %8, %cst_22 {dimension_numbers = #tpu.dot_dimension_numbers<[1], [0], [0], [1], [0, 0, 1, 1], [], []>} : vector<16x128xbf16>, vector<128x512xbf16>, vector<16x512xf32> -> vector<16x512xf32>
    %101 = arith.addf %98, %100 : vector<16x512xf32>
    %102 = vector.extract_strided_slice %101 {offsets = [0, 0], sizes = [16, 128], strides = [1, 1]} : vector<16x512xf32> to vector<16x128xf32>
    %103 = arith.negf %102 : vector<16x128xf32>
    %104 = math.exp %103 : vector<16x128xf32>
    %cst_23 = arith.constant 1.000000e+00 : f32
    %105 = vector.broadcast %cst_23 : f32 to vector<16x128xf32>
    %106 = arith.addf %105, %104 : vector<16x128xf32>
    %107 = arith.divf %105, %106 : vector<16x128xf32>
    %108 = vector.extract_strided_slice %101 {offsets = [0, 128], sizes = [16, 128], strides = [1, 1]} : vector<16x512xf32> to vector<16x128xf32>
    %109 = arith.negf %108 : vector<16x128xf32>
    %110 = math.exp %109 : vector<16x128xf32>
    %cst_24 = arith.constant 1.000000e+00 : f32
    %111 = vector.broadcast %cst_24 : f32 to vector<16x128xf32>
    %112 = arith.addf %111, %110 : vector<16x128xf32>
    %113 = arith.divf %111, %112 : vector<16x128xf32>
    %114 = vector.extract_strided_slice %101 {offsets = [0, 256], sizes = [16, 128], strides = [1, 1]} : vector<16x512xf32> to vector<16x128xf32>
    %115 = math.tanh %114 : vector<16x128xf32>
    %116 = vector.extract_strided_slice %101 {offsets = [0, 384], sizes = [16, 128], strides = [1, 1]} : vector<16x512xf32> to vector<16x128xf32>
    %117 = arith.negf %116 : vector<16x128xf32>
    %118 = math.exp %117 : vector<16x128xf32>
    %cst_25 = arith.constant 1.000000e+00 : f32
    %119 = vector.broadcast %cst_25 : f32 to vector<16x128xf32>
    %120 = arith.addf %119, %118 : vector<16x128xf32>
    %121 = arith.divf %119, %120 : vector<16x128xf32>
    %122 = arith.mulf %113, %95 : vector<16x128xf32>
    %123 = arith.mulf %107, %115 : vector<16x128xf32>
    %124 = arith.addf %122, %123 : vector<16x128xf32>
    %125 = math.tanh %124 : vector<16x128xf32>
    %126 = arith.mulf %121, %125 : vector<16x128xf32>
    %127 = vector.extract_strided_slice %7 {offsets = [64, 0], sizes = [16, 512], strides = [1, 1]} : vector<96x512xf32> to vector<16x512xf32>
    %128 = arith.truncf %126 : vector<16x128xf32> to vector<16x128xbf16>
    %cst_26 = arith.constant dense<0.000000e+00> : vector<16x512xf32>
    %129 = tpu.matmul %128, %8, %cst_26 {dimension_numbers = #tpu.dot_dimension_numbers<[1], [0], [0], [1], [0, 0, 1, 1], [], []>} : vector<16x128xbf16>, vector<128x512xbf16>, vector<16x512xf32> -> vector<16x512xf32>
    %130 = arith.addf %127, %129 : vector<16x512xf32>
    %131 = vector.extract_strided_slice %130 {offsets = [0, 0], sizes = [16, 128], strides = [1, 1]} : vector<16x512xf32> to vector<16x128xf32>
    %132 = arith.negf %131 : vector<16x128xf32>
    %133 = math.exp %132 : vector<16x128xf32>
    %cst_27 = arith.constant 1.000000e+00 : f32
    %134 = vector.broadcast %cst_27 : f32 to vector<16x128xf32>
    %135 = arith.addf %134, %133 : vector<16x128xf32>
    %136 = arith.divf %134, %135 : vector<16x128xf32>
    %137 = vector.extract_strided_slice %130 {offsets = [0, 128], sizes = [16, 128], strides = [1, 1]} : vector<16x512xf32> to vector<16x128xf32>
    %138 = arith.negf %137 : vector<16x128xf32>
    %139 = math.exp %138 : vector<16x128xf32>
    %cst_28 = arith.constant 1.000000e+00 : f32
    %140 = vector.broadcast %cst_28 : f32 to vector<16x128xf32>
    %141 = arith.addf %140, %139 : vector<16x128xf32>
    %142 = arith.divf %140, %141 : vector<16x128xf32>
    %143 = vector.extract_strided_slice %130 {offsets = [0, 256], sizes = [16, 128], strides = [1, 1]} : vector<16x512xf32> to vector<16x128xf32>
    %144 = math.tanh %143 : vector<16x128xf32>
    %145 = vector.extract_strided_slice %130 {offsets = [0, 384], sizes = [16, 128], strides = [1, 1]} : vector<16x512xf32> to vector<16x128xf32>
    %146 = arith.negf %145 : vector<16x128xf32>
    %147 = math.exp %146 : vector<16x128xf32>
    %cst_29 = arith.constant 1.000000e+00 : f32
    %148 = vector.broadcast %cst_29 : f32 to vector<16x128xf32>
    %149 = arith.addf %148, %147 : vector<16x128xf32>
    %150 = arith.divf %148, %149 : vector<16x128xf32>
    %151 = arith.mulf %142, %124 : vector<16x128xf32>
    %152 = arith.mulf %136, %144 : vector<16x128xf32>
    %153 = arith.addf %151, %152 : vector<16x128xf32>
    %154 = math.tanh %153 : vector<16x128xf32>
    %155 = arith.mulf %150, %154 : vector<16x128xf32>
    %156 = vector.extract_strided_slice %7 {offsets = [80, 0], sizes = [16, 512], strides = [1, 1]} : vector<96x512xf32> to vector<16x512xf32>
    %157 = arith.truncf %155 : vector<16x128xf32> to vector<16x128xbf16>
    %cst_30 = arith.constant dense<0.000000e+00> : vector<16x512xf32>
    %158 = tpu.matmul %157, %8, %cst_30 {dimension_numbers = #tpu.dot_dimension_numbers<[1], [0], [0], [1], [0, 0, 1, 1], [], []>} : vector<16x128xbf16>, vector<128x512xbf16>, vector<16x512xf32> -> vector<16x512xf32>
    %159 = arith.addf %156, %158 : vector<16x512xf32>
    %160 = vector.extract_strided_slice %159 {offsets = [0, 0], sizes = [16, 128], strides = [1, 1]} : vector<16x512xf32> to vector<16x128xf32>
    %161 = arith.negf %160 : vector<16x128xf32>
    %162 = math.exp %161 : vector<16x128xf32>
    %cst_31 = arith.constant 1.000000e+00 : f32
    %163 = vector.broadcast %cst_31 : f32 to vector<16x128xf32>
    %164 = arith.addf %163, %162 : vector<16x128xf32>
    %165 = arith.divf %163, %164 : vector<16x128xf32>
    %166 = vector.extract_strided_slice %159 {offsets = [0, 128], sizes = [16, 128], strides = [1, 1]} : vector<16x512xf32> to vector<16x128xf32>
    %167 = arith.negf %166 : vector<16x128xf32>
    %168 = math.exp %167 : vector<16x128xf32>
    %cst_32 = arith.constant 1.000000e+00 : f32
    %169 = vector.broadcast %cst_32 : f32 to vector<16x128xf32>
    %170 = arith.addf %169, %168 : vector<16x128xf32>
    %171 = arith.divf %169, %170 : vector<16x128xf32>
    %172 = vector.extract_strided_slice %159 {offsets = [0, 256], sizes = [16, 128], strides = [1, 1]} : vector<16x512xf32> to vector<16x128xf32>
    %173 = math.tanh %172 : vector<16x128xf32>
    %174 = vector.extract_strided_slice %159 {offsets = [0, 384], sizes = [16, 128], strides = [1, 1]} : vector<16x512xf32> to vector<16x128xf32>
    %175 = arith.negf %174 : vector<16x128xf32>
    %176 = math.exp %175 : vector<16x128xf32>
    %cst_33 = arith.constant 1.000000e+00 : f32
    %177 = vector.broadcast %cst_33 : f32 to vector<16x128xf32>
    %178 = arith.addf %177, %176 : vector<16x128xf32>
    %179 = arith.divf %177, %178 : vector<16x128xf32>
    %180 = arith.mulf %171, %153 : vector<16x128xf32>
    %181 = arith.mulf %165, %173 : vector<16x128xf32>
    %182 = arith.addf %180, %181 : vector<16x128xf32>
    %183 = math.tanh %182 : vector<16x128xf32>
    %184 = arith.mulf %179, %183 : vector<16x128xf32>
    %c0_34 = arith.constant 0 : index
    %c0_35 = arith.constant 0 : index
    %185 = vector.load %arg2[%c0_34, %c0_35] : memref<16x128xf32, #tpu.memory_space<vmem>>, vector<16x128xf32>
    %186 = tpu.concatenate %184, %185 in 1 : vector<16x128xf32>, vector<16x128xf32> -> vector<16x256xf32>
    %187 = arith.truncf %186 : vector<16x256xf32> to vector<16x256xbf16>
    %c0_36 = arith.constant 0 : index
    %c0_37 = arith.constant 0 : index
    %188 = vector.load %arg6[%c0_36, %c0_37] : memref<256x512xbf16, #tpu.memory_space<vmem>>, vector<256x512xbf16>
    %cst_38 = arith.constant dense<0.000000e+00> : vector<16x512xf32>
    %189 = tpu.matmul %187, %188, %cst_38 {dimension_numbers = #tpu.dot_dimension_numbers<[1], [0], [0], [1], [0, 0, 1, 1], [], []>} : vector<16x256xbf16>, vector<256x512xbf16>, vector<16x512xf32> -> vector<16x512xf32>
    %c0_39 = arith.constant 0 : index
    %c0_40 = arith.constant 0 : index
    %190 = vector.load %arg7[%c0_39, %c0_40] : memref<1x512xf32, #tpu.memory_space<vmem>>, vector<1x512xf32>
    %191 = vector.broadcast %190 : vector<1x512xf32> to vector<16x512xf32>
    %192 = arith.addf %189, %191 : vector<16x512xf32>
    %c0_41 = arith.constant 0 : index
    %c0_42 = arith.constant 0 : index
    %193 = vector.load %arg8[%c0_41, %c0_42] : memref<1x512xf32, #tpu.memory_space<vmem>>, vector<1x512xf32>
    %c0_43 = arith.constant 0 : index
    %c0_44 = arith.constant 0 : index
    %194 = vector.load %arg9[%c0_43, %c0_44] : memref<1x512xf32, #tpu.memory_space<vmem>>, vector<1x512xf32>
    %cst_45 = arith.constant dense<0.000000e+00> : vector<16xf32>
    %195 = vector.multi_reduction <add>, %192, %cst_45 [1] : vector<16x512xf32> to vector<16xf32>
    %196 = vector.shape_cast %195 : vector<16xf32> to vector<16x1xf32>
    %cst_46 = arith.constant 5.120000e+02 : f32
    %197 = vector.broadcast %cst_46 : f32 to vector<16x1xf32>
    %198 = arith.divf %196, %197 : vector<16x1xf32>
    %199 = vector.broadcast %198 : vector<16x1xf32> to vector<16x512xf32>
    %200 = arith.subf %192, %199 : vector<16x512xf32>
    %201 = arith.mulf %200, %200 : vector<16x512xf32>
    %cst_47 = arith.constant dense<0.000000e+00> : vector<16xf32>
    %202 = vector.multi_reduction <add>, %201, %cst_47 [1] : vector<16x512xf32> to vector<16xf32>
    %203 = vector.shape_cast %202 : vector<16xf32> to vector<16x1xf32>
    %cst_48 = arith.constant 5.120000e+02 : f32
    %204 = vector.broadcast %cst_48 : f32 to vector<16x1xf32>
    %205 = arith.divf %203, %204 : vector<16x1xf32>
    %206 = vector.broadcast %198 : vector<16x1xf32> to vector<16x512xf32>
    %207 = arith.subf %192, %206 : vector<16x512xf32>
    %cst_49 = arith.constant 9.99999974E-6 : f32
    %208 = vector.broadcast %cst_49 : f32 to vector<16x1xf32>
    %209 = arith.addf %205, %208 : vector<16x1xf32>
    %210 = math.rsqrt %209 : vector<16x1xf32>
    %211 = vector.broadcast %210 : vector<16x1xf32> to vector<16x512xf32>
    %212 = arith.mulf %207, %211 : vector<16x512xf32>
    %213 = vector.broadcast %193 : vector<1x512xf32> to vector<16x512xf32>
    %214 = arith.mulf %212, %213 : vector<16x512xf32>
    %215 = vector.broadcast %194 : vector<1x512xf32> to vector<16x512xf32>
    %216 = arith.addf %214, %215 : vector<16x512xf32>
    %cst_50 = arith.constant 0.000000e+00 : f32
    %217 = vector.broadcast %cst_50 : f32 to vector<16x512xf32>
    %218 = arith.maximumf %216, %217 : vector<16x512xf32>
    %219 = arith.truncf %218 : vector<16x512xf32> to vector<16x512xbf16>
    %c0_51 = arith.constant 0 : index
    %c0_52 = arith.constant 0 : index
    %220 = vector.load %arg10[%c0_51, %c0_52] : memref<512x512xbf16, #tpu.memory_space<vmem>>, vector<512x512xbf16>
    %cst_53 = arith.constant dense<0.000000e+00> : vector<16x512xf32>
    %221 = tpu.matmul %219, %220, %cst_53 {dimension_numbers = #tpu.dot_dimension_numbers<[1], [0], [0], [1], [0, 0, 1, 1], [], []>} : vector<16x512xbf16>, vector<512x512xbf16>, vector<16x512xf32> -> vector<16x512xf32>
    %c0_54 = arith.constant 0 : index
    %c0_55 = arith.constant 0 : index
    %222 = vector.load %arg11[%c0_54, %c0_55] : memref<1x512xf32, #tpu.memory_space<vmem>>, vector<1x512xf32>
    %223 = vector.broadcast %222 : vector<1x512xf32> to vector<16x512xf32>
    %224 = arith.addf %221, %223 : vector<16x512xf32>
    %c0_56 = arith.constant 0 : index
    %c0_57 = arith.constant 0 : index
    %225 = vector.load %arg12[%c0_56, %c0_57] : memref<1x512xf32, #tpu.memory_space<vmem>>, vector<1x512xf32>
    %c0_58 = arith.constant 0 : index
    %c0_59 = arith.constant 0 : index
    %226 = vector.load %arg13[%c0_58, %c0_59] : memref<1x512xf32, #tpu.memory_space<vmem>>, vector<1x512xf32>
    %cst_60 = arith.constant dense<0.000000e+00> : vector<16xf32>
    %227 = vector.multi_reduction <add>, %224, %cst_60 [1] : vector<16x512xf32> to vector<16xf32>
    %228 = vector.shape_cast %227 : vector<16xf32> to vector<16x1xf32>
    %cst_61 = arith.constant 5.120000e+02 : f32
    %229 = vector.broadcast %cst_61 : f32 to vector<16x1xf32>
    %230 = arith.divf %228, %229 : vector<16x1xf32>
    %231 = vector.broadcast %230 : vector<16x1xf32> to vector<16x512xf32>
    %232 = arith.subf %224, %231 : vector<16x512xf32>
    %233 = arith.mulf %232, %232 : vector<16x512xf32>
    %cst_62 = arith.constant dense<0.000000e+00> : vector<16xf32>
    %234 = vector.multi_reduction <add>, %233, %cst_62 [1] : vector<16x512xf32> to vector<16xf32>
    %235 = vector.shape_cast %234 : vector<16xf32> to vector<16x1xf32>
    %cst_63 = arith.constant 5.120000e+02 : f32
    %236 = vector.broadcast %cst_63 : f32 to vector<16x1xf32>
    %237 = arith.divf %235, %236 : vector<16x1xf32>
    %238 = vector.broadcast %230 : vector<16x1xf32> to vector<16x512xf32>
    %239 = arith.subf %224, %238 : vector<16x512xf32>
    %cst_64 = arith.constant 9.99999974E-6 : f32
    %240 = vector.broadcast %cst_64 : f32 to vector<16x1xf32>
    %241 = arith.addf %237, %240 : vector<16x1xf32>
    %242 = math.rsqrt %241 : vector<16x1xf32>
    %243 = vector.broadcast %242 : vector<16x1xf32> to vector<16x512xf32>
    %244 = arith.mulf %239, %243 : vector<16x512xf32>
    %245 = vector.broadcast %225 : vector<1x512xf32> to vector<16x512xf32>
    %246 = arith.mulf %244, %245 : vector<16x512xf32>
    %247 = vector.broadcast %226 : vector<1x512xf32> to vector<16x512xf32>
    %248 = arith.addf %246, %247 : vector<16x512xf32>
    %cst_65 = arith.constant 0.000000e+00 : f32
    %249 = vector.broadcast %cst_65 : f32 to vector<16x512xf32>
    %250 = arith.maximumf %248, %249 : vector<16x512xf32>
    %251 = arith.truncf %250 : vector<16x512xf32> to vector<16x512xbf16>
    %c0_66 = arith.constant 0 : index
    %c0_67 = arith.constant 0 : index
    %252 = vector.load %arg14[%c0_66, %c0_67] : memref<512x512xbf16, #tpu.memory_space<vmem>>, vector<512x512xbf16>
    %cst_68 = arith.constant dense<0.000000e+00> : vector<16x512xf32>
    %253 = tpu.matmul %251, %252, %cst_68 {dimension_numbers = #tpu.dot_dimension_numbers<[1], [0], [0], [1], [0, 0, 1, 1], [], []>} : vector<16x512xbf16>, vector<512x512xbf16>, vector<16x512xf32> -> vector<16x512xf32>
    %c0_69 = arith.constant 0 : index
    %c0_70 = arith.constant 0 : index
    %254 = vector.load %arg15[%c0_69, %c0_70] : memref<1x512xf32, #tpu.memory_space<vmem>>, vector<1x512xf32>
    %255 = vector.broadcast %254 : vector<1x512xf32> to vector<16x512xf32>
    %256 = arith.addf %253, %255 : vector<16x512xf32>
    %c0_71 = arith.constant 0 : index
    %c0_72 = arith.constant 0 : index
    %257 = vector.load %arg16[%c0_71, %c0_72] : memref<1x512xf32, #tpu.memory_space<vmem>>, vector<1x512xf32>
    %c0_73 = arith.constant 0 : index
    %c0_74 = arith.constant 0 : index
    %258 = vector.load %arg17[%c0_73, %c0_74] : memref<1x512xf32, #tpu.memory_space<vmem>>, vector<1x512xf32>
    %cst_75 = arith.constant dense<0.000000e+00> : vector<16xf32>
    %259 = vector.multi_reduction <add>, %256, %cst_75 [1] : vector<16x512xf32> to vector<16xf32>
    %260 = vector.shape_cast %259 : vector<16xf32> to vector<16x1xf32>
    %cst_76 = arith.constant 5.120000e+02 : f32
    %261 = vector.broadcast %cst_76 : f32 to vector<16x1xf32>
    %262 = arith.divf %260, %261 : vector<16x1xf32>
    %263 = vector.broadcast %262 : vector<16x1xf32> to vector<16x512xf32>
    %264 = arith.subf %256, %263 : vector<16x512xf32>
    %265 = arith.mulf %264, %264 : vector<16x512xf32>
    %cst_77 = arith.constant dense<0.000000e+00> : vector<16xf32>
    %266 = vector.multi_reduction <add>, %265, %cst_77 [1] : vector<16x512xf32> to vector<16xf32>
    %267 = vector.shape_cast %266 : vector<16xf32> to vector<16x1xf32>
    %cst_78 = arith.constant 5.120000e+02 : f32
    %268 = vector.broadcast %cst_78 : f32 to vector<16x1xf32>
    %269 = arith.divf %267, %268 : vector<16x1xf32>
    %270 = vector.broadcast %262 : vector<16x1xf32> to vector<16x512xf32>
    %271 = arith.subf %256, %270 : vector<16x512xf32>
    %cst_79 = arith.constant 9.99999974E-6 : f32
    %272 = vector.broadcast %cst_79 : f32 to vector<16x1xf32>
    %273 = arith.addf %269, %272 : vector<16x1xf32>
    %274 = math.rsqrt %273 : vector<16x1xf32>
    %275 = vector.broadcast %274 : vector<16x1xf32> to vector<16x512xf32>
    %276 = arith.mulf %271, %275 : vector<16x512xf32>
    %277 = vector.broadcast %257 : vector<1x512xf32> to vector<16x512xf32>
    %278 = arith.mulf %276, %277 : vector<16x512xf32>
    %279 = vector.broadcast %258 : vector<1x512xf32> to vector<16x512xf32>
    %280 = arith.addf %278, %279 : vector<16x512xf32>
    %cst_80 = arith.constant 0.000000e+00 : f32
    %281 = vector.broadcast %cst_80 : f32 to vector<16x512xf32>
    %282 = arith.maximumf %280, %281 : vector<16x512xf32>
    %283 = arith.truncf %282 : vector<16x512xf32> to vector<16x512xbf16>
    %c0_81 = arith.constant 0 : index
    %c0_82 = arith.constant 0 : index
    %284 = vector.load %arg18[%c0_81, %c0_82] : memref<512x512xbf16, #tpu.memory_space<vmem>>, vector<512x512xbf16>
    %cst_83 = arith.constant dense<0.000000e+00> : vector<16x512xf32>
    %285 = tpu.matmul %283, %284, %cst_83 {dimension_numbers = #tpu.dot_dimension_numbers<[1], [0], [0], [1], [0, 0, 1, 1], [], []>} : vector<16x512xbf16>, vector<512x512xbf16>, vector<16x512xf32> -> vector<16x512xf32>
    %c0_84 = arith.constant 0 : index
    %c0_85 = arith.constant 0 : index
    %286 = vector.load %arg19[%c0_84, %c0_85] : memref<1x512xf32, #tpu.memory_space<vmem>>, vector<1x512xf32>
    %287 = vector.broadcast %286 : vector<1x512xf32> to vector<16x512xf32>
    %288 = arith.addf %285, %287 : vector<16x512xf32>
    %c0_86 = arith.constant 0 : index
    %c0_87 = arith.constant 0 : index
    %289 = vector.load %arg20[%c0_86, %c0_87] : memref<1x512xf32, #tpu.memory_space<vmem>>, vector<1x512xf32>
    %c0_88 = arith.constant 0 : index
    %c0_89 = arith.constant 0 : index
    %290 = vector.load %arg21[%c0_88, %c0_89] : memref<1x512xf32, #tpu.memory_space<vmem>>, vector<1x512xf32>
    %cst_90 = arith.constant dense<0.000000e+00> : vector<16xf32>
    %291 = vector.multi_reduction <add>, %288, %cst_90 [1] : vector<16x512xf32> to vector<16xf32>
    %292 = vector.shape_cast %291 : vector<16xf32> to vector<16x1xf32>
    %cst_91 = arith.constant 5.120000e+02 : f32
    %293 = vector.broadcast %cst_91 : f32 to vector<16x1xf32>
    %294 = arith.divf %292, %293 : vector<16x1xf32>
    %295 = vector.broadcast %294 : vector<16x1xf32> to vector<16x512xf32>
    %296 = arith.subf %288, %295 : vector<16x512xf32>
    %297 = arith.mulf %296, %296 : vector<16x512xf32>
    %cst_92 = arith.constant dense<0.000000e+00> : vector<16xf32>
    %298 = vector.multi_reduction <add>, %297, %cst_92 [1] : vector<16x512xf32> to vector<16xf32>
    %299 = vector.shape_cast %298 : vector<16xf32> to vector<16x1xf32>
    %cst_93 = arith.constant 5.120000e+02 : f32
    %300 = vector.broadcast %cst_93 : f32 to vector<16x1xf32>
    %301 = arith.divf %299, %300 : vector<16x1xf32>
    %302 = vector.broadcast %294 : vector<16x1xf32> to vector<16x512xf32>
    %303 = arith.subf %288, %302 : vector<16x512xf32>
    %cst_94 = arith.constant 9.99999974E-6 : f32
    %304 = vector.broadcast %cst_94 : f32 to vector<16x1xf32>
    %305 = arith.addf %301, %304 : vector<16x1xf32>
    %306 = math.rsqrt %305 : vector<16x1xf32>
    %307 = vector.broadcast %306 : vector<16x1xf32> to vector<16x512xf32>
    %308 = arith.mulf %303, %307 : vector<16x512xf32>
    %309 = vector.broadcast %289 : vector<1x512xf32> to vector<16x512xf32>
    %310 = arith.mulf %308, %309 : vector<16x512xf32>
    %311 = vector.broadcast %290 : vector<1x512xf32> to vector<16x512xf32>
    %312 = arith.addf %310, %311 : vector<16x512xf32>
    %cst_95 = arith.constant 0.000000e+00 : f32
    %313 = vector.broadcast %cst_95 : f32 to vector<16x512xf32>
    %314 = arith.maximumf %312, %313 : vector<16x512xf32>
    %315 = arith.truncf %314 : vector<16x512xf32> to vector<16x512xbf16>
    %c0_96 = arith.constant 0 : index
    %c0_97 = arith.constant 0 : index
    %316 = vector.load %arg22[%c0_96, %c0_97] : memref<512x128xbf16, #tpu.memory_space<vmem>>, vector<512x128xbf16>
    %cst_98 = arith.constant dense<0.000000e+00> : vector<16x128xf32>
    %317 = tpu.matmul %315, %316, %cst_98 {dimension_numbers = #tpu.dot_dimension_numbers<[1], [0], [0], [1], [0, 0, 1, 1], [], []>} : vector<16x512xbf16>, vector<512x128xbf16>, vector<16x128xf32> -> vector<16x128xf32>
    %c0_99 = arith.constant 0 : index
    %c0_100 = arith.constant 0 : index
    %318 = vector.load %arg23[%c0_99, %c0_100] : memref<1x128xf32, #tpu.memory_space<vmem>>, vector<1x128xf32>
    %319 = vector.broadcast %318 : vector<1x128xf32> to vector<16x128xf32>
    %320 = arith.addf %317, %319 : vector<16x128xf32>
    %c0_101 = arith.constant 0 : index
    %c0_102 = arith.constant 0 : index
    %321 = vector.load %arg24[%c0_101, %c0_102] : memref<16x128xf32, #tpu.memory_space<vmem>>, vector<16x128xf32>
    tpu.vector_store %arg24[%c0_101, %c0_102], %320 {strides = array<i32>} : memref<16x128xf32, #tpu.memory_space<vmem>>, vector<16x128xf32>,
    return
  }
  func.func @transform_0(%arg0: i32) -> (i32, i32, i32) {
    %c0_i32 = arith.constant 0 : i32
    %c0_i32_0 = arith.constant 0 : i32
    %c0_i32_1 = arith.constant 0 : i32
    return %c0_i32, %arg0, %c0_i32_0 : i32, i32, i32
  }
  func.func @transform_1(%arg0: i32) -> (i32, i32) {
    %c0_i32 = arith.constant 0 : i32
    %c0_i32_0 = arith.constant 0 : i32
    return %arg0, %c0_i32 : i32, i32
  }
  func.func @transform_2(%arg0: i32) -> (i32, i32) {
    %c0_i32 = arith.constant 0 : i32
    %c0_i32_0 = arith.constant 0 : i32
    %c0_i32_1 = arith.constant 0 : i32
    return %c0_i32, %c0_i32_0 : i32, i32
  }
  func.func @transform_3(%arg0: i32) -> (i32, i32) {
    %c0_i32 = arith.constant 0 : i32
    %c0_i32_0 = arith.constant 0 : i32
    %c0_i32_1 = arith.constant 0 : i32
    return %c0_i32, %c0_i32_0 : i32, i32
  }
  func.func @transform_4(%arg0: i32) -> (i32, i32) {
    %c0_i32 = arith.constant 0 : i32
    %c0_i32_0 = arith.constant 0 : i32
    %c0_i32_1 = arith.constant 0 : i32
    return %c0_i32, %c0_i32_0 : i32, i32
  }
  func.func @transform_5(%arg0: i32) -> (i32, i32) {
    %c0_i32 = arith.constant 0 : i32
    %c0_i32_0 = arith.constant 0 : i32
    %c0_i32_1 = arith.constant 0 : i32
    return %c0_i32, %c0_i32_0 : i32, i32
  }
  func.func @transform_6(%arg0: i32) -> (i32, i32) {
    %c0_i32 = arith.constant 0 : i32
    %c0_i32_0 = arith.constant 0 : i32
    %c0_i32_1 = arith.constant 0 : i32
    return %c0_i32, %c0_i32_0 : i32, i32
  }
  func.func @transform_7(%arg0: i32) -> (i32, i32) {
    %c0_i32 = arith.constant 0 : i32
    %c0_i32_0 = arith.constant 0 : i32
    %c0_i32_1 = arith.constant 0 : i32
    return %c0_i32, %c0_i32_0 : i32, i32
  }
  func.func @transform_8(%arg0: i32) -> (i32, i32) {
    %c0_i32 = arith.constant 0 : i32
    %c0_i32_0 = arith.constant 0 : i32
    %c0_i32_1 = arith.constant 0 : i32
    return %c0_i32, %c0_i32_0 : i32, i32
  }
  func.func @transform_9(%arg0: i32) -> (i32, i32) {
    %c0_i32 = arith.constant 0 : i32
    %c0_i32_0 = arith.constant 0 : i32
    %c0_i32_1 = arith.constant 0 : i32
    return %c0_i32, %c0_i32_0 : i32, i32
  }
  func.func @transform_10(%arg0: i32) -> (i32, i32) {
    %c0_i32 = arith.constant 0 : i32
    %c0_i32_0 = arith.constant 0 : i32
    %c0_i32_1 = arith.constant 0 : i32
    return %c0_i32, %c0_i32_0 : i32, i32
  }
  func.func @transform_11(%arg0: i32) -> (i32, i32) {
    %c0_i32 = arith.constant 0 : i32
    %c0_i32_0 = arith.constant 0 : i32
    %c0_i32_1 = arith.constant 0 : i32
    return %c0_i32, %c0_i32_0 : i32, i32
  }
  func.func @transform_12(%arg0: i32) -> (i32, i32) {
    %c0_i32 = arith.constant 0 : i32
    %c0_i32_0 = arith.constant 0 : i32
    %c0_i32_1 = arith.constant 0 : i32
    return %c0_i32, %c0_i32_0 : i32, i32
  }
  func.func @transform_13(%arg0: i32) -> (i32, i32) {
    %c0_i32 = arith.constant 0 : i32
    %c0_i32_0 = arith.constant 0 : i32
    %c0_i32_1 = arith.constant 0 : i32
    return %c0_i32, %c0_i32_0 : i32, i32
  }
  func.func @transform_14(%arg0: i32) -> (i32, i32) {
    %c0_i32 = arith.constant 0 : i32
    %c0_i32_0 = arith.constant 0 : i32
    %c0_i32_1 = arith.constant 0 : i32
    return %c0_i32, %c0_i32_0 : i32, i32
  }
  func.func @transform_15(%arg0: i32) -> (i32, i32) {
    %c0_i32 = arith.constant 0 : i32
    %c0_i32_0 = arith.constant 0 : i32
    %c0_i32_1 = arith.constant 0 : i32
    return %c0_i32, %c0_i32_0 : i32, i32
  }
  func.func @transform_16(%arg0: i32) -> (i32, i32) {
    %c0_i32 = arith.constant 0 : i32
    %c0_i32_0 = arith.constant 0 : i32
    %c0_i32_1 = arith.constant 0 : i32
    return %c0_i32, %c0_i32_0 : i32, i32
  }
  func.func @transform_17(%arg0: i32) -> (i32, i32) {
    %c0_i32 = arith.constant 0 : i32
    %c0_i32_0 = arith.constant 0 : i32
    %c0_i32_1 = arith.constant 0 : i32
    return %c0_i32, %c0_i32_0 : i32, i32
  }
  func.func @transform_18(%arg0: i32) -> (i32, i32) {
    %c0_i32 = arith.constant 0 : i32
    %c0_i32_0 = arith.constant 0 : i32
    %c0_i32_1 = arith.constant 0 : i32
    return %c0_i32, %c0_i32_0 : i32, i32
  }
  func.func @transform_19(%arg0: i32) -> (i32, i32) {
    %c0_i32 = arith.constant 0 : i32
    %c0_i32_0 = arith.constant 0 : i32
    %c0_i32_1 = arith.constant 0 : i32
    return %c0_i32, %c0_i32_0 : i32, i32
  }
  func.func @transform_20(%arg0: i32) -> (i32, i32) {
    %c0_i32 = arith.constant 0 : i32
    %c0_i32_0 = arith.constant 0 : i32
    %c0_i32_1 = arith.constant 0 : i32
    return %c0_i32, %c0_i32_0 : i32, i32
  }
  func.func @transform_21(%arg0: i32) -> (i32, i32) {
    %c0_i32 = arith.constant 0 : i32
    %c0_i32_0 = arith.constant 0 : i32
    %c0_i32_1 = arith.constant 0 : i32
    return %c0_i32, %c0_i32_0 : i32, i32
  }
  func.func @transform_22(%arg0: i32) -> (i32, i32) {
    %c0_i32 = arith.constant 0 : i32
    %c0_i32_0 = arith.constant 0 : i32
    %c0_i32_1 = arith.constant 0 : i32
    return %c0_i32, %c0_i32_0 : i32, i32
  }
  func.func @transform_23(%arg0: i32) -> (i32, i32) {
    %c0_i32 = arith.constant 0 : i32
    %c0_i32_0 = arith.constant 0 : i32
    return %arg0, %c0_i32 : i32, i32
  }
}

</mosaic_0001>

<llo_original>
// kernel: _forward_pallas.1
$region0: #{_forward_pallas.1}
  #allocation0 [shape = 'u32[]', space=smem, size = 0x4, offset = 0x4, fixed_abs, tag = 'smem constant byte address 0x4 - core index']
  #allocation1 [shape = 'u32[144,128]{1,0:T(1,128)}', space=vmem, size = 0x12000, scoped, tag = 'internal scratch']
  %s0 = inlined_call_operand.hbm [shape: f32[6,16,35], index: 0, kind: input, shape index: {}]
  %s1 = inlined_call_operand.vmem [shape: f32[16,128], index: 1, kind: input, shape index: {}]
  %s2 = inlined_call_operand.hbm [shape: bf16[35,512], index: 2, kind: input, shape index: {}]
  %s3 = inlined_call_operand.hbm [shape: bf16[128,512], index: 3, kind: input, shape index: {}]
  %s4 = inlined_call_operand.hbm [shape: f32[1,512], index: 4, kind: input, shape index: {}]
  %s5 = inlined_call_operand.hbm [shape: bf16[256,512], index: 5, kind: input, shape index: {}]
  %s6 = inlined_call_operand.vmem [shape: f32[1,512], index: 6, kind: input, shape index: {}]
  %s7 = inlined_call_operand.vmem [shape: f32[1,512], index: 7, kind: input, shape index: {}]
  %s8 = inlined_call_operand.hbm [shape: f32[1,512], index: 8, kind: input, shape index: {}]
  %s9 = inlined_call_operand.hbm [shape: bf16[512,512], index: 9, kind: input, shape index: {}]
  %s10 = inlined_call_operand.vmem [shape: f32[1,512], index: 10, kind: input, shape index: {}]
  %s11 = inlined_call_operand.vmem [shape: f32[1,512], index: 11, kind: input, shape index: {}]
  %s12 = inlined_call_operand.hbm [shape: f32[1,512], index: 12, kind: input, shape index: {}]
  %s13 = inlined_call_operand.hbm [shape: bf16[512,512], index: 13, kind: input, shape index: {}]
  %s14 = inlined_call_operand.hbm [shape: f32[1,512], index: 14, kind: input, shape index: {}]
  %s15 = inlined_call_operand.hbm [shape: f32[1,512], index: 15, kind: input, shape index: {}]
  %s16 = inlined_call_operand.hbm [shape: f32[1,512], index: 16, kind: input, shape index: {}]
  %s17 = inlined_call_operand.hbm [shape: bf16[512,512], index: 17, kind: input, shape index: {}]
  %s18 = inlined_call_operand.hbm [shape: f32[1,512], index: 18, kind: input, shape index: {}]
  %s19 = inlined_call_operand.hbm [shape: f32[1,512], index: 19, kind: input, shape index: {}]
  %s20 = inlined_call_operand.hbm [shape: f32[1,512], index: 20, kind: input, shape index: {}]
  %s21 = inlined_call_operand.hbm [shape: bf16[512,128], index: 21, kind: input, shape index: {}]
  %s22 = inlined_call_operand.vmem [shape: f32[1,128], index: 22, kind: input, shape index: {}]
  %s23 = inlined_call_operand.hbm [shape: f32[16,128], index: 23, kind: output, shape index: {}]
  %s24 = sld [smem:[#allocation0]]
  $region170: #{_forward_pallas.1} parent=0
    _
  %s26 = ssub.s32 1, %s24
  %s27 = scalar_select 0, %s26, %s24
  $region1: #{_forward_pallas.1} parent=0
    #allocation2 [shape = 'u8[49152]{0}', space=vmem, size = 0xc000, scoped, tag = 'input window, operand 0, single buffered']
    #allocation3 [shape = 's32[1]{0}', space=sflag, size = 0x4, scoped, tag = 'scoped memory for _forward_pallas.1']
    #allocation4 [shape = 's32[1]{0}', space=sflag, size = 0x4, scoped, tag = 'scoped memory for _forward_pallas.1']
    #allocation5 [shape = 'u8[40960]{0}', space=vmem, size = 0xa000, scoped, tag = 'input window, operand 2, single buffered']
    #allocation6 [shape = 's32[1]{0}', space=sflag, size = 0x4, scoped, tag = 'scoped memory for _forward_pallas.1']
    #allocation7 [shape = 'u8[131072]{0}', space=vmem, size = 0x20000, scoped, tag = 'input window, operand 3, single buffered']
    #allocation8 [shape = 'u8[2048]{0}', space=vmem, size = 0x800, scoped, tag = 'input window, operand 4, single buffered']
    #allocation9 [shape = 's32[1]{0}', space=sflag, size = 0x4, scoped, tag = 'scoped memory for _forward_pallas.1']
    #allocation10 [shape = 'u8[262144]{0}', space=vmem, size = 0x40000, scoped, tag = 'input window, operand 5, single buffered']
    #allocation11 [shape = 'u8[2048]{0}', space=vmem, size = 0x800, scoped, tag = 'input window, operand 8, single buffered']
    #allocation12 [shape = 's32[1]{0}', space=sflag, size = 0x4, scoped, tag = 'scoped memory for _forward_pallas.1']
    #allocation13 [shape = 'u8[524288]{0}', space=vmem, size = 0x80000, scoped, tag = 'input window, operand 9, single buffered']
    #allocation14 [shape = 'u8[2048]{0}', space=vmem, size = 0x800, scoped, tag = 'input window, operand 12, single buffered']
    #allocation15 [shape = 's32[1]{0}', space=sflag, size = 0x4, scoped, tag = 'scoped memory for _forward_pallas.1']
    #allocation16 [shape = 'u8[524288]{0}', space=vmem, size = 0x80000, scoped, tag = 'input window, operand 13, single buffered']
    #allocation17 [shape = 'u8[2048]{0}', space=vmem, size = 0x800, scoped, tag = 'input window, operand 14, single buffered']
    #allocation18 [shape = 's32[1]{0}', space=sflag, size = 0x4, scoped, tag = 'scoped memory for _forward_pallas.1']
    #allocation19 [shape = 'u8[2048]{0}', space=vmem, size = 0x800, scoped, tag = 'input window, operand 15, single buffered']
    #allocation20 [shape = 'u8[2048]{0}', space=vmem, size = 0x800, scoped, tag = 'input window, operand 16, single buffered']
    #allocation21 [shape = 's32[1]{0}', space=sflag, size = 0x4, scoped, tag = 'scoped memory for _forward_pallas.1']
    #allocation22 [shape = 'u8[524288]{0}', space=vmem, size = 0x80000, scoped, tag = 'input window, operand 17, single buffered']
    #allocation23 [shape = 'u8[2048]{0}', space=vmem, size = 0x800, scoped, tag = 'input window, operand 18, single buffered']
    #allocation24 [shape = 's32[1]{0}', space=sflag, size = 0x4, scoped, tag = 'scoped memory for _forward_pallas.1']
    #allocation25 [shape = 'u8[2048]{0}', space=vmem, size = 0x800, scoped, tag = 'input window, operand 19, single buffered']
    #allocation26 [shape = 'u8[2048]{0}', space=vmem, size = 0x800, scoped, tag = 'input window, operand 20, single buffered']
    #allocation27 [shape = 's32[1]{0}', space=sflag, size = 0x4, scoped, tag = 'scoped memory for _forward_pallas.1']
    #allocation28 [shape = 'u8[131072]{0}', space=vmem, size = 0x20000, scoped, tag = 'input window, operand 21, single buffered']
    #allocation29 [shape = 'u8[8192]{0}', space=vmem, size = 0x2000, scoped, tag = 'output window, operand 0, single buffered']
    %28 = vsyncpa [#allocation3], 0
    %29 = vsyncpa [#allocation6], 0
    %30 = vsyncpa [#allocation9], 0
    %31 = vsyncpa [#allocation12], 0
    %32 = vsyncpa [#allocation15], 0
    %33 = vsyncpa [#allocation18], 0
    %34 = vsyncpa [#allocation21], 0
    %35 = vsyncpa [#allocation24], 0
    %36 = vsyncpa [#allocation27], 0
    %37 = vsyncpa [#allocation4], 0
    // Predicated region
    $region2: #{_forward_pallas.1} parent=1 // pred_check
      _
    $region3: #{_forward_pallas.1} parent=1 // pred_check_branch
      %39 = sbr.rel (0) target = $region5
    $region4: #{_forward_pallas.1} parent=1 // pred_region
      %s41 = ssub.s32 1536, 1536
      %42 = vsyncadd [#allocation3], %s41
      %s43 = sshll.u32 [#allocation2], 4
      %s44 = int_to_ptr.vmem [resolvable:$true] %s43
      %49 = dma.hbm_to_vmem [thread:$0]  %s0, 1536, %s44, [#allocation3], 128, 128, 8
    $region5: #{_forward_pallas.1} parent=1 // pred_fallthru
      _
    // Predicated region
    $region6: #{_forward_pallas.1} parent=1 // pred_check
      _
    $region7: #{_forward_pallas.1} parent=1 // pred_check_branch
      %51 = sbr.rel (0) target = $region9
    $region8: #{_forward_pallas.1} parent=1 // pred_region
      _
    $region9: #{_forward_pallas.1} parent=1 // pred_fallthru
      _
    // Predicated region
    $region10: #{_forward_pallas.1} parent=1 // pred_check
      _
    $region11: #{_forward_pallas.1} parent=1 // pred_check_branch
      %53 = sbr.rel (0) target = $region13
    $region12: #{_forward_pallas.1} parent=1 // pred_region
      %s55 = ssub.s32 1280, 1280
      %56 = vsyncadd [#allocation6], %s55
      %s57 = sshll.u32 [#allocation5], 4
      %s58 = int_to_ptr.vmem [resolvable:$true] %s57
      %63 = dma.hbm_to_vmem [thread:$0]  %s2, 1280, %s58, [#allocation6], 256, 256, 16
    $region13: #{_forward_pallas.1} parent=1 // pred_fallthru
      _
    // Predicated region
    $region14: #{_forward_pallas.1} parent=1 // pred_check
      _
    $region15: #{_forward_pallas.1} parent=1 // pred_check_branch
      %65 = sbr.rel (0) target = $region17
    $region16: #{_forward_pallas.1} parent=1 // pred_region
      %s67 = ssub.s32 4096, 4096
      %68 = vsyncadd [#allocation6], %s67
      %s69 = sshll.u32 [#allocation7], 4
      %s70 = int_to_ptr.vmem [resolvable:$true] %s69
      %75 = dma.hbm_to_vmem [thread:$0]  %s3, 4096, %s70, [#allocation6], 256, 256, 16
    $region17: #{_forward_pallas.1} parent=1 // pred_fallthru
      _
    // Predicated region
    $region18: #{_forward_pallas.1} parent=1 // pred_check
      _
    $region19: #{_forward_pallas.1} parent=1 // pred_check_branch
      %77 = sbr.rel (0) target = $region21
    $region20: #{_forward_pallas.1} parent=1 // pred_region
      %s79 = ssub.s32 64, 64
      %80 = vsyncadd [#allocation9], %s79
      %s82 = sshll.u32 [#allocation8], 4
      %s83 = int_to_ptr.vmem [resolvable:$true] %s82
      %85 = dma.hbm_to_vmem [thread:$0]  %s4, 64, %s83, [#allocation9]
    $region21: #{_forward_pallas.1} parent=1 // pred_fallthru
      _
    // Predicated region
    $region22: #{_forward_pallas.1} parent=1 // pred_check
      _
    $region23: #{_forward_pallas.1} parent=1 // pred_check_branch
      %87 = sbr.rel (0) target = $region25
    $region24: #{_forward_pallas.1} parent=1 // pred_region
      %s89 = ssub.s32 8192, 8192
      %90 = vsyncadd [#allocation9], %s89
      %s91 = sshll.u32 [#allocation10], 4
      %s92 = int_to_ptr.vmem [resolvable:$true] %s91
      %97 = dma.hbm_to_vmem [thread:$0]  %s5, 8192, %s92, [#allocation9], 256, 256, 16
    $region25: #{_forward_pallas.1} parent=1 // pred_fallthru
      _
    // Predicated region
    $region26: #{_forward_pallas.1} parent=1 // pred_check
      _
    $region27: #{_forward_pallas.1} parent=1 // pred_check_branch
      %99 = sbr.rel (0) target = $region29
    $region28: #{_forward_pallas.1} parent=1 // pred_region
      _
    $region29: #{_forward_pallas.1} parent=1 // pred_fallthru
      _
    // Predicated region
    $region30: #{_forward_pallas.1} parent=1 // pred_check
      _
    $region31: #{_forward_pallas.1} parent=1 // pred_check_branch
      %101 = sbr.rel (0) target = $region33
    $region32: #{_forward_pallas.1} parent=1 // pred_region
      _
    $region33: #{_forward_pallas.1} parent=1 // pred_fallthru
      _
    // Predicated region
    $region34: #{_forward_pallas.1} parent=1 // pred_check
      _
    $region35: #{_forward_pallas.1} parent=1 // pred_check_branch
      %103 = sbr.rel (0) target = $region37
    $region36: #{_forward_pallas.1} parent=1 // pred_region
      %s105 = ssub.s32 64, 64
      %106 = vsyncadd [#allocation12], %s105
      %s108 = sshll.u32 [#allocation11], 4
      %s109 = int_to_ptr.vmem [resolvable:$true] %s108
      %111 = dma.hbm_to_vmem [thread:$0]  %s8, 64, %s109, [#allocation12]
    $region37: #{_forward_pallas.1} parent=1 // pred_fallthru
      _
    // Predicated region
    $region38: #{_forward_pallas.1} parent=1 // pred_check
      _
    $region39: #{_forward_pallas.1} parent=1 // pred_check_branch
      %113 = sbr.rel (0) target = $region41
    $region40: #{_forward_pallas.1} parent=1 // pred_region
      %s115 = ssub.s32 16384, 16384
      %116 = vsyncadd [#allocation12], %s115
      %s117 = sshll.u32 [#allocation13], 4
      %s118 = int_to_ptr.vmem [resolvable:$true] %s117
      %123 = dma.hbm_to_vmem [thread:$0]  %s9, 16384, %s118, [#allocation12], 256, 256, 16
    $region41: #{_forward_pallas.1} parent=1 // pred_fallthru
      _
    // Predicated region
    $region42: #{_forward_pallas.1} parent=1 // pred_check
      _
    $region43: #{_forward_pallas.1} parent=1 // pred_check_branch
      %125 = sbr.rel (0) target = $region45
    $region44: #{_forward_pallas.1} parent=1 // pred_region
      _
    $region45: #{_forward_pallas.1} parent=1 // pred_fallthru
      _
    // Predicated region
    $region46: #{_forward_pallas.1} parent=1 // pred_check
      _
    $region47: #{_forward_pallas.1} parent=1 // pred_check_branch
      %127 = sbr.rel (0) target = $region49
    $region48: #{_forward_pallas.1} parent=1 // pred_region
      _
    $region49: #{_forward_pallas.1} parent=1 // pred_fallthru
      _
    // Predicated region
    $region50: #{_forward_pallas.1} parent=1 // pred_check
      _
    $region51: #{_forward_pallas.1} parent=1 // pred_check_branch
      %129 = sbr.rel (0) target = $region53
    $region52: #{_forward_pallas.1} parent=1 // pred_region
      %s131 = ssub.s32 64, 64
      %132 = vsyncadd [#allocation15], %s131
      %s134 = sshll.u32 [#allocation14], 4
      %s135 = int_to_ptr.vmem [resolvable:$true] %s134
      %137 = dma.hbm_to_vmem [thread:$0]  %s12, 64, %s135, [#allocation15]
    $region53: #{_forward_pallas.1} parent=1 // pred_fallthru
      _
    // Predicated region
    $region54: #{_forward_pallas.1} parent=1 // pred_check
      _
    $region55: #{_forward_pallas.1} parent=1 // pred_check_branch
      %139 = sbr.rel (0) target = $region57
    $region56: #{_forward_pallas.1} parent=1 // pred_region
      %s141 = ssub.s32 16384, 16384
      %142 = vsyncadd [#allocation15], %s141
      %s143 = sshll.u32 [#allocation16], 4
      %s144 = int_to_ptr.vmem [resolvable:$true] %s143
      %149 = dma.hbm_to_vmem [thread:$0]  %s13, 16384, %s144, [#allocation15], 256, 256, 16
    $region57: #{_forward_pallas.1} parent=1 // pred_fallthru
      _
    // Predicated region
    $region58: #{_forward_pallas.1} parent=1 // pred_check
      _
    $region59: #{_forward_pallas.1} parent=1 // pred_check_branch
      %151 = sbr.rel (0) target = $region61
    $region60: #{_forward_pallas.1} parent=1 // pred_region
      %s153 = ssub.s32 64, 64
      %154 = vsyncadd [#allocation18], %s153
      %s156 = sshll.u32 [#allocation17], 4
      %s157 = int_to_ptr.vmem [resolvable:$true] %s156
      %159 = dma.hbm_to_vmem [thread:$0]  %s14, 64, %s157, [#allocation18]
    $region61: #{_forward_pallas.1} parent=1 // pred_fallthru
      _
    // Predicated region
    $region62: #{_forward_pallas.1} parent=1 // pred_check
      _
    $region63: #{_forward_pallas.1} parent=1 // pred_check_branch
      %161 = sbr.rel (0) target = $region65
    $region64: #{_forward_pallas.1} parent=1 // pred_region
      %s163 = ssub.s32 64, 64
      %164 = vsyncadd [#allocation18], %s163
      %s166 = sshll.u32 [#allocation19], 4
      %s167 = int_to_ptr.vmem [resolvable:$true] %s166
      %169 = dma.hbm_to_vmem [thread:$0]  %s15, 64, %s167, [#allocation18]
    $region65: #{_forward_pallas.1} parent=1 // pred_fallthru
      _
    // Predicated region
    $region66: #{_forward_pallas.1} parent=1 // pred_check
      _
    $region67: #{_forward_pallas.1} parent=1 // pred_check_branch
      %171 = sbr.rel (0) target = $region69
    $region68: #{_forward_pallas.1} parent=1 // pred_region
      %s173 = ssub.s32 64, 64
      %174 = vsyncadd [#allocation21], %s173
      %s176 = sshll.u32 [#allocation20], 4
      %s177 = int_to_ptr.vmem [resolvable:$true] %s176
      %179 = dma.hbm_to_vmem [thread:$0]  %s16, 64, %s177, [#allocation21]
    $region69: #{_forward_pallas.1} parent=1 // pred_fallthru
      _
    // Predicated region
    $region70: #{_forward_pallas.1} parent=1 // pred_check
      _
    $region71: #{_forward_pallas.1} parent=1 // pred_check_branch
      %181 = sbr.rel (0) target = $region73
    $region72: #{_forward_pallas.1} parent=1 // pred_region
      %s183 = ssub.s32 16384, 16384
      %184 = vsyncadd [#allocation21], %s183
      %s185 = sshll.u32 [#allocation22], 4
      %s186 = int_to_ptr.vmem [resolvable:$true] %s185
      %191 = dma.hbm_to_vmem [thread:$0]  %s17, 16384, %s186, [#allocation21], 256, 256, 16
    $region73: #{_forward_pallas.1} parent=1 // pred_fallthru
      _
    // Predicated region
    $region74: #{_forward_pallas.1} parent=1 // pred_check
      _
    $region75: #{_forward_pallas.1} parent=1 // pred_check_branch
      %193 = sbr.rel (0) target = $region77
    $region76: #{_forward_pallas.1} parent=1 // pred_region
      %s195 = ssub.s32 64, 64
      %196 = vsyncadd [#allocation24], %s195
      %s198 = sshll.u32 [#allocation23], 4
      %s199 = int_to_ptr.vmem [resolvable:$true] %s198
      %201 = dma.hbm_to_vmem [thread:$0]  %s18, 64, %s199, [#allocation24]
    $region77: #{_forward_pallas.1} parent=1 // pred_fallthru
      _
    // Predicated region
    $region78: #{_forward_pallas.1} parent=1 // pred_check
      _
    $region79: #{_forward_pallas.1} parent=1 // pred_check_branch
      %203 = sbr.rel (0) target = $region81
    $region80: #{_forward_pallas.1} parent=1 // pred_region
      %s205 = ssub.s32 64, 64
      %206 = vsyncadd [#allocation24], %s205
      %s208 = sshll.u32 [#allocation25], 4
      %s209 = int_to_ptr.vmem [resolvable:$true] %s208
      %211 = dma.hbm_to_vmem [thread:$0]  %s19, 64, %s209, [#allocation24]
    $region81: #{_forward_pallas.1} parent=1 // pred_fallthru
      _
    // Predicated region
    $region82: #{_forward_pallas.1} parent=1 // pred_check
      _
    $region83: #{_forward_pallas.1} parent=1 // pred_check_branch
      %213 = sbr.rel (0) target = $region85
    $region84: #{_forward_pallas.1} parent=1 // pred_region
      %s215 = ssub.s32 64, 64
      %216 = vsyncadd [#allocation27], %s215
      %s218 = sshll.u32 [#allocation26], 4
      %s219 = int_to_ptr.vmem [resolvable:$true] %s218
      %221 = dma.hbm_to_vmem [thread:$0]  %s20, 64, %s219, [#allocation27]
    $region85: #{_forward_pallas.1} parent=1 // pred_fallthru
      _
    // Predicated region
    $region86: #{_forward_pallas.1} parent=1 // pred_check
      _
    $region87: #{_forward_pallas.1} parent=1 // pred_check_branch
      %223 = sbr.rel (0) target = $region89
    $region88: #{_forward_pallas.1} parent=1 // pred_region
      %s225 = ssub.s32 4096, 4096
      %226 = vsyncadd [#allocation27], %s225
      %s227 = sshll.u32 [#allocation28], 4
      %s228 = int_to_ptr.vmem [resolvable:$true] %s227
      %233 = dma.hbm_to_vmem [thread:$0]  %s21, 4096, %s228, [#allocation27], 64, 64, 4
    $region89: #{_forward_pallas.1} parent=1 // pred_fallthru
      _
    // Predicated region
    $region90: #{_forward_pallas.1} parent=1 // pred_check
      _
    $region91: #{_forward_pallas.1} parent=1 // pred_check_branch
      %235 = sbr.rel (0) target = $region93
    $region92: #{_forward_pallas.1} parent=1 // pred_region
      _
    $region93: #{_forward_pallas.1} parent=1 // pred_fallthru
      _
    // Predicated region
    $region94: #{_forward_pallas.1} parent=1 // pred_check
      _
    $region95: #{_forward_pallas.1} parent=1 // pred_check_branch
      %237 = sbr.rel (0) target = $region97
    $region96: #{_forward_pallas.1} parent=1 // pred_region
      %238 = dma.done [#allocation3], 1536
    $region97: #{_forward_pallas.1} parent=1 // pred_fallthru
      _
    // Predicated region
    $region98: #{_forward_pallas.1} parent=1 // pred_check
      _
    $region99: #{_forward_pallas.1} parent=1 // pred_check_branch
      %240 = sbr.rel (0) target = $region101
    $region100: #{_forward_pallas.1} parent=1 // pred_region
      %241 = dma.done [#allocation6], 1280
    $region101: #{_forward_pallas.1} parent=1 // pred_fallthru
      _
    // Predicated region
    $region102: #{_forward_pallas.1} parent=1 // pred_check
      _
    $region103: #{_forward_pallas.1} parent=1 // pred_check_branch
      %243 = sbr.rel (0) target = $region105
    $region104: #{_forward_pallas.1} parent=1 // pred_region
      %244 = dma.done [#allocation6], 4096
    $region105: #{_forward_pallas.1} parent=1 // pred_fallthru
      _
    // Predicated region
    $region106: #{_forward_pallas.1} parent=1 // pred_check
      _
    $region107: #{_forward_pallas.1} parent=1 // pred_check_branch
      %246 = sbr.rel (0) target = $region109
    $region108: #{_forward_pallas.1} parent=1 // pred_region
      %247 = dma.done [#allocation9], 64
    $region109: #{_forward_pallas.1} parent=1 // pred_fallthru
      _
    // Predicated region
    $region110: #{_forward_pallas.1} parent=1 // pred_check
      _
    $region111: #{_forward_pallas.1} parent=1 // pred_check_branch
      %249 = sbr.rel (0) target = $region113
    $region112: #{_forward_pallas.1} parent=1 // pred_region
      %250 = dma.done [#allocation9], 8192
    $region113: #{_forward_pallas.1} parent=1 // pred_fallthru
      _
    // Predicated region
    $region114: #{_forward_pallas.1} parent=1 // pred_check
      _
    $region115: #{_forward_pallas.1} parent=1 // pred_check_branch
      %252 = sbr.rel (0) target = $region117
    $region116: #{_forward_pallas.1} parent=1 // pred_region
      %253 = dma.done [#allocation12], 64
    $region117: #{_forward_pallas.1} parent=1 // pred_fallthru
      _
    // Predicated region
    $region118: #{_forward_pallas.1} parent=1 // pred_check
      _
    $region119: #{_forward_pallas.1} parent=1 // pred_check_branch
      %255 = sbr.rel (0) target = $region121
    $region120: #{_forward_pallas.1} parent=1 // pred_region
      %256 = dma.done [#allocation12], 16384
    $region121: #{_forward_pallas.1} parent=1 // pred_fallthru
      _
    // Predicated region
    $region122: #{_forward_pallas.1} parent=1 // pred_check
      _
    $region123: #{_forward_pallas.1} parent=1 // pred_check_branch
      %258 = sbr.rel (0) target = $region125
    $region124: #{_forward_pallas.1} parent=1 // pred_region
      %259 = dma.done [#allocation15], 64
    $region125: #{_forward_pallas.1} parent=1 // pred_fallthru
      _
    // Predicated region
    $region126: #{_forward_pallas.1} parent=1 // pred_check
      _
    $region127: #{_forward_pallas.1} parent=1 // pred_check_branch
      %261 = sbr.rel (0) target = $region129
    $region128: #{_forward_pallas.1} parent=1 // pred_region
      %262 = dma.done [#allocation15], 16384
    $region129: #{_forward_pallas.1} parent=1 // pred_fallthru
      _
    // Predicated region
    $region130: #{_forward_pallas.1} parent=1 // pred_check
      _
    $region131: #{_forward_pallas.1} parent=1 // pred_check_branch
      %264 = sbr.rel (0) target = $region133
    $region132: #{_forward_pallas.1} parent=1 // pred_region
      %265 = dma.done [#allocation18], 64
    $region133: #{_forward_pallas.1} parent=1 // pred_fallthru
      _
    // Predicated region
    $region134: #{_forward_pallas.1} parent=1 // pred_check
      _
    $region135: #{_forward_pallas.1} parent=1 // pred_check_branch
      %267 = sbr.rel (0) target = $region137
    $region136: #{_forward_pallas.1} parent=1 // pred_region
      %268 = dma.done [#allocation18], 64
    $region137: #{_forward_pallas.1} parent=1 // pred_fallthru
      _
    // Predicated region
    $region138: #{_forward_pallas.1} parent=1 // pred_check
      _
    $region139: #{_forward_pallas.1} parent=1 // pred_check_branch
      %270 = sbr.rel (0) target = $region141
    $region140: #{_forward_pallas.1} parent=1 // pred_region
      %271 = dma.done [#allocation21], 64
    $region141: #{_forward_pallas.1} parent=1 // pred_fallthru
      _
    // Predicated region
    $region142: #{_forward_pallas.1} parent=1 // pred_check
      _
    $region143: #{_forward_pallas.1} parent=1 // pred_check_branch
      %273 = sbr.rel (0) target = $region145
    $region144: #{_forward_pallas.1} parent=1 // pred_region
      %274 = dma.done [#allocation21], 16384
    $region145: #{_forward_pallas.1} parent=1 // pred_fallthru
      _
    // Predicated region
    $region146: #{_forward_pallas.1} parent=1 // pred_check
      _
    $region147: #{_forward_pallas.1} parent=1 // pred_check_branch
      %276 = sbr.rel (0) target = $region149
    $region148: #{_forward_pallas.1} parent=1 // pred_region
      %277 = dma.done [#allocation24], 64
    $region149: #{_forward_pallas.1} parent=1 // pred_fallthru
      _
    // Predicated region
    $region150: #{_forward_pallas.1} parent=1 // pred_check
      _
    $region151: #{_forward_pallas.1} parent=1 // pred_check_branch
      %279 = sbr.rel (0) target = $region153
    $region152: #{_forward_pallas.1} parent=1 // pred_region
      %280 = dma.done [#allocation24], 64
    $region153: #{_forward_pallas.1} parent=1 // pred_fallthru
      _
    // Predicated region
    $region154: #{_forward_pallas.1} parent=1 // pred_check
      _
    $region155: #{_forward_pallas.1} parent=1 // pred_check_branch
      %282 = sbr.rel (0) target = $region157
    $region156: #{_forward_pallas.1} parent=1 // pred_region
      %283 = dma.done [#allocation27], 64
    $region157: #{_forward_pallas.1} parent=1 // pred_fallthru
      _
    // Predicated region
    $region158: #{_forward_pallas.1} parent=1 // pred_check
      _
    $region159: #{_forward_pallas.1} parent=1 // pred_check_branch
      %285 = sbr.rel (0) target = $region161
    $region160: #{_forward_pallas.1} parent=1 // pred_region
      %286 = dma.done [#allocation27], 4096
    $region161: #{_forward_pallas.1} parent=1 // pred_fallthru
      _
    %v288 = vld [vmem:[#allocation2] sm:$0xff]
    %v289 = vld [vmem:[#allocation2 + $0x8] sm:$0xff]
    %v290 = vld [vmem:[#allocation2 + $0x10] sm:$0xff]
    %v291 = vld [vmem:[#allocation2 + $0x18] sm:$0xff]
    %v292 = vld [vmem:[#allocation2 + $0x20] sm:$0xff]
    %v293 = vld [vmem:[#allocation2 + $0x28] sm:$0xff]
    %v294 = vld [vmem:[#allocation2 + $0x30] sm:$0xff]
    %v295 = vld [vmem:[#allocation2 + $0x38] sm:$0xff]
    %v296 = vld [vmem:[#allocation2 + $0x40] sm:$0xff]
    %v297 = vld [vmem:[#allocation2 + $0x48] sm:$0xff]
    %v298 = vld [vmem:[#allocation2 + $0x50] sm:$0xff]
    %v299 = vld [vmem:[#allocation2 + $0x58] sm:$0xff]
    %v300 = vpack.c.bf16 %v289, %v288
    %v301 = vpack.c.bf16 %v291, %v290
    %v302 = vpack.c.bf16 %v293, %v292
    %v303 = vpack.c.bf16 %v295, %v294
    %v304 = vpack.c.bf16 %v297, %v296
    %v305 = vpack.c.bf16 %v299, %v298
    %v306 = vld [vmem:[#allocation5] sm:$0xff]
    %v307 = vld [vmem:[#allocation5 + $0x8] sm:$0xff]
    %v308 = vld [vmem:[#allocation5 + $0x10] sm:$0xff]
    %v309 = vld [vmem:[#allocation5 + $0x18] sm:$0xff]
    %v310 = vld [vmem:[#allocation5 + $0x20] sm:$0xff]
    %v311 = vld [vmem:[#allocation5 + $0x28] sm:$0xff]
    %v312 = vld [vmem:[#allocation5 + $0x30] sm:$0xff]
    %v313 = vld [vmem:[#allocation5 + $0x38] sm:$0xff]
    %v314 = vld [vmem:[#allocation5 + $0x40] sm:$0x33]
    %v315 = vld [vmem:[#allocation5 + $0x48] sm:$0x33]
    %v316 = vld [vmem:[#allocation8] sm:$0xf]
    %v318 = vlaneseq
    %v319 = vshrl.u32 %v318, 7
    %v320 = vsub.s32 0, %v319
    %v321 = vrot.slane %v316, %v320
    %v322 = vlaneseq
    %v323 = vshrl.u32 %v322, 7
    %v324 = vsub.s32 1, %v323
    %v325 = vrot.slane %v316, %v324
    %v326 = vlaneseq
    %v327 = vshrl.u32 %v326, 7
    %v328 = vsub.s32 2, %v327
    %v329 = vrot.slane %v316, %v328
    %v330 = vlaneseq
    %v331 = vshrl.u32 %v330, 7
    %v332 = vsub.s32 3, %v331
    %v333 = vrot.slane %v316, %v332
    %v348 = vunpack.c.l.b16 %v306
    %v349 = vunpack.c.h.b16 %v306
    %v350 = vunpack.c.l.b16 %v307
    %v351 = vunpack.c.h.b16 %v307
    %v352 = vunpack.c.l.b16 %v308
    %v353 = vunpack.c.h.b16 %v308
    %v354 = vunpack.c.l.b16 %v309
    %v355 = vunpack.c.h.b16 %v309
    %v356 = vunpack.c.l.b16 %v310
    %v357 = vunpack.c.h.b16 %v310
    %v358 = vunpack.c.l.b16 %v311
    %v359 = vunpack.c.h.b16 %v311
    %v360 = vunpack.c.l.b16 %v312
    %v361 = vunpack.c.h.b16 %v312
    %v362 = vunpack.c.l.b16 %v313
    %v363 = vunpack.c.h.b16 %v313
    %v364 = vunpack.c.l.b16 %v314
    %v365 = vunpack.c.h.b16 %v314
    %v366 = vunpack.c.l.b16 %v315
    %v367 = vunpack.c.h.b16 %v315
    %v368 = vpack.c.b16 %v352, %v348
    %v369 = vpack.c.b16 %v353, %v349
    %v370 = vpack.c.b16 %v354, %v350
    %v371 = vpack.c.b16 %v355, %v351
    %v372 = vpack.c.b16 %v360, %v356
    %v373 = vpack.c.b16 %v361, %v357
    %v374 = vpack.c.b16 %v362, %v358
    %v375 = vpack.c.b16 %v363, %v359
    %v376 = vpack.c.b16 %v364, %v364
    %v377 = vpack.c.b16 %v365, %v365
    %v378 = vpack.c.b16 %v366, %v366
    %v379 = vpack.c.b16 %v367, %v367
    %vm388 = vcmask 285696
    %v390 = vsel %vm388, %v300, 0
    %v393 = vsel %vm388, %v301, 0
    %v396 = vsel %vm388, %v302, 0
    %v399 = vsel %vm388, %v303, 0
    %v402 = vsel %vm388, %v304, 0
    %v405 = vsel %vm388, %v305, 0
    %vm407 = vcmask 1040384
    %vm408 = vcmask 1041408
    %v409 = vsel %vm407, 4294967295, 65535
    %v410 = vsel %vm408, %v409, 0
    %v412 = vand.u32 %v376, %v410
    %v415 = vand.u32 %v377, %v410
    %v418 = vand.u32 %v378, %v410
    %v421 = vand.u32 %v379, %v410
    %423 = vmatprep.subr.bf16.mxu0 0
    %424 = vmatpush1.bf16.msra.mxu0 0
    %425 = vmatprep.subr.bf16.mxu0 0
    %426 = vmatpush1.bf16.msra.mxu0 0
    %427 = vmatprep.subr.bf16.mxu0 0
    %428 = vmatpush1.bf16.msra.mxu0 0
    %429 = vmatprep.subr.bf16.mxu0 0
    %430 = vmatpush1.bf16.msra.mxu0 0
    %431 = vmatprep.subr.bf16.mxu0 0
    %432 = vmatpush1.bf16.msra.mxu0 0
    %433 = vmatprep.subr.bf16.mxu0 %v415
    %434 = vmatpush1.bf16.msra.mxu0 %v412
    %435 = vmatprep.subr.bf16.mxu0 %v373
    %436 = vmatpush1.bf16.msra.mxu0 %v372
    %437 = vmatprep.subr.bf16.mxu0 %v369
    %438 = vmatpush1.bf16.msra.mxu0 %v368
    %439 = vmatprep.subr.bf16.mxu0 0
    %440 = vmatpush2.bf16.msra.mxu0 0
    %441 = vmatprep.subr.bf16.mxu0 0
    %442 = vmatpush2.bf16.msra.mxu0 0
    %443 = vmatprep.subr.bf16.mxu0 0
    %444 = vmatpush2.bf16.msra.mxu0 0
    %445 = vmatprep.subr.bf16.mxu0 0
    %446 = vmatpush2.bf16.msra.mxu0 0
    %447 = vmatprep.subr.bf16.mxu0 0
    %448 = vmatpush2.bf16.msra.mxu0 0
    %449 = vmatprep.subr.bf16.mxu0 0
    %450 = vmatpush2.bf16.msra.mxu0 0
    %451 = vmatprep.subr.bf16.mxu0 0
    %452 = vmatpush2.bf16.msra.mxu0 0
    %453 = vmatprep.subr.bf16.mxu0 0
    %454 = vmatpush2.bf16.msra.mxu0 0
    %455 = vmatprep.mubr.bf16.mxu0 0
    %456 = vmatmul.mubr.bf16.gmra.mxu0 %v390
    %v457 = vpop.f32.mrf.mxu0
    %v458 = vadd.f32 %v321, %v457
    %v459 = vpop.f32.mrf.mxu0
    %v460 = vadd.f32 %v325, %v459
    %v461 = vpop.f32.mrf.mxu0
    %v462 = vadd.f32 %v321, %v461
    %v463 = vpop.f32.mrf.mxu0
    %v464 = vadd.f32 %v325, %v463
    %465 = vmatprep.mubr.bf16.mxu0 0
    %466 = vmatmul.mubr.bf16.gmra.mxu0 %v393
    %v467 = vpop.f32.mrf.mxu0
    %v468 = vadd.f32 %v321, %v467
    %v469 = vpop.f32.mrf.mxu0
    %v470 = vadd.f32 %v325, %v469
    %v471 = vpop.f32.mrf.mxu0
    %v472 = vadd.f32 %v321, %v471
    %v473 = vpop.f32.mrf.mxu0
    %v474 = vadd.f32 %v325, %v473
    %475 = vmatprep.mubr.bf16.mxu0 0
    %476 = vmatmul.mubr.bf16.gmra.mxu0 %v396
    %v477 = vpop.f32.mrf.mxu0
    %v478 = vadd.f32 %v321, %v477
    %v479 = vpop.f32.mrf.mxu0
    %v480 = vadd.f32 %v325, %v479
    %v481 = vpop.f32.mrf.mxu0
    %v482 = vadd.f32 %v321, %v481
    %v483 = vpop.f32.mrf.mxu0
    %v484 = vadd.f32 %v325, %v483
    %485 = vmatprep.mubr.bf16.mxu0 0
    %486 = vmatmul.mubr.bf16.gmra.mxu0 %v399
    %v487 = vpop.f32.mrf.mxu0
    %v488 = vadd.f32 %v321, %v487
    %v489 = vpop.f32.mrf.mxu0
    %v490 = vadd.f32 %v325, %v489
    %v491 = vpop.f32.mrf.mxu0
    %v492 = vadd.f32 %v321, %v491
    %v493 = vpop.f32.mrf.mxu0
    %v494 = vadd.f32 %v325, %v493
    %495 = vmatprep.mubr.bf16.mxu0 0
    %496 = vmatmul.mubr.bf16.gmra.mxu0 %v402
    %v497 = vpop.f32.mrf.mxu0
    %v498 = vadd.f32 %v321, %v497
    %v499 = vpop.f32.mrf.mxu0
    %v500 = vadd.f32 %v325, %v499
    %v501 = vpop.f32.mrf.mxu0
    %v502 = vadd.f32 %v321, %v501
    %v503 = vpop.f32.mrf.mxu0
    %v504 = vadd.f32 %v325, %v503
    %505 = vmatprep.mubr.bf16.mxu0 0
    %506 = vmatmul.mubr.bf16.gmra.mxu0 %v405
    %v507 = vpop.f32.mrf.mxu0
    %v508 = vadd.f32 %v321, %v507
    %v509 = vpop.f32.mrf.mxu0
    %v510 = vadd.f32 %v325, %v509
    %v511 = vpop.f32.mrf.mxu0
    %v512 = vadd.f32 %v321, %v511
    %v513 = vpop.f32.mrf.mxu0
    %v514 = vadd.f32 %v325, %v513
    %515 = vdwg.mxu0
    %516 = vmatprep.subr.bf16.mxu0 0
    %517 = vmatpush1.bf16.msra.mxu0 0
    %518 = vmatprep.subr.bf16.mxu0 0
    %519 = vmatpush1.bf16.msra.mxu0 0
    %520 = vmatprep.subr.bf16.mxu0 0
    %521 = vmatpush1.bf16.msra.mxu0 0
    %522 = vmatprep.subr.bf16.mxu0 0
    %523 = vmatpush1.bf16.msra.mxu0 0
    %524 = vmatprep.subr.bf16.mxu0 0
    %525 = vmatpush1.bf16.msra.mxu0 0
    %526 = vmatprep.subr.bf16.mxu0 %v421
    %527 = vmatpush1.bf16.msra.mxu0 %v418
    %528 = vmatprep.subr.bf16.mxu0 %v375
    %529 = vmatpush1.bf16.msra.mxu0 %v374
    %530 = vmatprep.subr.bf16.mxu0 %v371
    %531 = vmatpush1.bf16.msra.mxu0 %v370
    %532 = vmatprep.subr.bf16.mxu0 0
    %533 = vmatpush2.bf16.msra.mxu0 0
    %534 = vmatprep.subr.bf16.mxu0 0
    %535 = vmatpush2.bf16.msra.mxu0 0
    %536 = vmatprep.subr.bf16.mxu0 0
    %537 = vmatpush2.bf16.msra.mxu0 0
    %538 = vmatprep.subr.bf16.mxu0 0
    %539 = vmatpush2.bf16.msra.mxu0 0
    %540 = vmatprep.subr.bf16.mxu0 0
    %541 = vmatpush2.bf16.msra.mxu0 0
    %542 = vmatprep.subr.bf16.mxu0 0
    %543 = vmatpush2.bf16.msra.mxu0 0
    %544 = vmatprep.subr.bf16.mxu0 0
    %545 = vmatpush2.bf16.msra.mxu0 0
    %546 = vmatprep.subr.bf16.mxu0 0
    %547 = vmatpush2.bf16.msra.mxu0 0
    %548 = vmatprep.mubr.bf16.mxu0 0
    %549 = vmatmul.mubr.bf16.gmra.mxu0 %v390
    %v550 = vpop.f32.mrf.mxu0
    %v551 = vadd.f32 %v329, %v550
    %v552 = vpop.f32.mrf.mxu0
    %v553 = vadd.f32 %v333, %v552
    %v554 = vpop.f32.mrf.mxu0
    %v555 = vadd.f32 %v329, %v554
    %v556 = vpop.f32.mrf.mxu0
    %v557 = vadd.f32 %v333, %v556
    %558 = vmatprep.mubr.bf16.mxu0 0
    %559 = vmatmul.mubr.bf16.gmra.mxu0 %v393
    %v560 = vpop.f32.mrf.mxu0
    %v561 = vadd.f32 %v329, %v560
    %v562 = vpop.f32.mrf.mxu0
    %v563 = vadd.f32 %v333, %v562
    %v564 = vpop.f32.mrf.mxu0
    %v565 = vadd.f32 %v329, %v564
    %v566 = vpop.f32.mrf.mxu0
    %v567 = vadd.f32 %v333, %v566
    %568 = vmatprep.mubr.bf16.mxu0 0
    %569 = vmatmul.mubr.bf16.gmra.mxu0 %v396
    %v570 = vpop.f32.mrf.mxu0
    %v571 = vadd.f32 %v329, %v570
    %v572 = vpop.f32.mrf.mxu0
    %v573 = vadd.f32 %v333, %v572
    %v574 = vpop.f32.mrf.mxu0
    %v575 = vadd.f32 %v329, %v574
    %v576 = vpop.f32.mrf.mxu0
    %v577 = vadd.f32 %v333, %v576
    %578 = vmatprep.mubr.bf16.mxu0 0
    %579 = vmatmul.mubr.bf16.gmra.mxu0 %v399
    %v580 = vpop.f32.mrf.mxu0
    %v581 = vadd.f32 %v329, %v580
    %v582 = vpop.f32.mrf.mxu0
    %v583 = vadd.f32 %v333, %v582
    %v584 = vpop.f32.mrf.mxu0
    %v585 = vadd.f32 %v329, %v584
    %v586 = vpop.f32.mrf.mxu0
    %v587 = vadd.f32 %v333, %v586
    %588 = vmatprep.mubr.bf16.mxu0 0
    %589 = vmatmul.mubr.bf16.gmra.mxu0 %v402
    %v590 = vpop.f32.mrf.mxu0
    %v591 = vadd.f32 %v329, %v590
    %v592 = vpop.f32.mrf.mxu0
    %v593 = vadd.f32 %v333, %v592
    %v594 = vpop.f32.mrf.mxu0
    %v595 = vadd.f32 %v329, %v594
    %v596 = vpop.f32.mrf.mxu0
    %v597 = vadd.f32 %v333, %v596
    %598 = vmatprep.mubr.bf16.mxu0 0
    %599 = vmatmul.mubr.bf16.gmra.mxu0 %v405
    %v600 = vpop.f32.mrf.mxu0
    %v601 = vadd.f32 %v329, %v600
    %v602 = vpop.f32.mrf.mxu0
    %v603 = vadd.f32 %v333, %v602
    %v604 = vpop.f32.mrf.mxu0
    %v605 = vadd.f32 %v329, %v604
    %v606 = vpop.f32.mrf.mxu0
    %v607 = vadd.f32 %v333, %v606
    %608 = vdwg.mxu0
    %v609 = vld [vmem:[#allocation7] sm:$0xff]
    %v610 = vld [vmem:[#allocation7 + $0x8] sm:$0xff]
    %v611 = vld [vmem:[#allocation7 + $0x10] sm:$0xff]
    %v612 = vld [vmem:[#allocation7 + $0x18] sm:$0xff]
    %v613 = vld [vmem:[#allocation7 + $0x20] sm:$0xff]
    %v614 = vld [vmem:[#allocation7 + $0x28] sm:$0xff]
    %v615 = vld [vmem:[#allocation7 + $0x30] sm:$0xff]
    %v616 = vld [vmem:[#allocation7 + $0x38] sm:$0xff]
    %v617 = vld [vmem:[#allocation7 + $0x40] sm:$0xff]
    %v618 = vld [vmem:[#allocation7 + $0x48] sm:$0xff]
    %v619 = vld [vmem:[#allocation7 + $0x50] sm:$0xff]
    %v620 = vld [vmem:[#allocation7 + $0x58] sm:$0xff]
    %v621 = vld [vmem:[#allocation7 + $0x60] sm:$0xff]
    %v622 = vld [vmem:[#allocation7 + $0x68] sm:$0xff]
    %v623 = vld [vmem:[#allocation7 + $0x70] sm:$0xff]
    %v624 = vld [vmem:[#allocation7 + $0x78] sm:$0xff]
    %v625 = vld [vmem:[#allocation7 + $0x80] sm:$0xff]
    %v626 = vld [vmem:[#allocation7 + $0x88] sm:$0xff]
    %v627 = vld [vmem:[#allocation7 + $0x90] sm:$0xff]
    %v628 = vld [vmem:[#allocation7 + $0x98] sm:$0xff]
    %v629 = vld [vmem:[#allocation7 + $0xa0] sm:$0xff]
    %v630 = vld [vmem:[#allocation7 + $0xa8] sm:$0xff]
    %v631 = vld [vmem:[#allocation7 + $0xb0] sm:$0xff]
    %v632 = vld [vmem:[#allocation7 + $0xb8] sm:$0xff]
    %v633 = vld [vmem:[#allocation7 + $0xc0] sm:$0xff]
    %v634 = vld [vmem:[#allocation7 + $0xc8] sm:$0xff]
    %v635 = vld [vmem:[#allocation7 + $0xd0] sm:$0xff]
    %v636 = vld [vmem:[#allocation7 + $0xd8] sm:$0xff]
    %v637 = vld [vmem:[#allocation7 + $0xe0] sm:$0xff]
    %v638 = vld [vmem:[#allocation7 + $0xe8] sm:$0xff]
    %v639 = vld [vmem:[#allocation7 + $0xf0] sm:$0xff]
    %v640 = vld [vmem:[#allocation7 + $0xf8] sm:$0xff]
    %v673 = vunpack.c.l.b16 %v609
    %v674 = vunpack.c.h.b16 %v609
    %v675 = vunpack.c.l.b16 %v610
    %v676 = vunpack.c.h.b16 %v610
    %v677 = vunpack.c.l.b16 %v611
    %v678 = vunpack.c.h.b16 %v611
    %v679 = vunpack.c.l.b16 %v612
    %v680 = vunpack.c.h.b16 %v612
    %v681 = vunpack.c.l.b16 %v613
    %v682 = vunpack.c.h.b16 %v613
    %v683 = vunpack.c.l.b16 %v614
    %v684 = vunpack.c.h.b16 %v614
    %v685 = vunpack.c.l.b16 %v615
    %v686 = vunpack.c.h.b16 %v615
    %v687 = vunpack.c.l.b16 %v616
    %v688 = vunpack.c.h.b16 %v616
    %v689 = vunpack.c.l.b16 %v617
    %v690 = vunpack.c.h.b16 %v617
    %v691 = vunpack.c.l.b16 %v618
    %v692 = vunpack.c.h.b16 %v618
    %v693 = vunpack.c.l.b16 %v619
    %v694 = vunpack.c.h.b16 %v619
    %v695 = vunpack.c.l.b16 %v620
    %v696 = vunpack.c.h.b16 %v620
    %v697 = vunpack.c.l.b16 %v621
    %v698 = vunpack.c.h.b16 %v621
    %v699 = vunpack.c.l.b16 %v622
    %v700 = vunpack.c.h.b16 %v622
    %v701 = vunpack.c.l.b16 %v623
    %v702 = vunpack.c.h.b16 %v623
    %v703 = vunpack.c.l.b16 %v624
    %v704 = vunpack.c.h.b16 %v624
    %v705 = vunpack.c.l.b16 %v625
    %v706 = vunpack.c.h.b16 %v625
    %v707 = vunpack.c.l.b16 %v626
    %v708 = vunpack.c.h.b16 %v626
    %v709 = vunpack.c.l.b16 %v627
    %v710 = vunpack.c.h.b16 %v627
    %v711 = vunpack.c.l.b16 %v628
    %v712 = vunpack.c.h.b16 %v628
    %v713 = vunpack.c.l.b16 %v629
    %v714 = vunpack.c.h.b16 %v629
    %v715 = vunpack.c.l.b16 %v630
    %v716 = vunpack.c.h.b16 %v630
    %v717 = vunpack.c.l.b16 %v631
    %v718 = vunpack.c.h.b16 %v631
    %v719 = vunpack.c.l.b16 %v632
    %v720 = vunpack.c.h.b16 %v632
    %v721 = vunpack.c.l.b16 %v633
    %v722 = vunpack.c.h.b16 %v633
    %v723 = vunpack.c.l.b16 %v634
    %v724 = vunpack.c.h.b16 %v634
    %v725 = vunpack.c.l.b16 %v635
    %v726 = vunpack.c.h.b16 %v635
    %v727 = vunpack.c.l.b16 %v636
    %v728 = vunpack.c.h.b16 %v636
    %v729 = vunpack.c.l.b16 %v637
    %v730 = vunpack.c.h.b16 %v637
    %v731 = vunpack.c.l.b16 %v638
    %v732 = vunpack.c.h.b16 %v638
    %v733 = vunpack.c.l.b16 %v639
    %v734 = vunpack.c.h.b16 %v639
    %v735 = vunpack.c.l.b16 %v640
    %v736 = vunpack.c.h.b16 %v640
    %v737 = vpack.c.b16 %v677, %v673
    %v738 = vpack.c.b16 %v678, %v674
    %v739 = vpack.c.b16 %v679, %v675
    %v740 = vpack.c.b16 %v680, %v676
    %v741 = vpack.c.b16 %v685, %v681
    %v742 = vpack.c.b16 %v686, %v682
    %v743 = vpack.c.b16 %v687, %v683
    %v744 = vpack.c.b16 %v688, %v684
    %v745 = vpack.c.b16 %v693, %v689
    %v746 = vpack.c.b16 %v694, %v690
    %v747 = vpack.c.b16 %v695, %v691
    %v748 = vpack.c.b16 %v696, %v692
    %v749 = vpack.c.b16 %v701, %v697
    %v750 = vpack.c.b16 %v702, %v698
    %v751 = vpack.c.b16 %v703, %v699
    %v752 = vpack.c.b16 %v704, %v700
    %v753 = vpack.c.b16 %v709, %v705
    %v754 = vpack.c.b16 %v710, %v706
    %v755 = vpack.c.b16 %v711, %v707
    %v756 = vpack.c.b16 %v712, %v708
    %v757 = vpack.c.b16 %v717, %v713
    %v758 = vpack.c.b16 %v718, %v714
    %v759 = vpack.c.b16 %v719, %v715
    %v760 = vpack.c.b16 %v720, %v716
    %v761 = vpack.c.b16 %v725, %v721
    %v762 = vpack.c.b16 %v726, %v722
    %v763 = vpack.c.b16 %v727, %v723
    %v764 = vpack.c.b16 %v728, %v724
    %v765 = vpack.c.b16 %v733, %v729
    %v766 = vpack.c.b16 %v734, %v730
    %v767 = vpack.c.b16 %v735, %v731
    %v768 = vpack.c.b16 %v736, %v732
    %801 = vmatprep.subr.bf16.mxu0 %v766
    %802 = vmatpush1.bf16.msra.mxu0 %v765
    %803 = vmatprep.subr.bf16.mxu0 %v762
    %804 = vmatpush1.bf16.msra.mxu0 %v761
    %805 = vmatprep.subr.bf16.mxu0 %v758
    %806 = vmatpush1.bf16.msra.mxu0 %v757
    %807 = vmatprep.subr.bf16.mxu0 %v754
    %808 = vmatpush1.bf16.msra.mxu0 %v753
    %809 = vmatprep.subr.bf16.mxu0 %v750
    %810 = vmatpush1.bf16.msra.mxu0 %v749
    %811 = vmatprep.subr.bf16.mxu0 %v746
    %812 = vmatpush1.bf16.msra.mxu0 %v745
    %813 = vmatprep.subr.bf16.mxu0 %v742
    %814 = vmatpush1.bf16.msra.mxu0 %v741
    %815 = vmatprep.subr.bf16.mxu0 %v738
    %816 = vmatpush1.bf16.msra.mxu0 %v737
    %817 = vmatprep.subr.bf16.mxu0 0
    %818 = vmatpush2.bf16.msra.mxu0 0
    %819 = vmatprep.subr.bf16.mxu0 0
    %820 = vmatpush2.bf16.msra.mxu0 0
    %821 = vmatprep.subr.bf16.mxu0 0
    %822 = vmatpush2.bf16.msra.mxu0 0
    %823 = vmatprep.subr.bf16.mxu0 0
    %824 = vmatpush2.bf16.msra.mxu0 0
    %825 = vmatprep.subr.bf16.mxu0 0
    %826 = vmatpush2.bf16.msra.mxu0 0
    %827 = vmatprep.subr.bf16.mxu0 0
    %828 = vmatpush2.bf16.msra.mxu0 0
    %829 = vmatprep.subr.bf16.mxu0 0
    %830 = vmatpush2.bf16.msra.mxu0 0
    %831 = vmatprep.subr.bf16.mxu0 0
    %832 = vmatpush2.bf16.msra.mxu0 0
    %833 = vmatprep.mubr.bf16.mxu0 0
    %834 = vmatmul.mubr.bf16.gmra.mxu0 0
    %v835 = vpop.f32.mrf.mxu0
    %v836 = vadd.f32 0.0, %v835
    %v837 = vpop.f32.mrf.mxu0
    %v838 = vadd.f32 0.0, %v837
    %v839 = vpop.f32.mrf.mxu0
    %v840 = vadd.f32 0.0, %v839
    %v841 = vpop.f32.mrf.mxu0
    %v842 = vadd.f32 0.0, %v841
    %843 = vdwg.mxu0
    %844 = vmatprep.subr.bf16.mxu0 %v768
    %845 = vmatpush1.bf16.msra.mxu0 %v767
    %846 = vmatprep.subr.bf16.mxu0 %v764
    %847 = vmatpush1.bf16.msra.mxu0 %v763
    %848 = vmatprep.subr.bf16.mxu0 %v760
    %849 = vmatpush1.bf16.msra.mxu0 %v759
    %850 = vmatprep.subr.bf16.mxu0 %v756
    %851 = vmatpush1.bf16.msra.mxu0 %v755
    %852 = vmatprep.subr.bf16.mxu0 %v752
    %853 = vmatpush1.bf16.msra.mxu0 %v751
    %854 = vmatprep.subr.bf16.mxu0 %v748
    %855 = vmatpush1.bf16.msra.mxu0 %v747
    %856 = vmatprep.subr.bf16.mxu0 %v744
    %857 = vmatpush1.bf16.msra.mxu0 %v743
    %858 = vmatprep.subr.bf16.mxu0 %v740
    %859 = vmatpush1.bf16.msra.mxu0 %v739
    %860 = vmatprep.subr.bf16.mxu0 0
    %861 = vmatpush2.bf16.msra.mxu0 0
    %862 = vmatprep.subr.bf16.mxu0 0
    %863 = vmatpush2.bf16.msra.mxu0 0
    %864 = vmatprep.subr.bf16.mxu0 0
    %865 = vmatpush2.bf16.msra.mxu0 0
    %866 = vmatprep.subr.bf16.mxu0 0
    %867 = vmatpush2.bf16.msra.mxu0 0
    %868 = vmatprep.subr.bf16.mxu0 0
    %869 = vmatpush2.bf16.msra.mxu0 0
    %870 = vmatprep.subr.bf16.mxu0 0
    %871 = vmatpush2.bf16.msra.mxu0 0
    %872 = vmatprep.subr.bf16.mxu0 0
    %873 = vmatpush2.bf16.msra.mxu0 0
    %874 = vmatprep.subr.bf16.mxu0 0
    %875 = vmatpush2.bf16.msra.mxu0 0
    %876 = vmatprep.mubr.bf16.mxu0 0
    %877 = vmatmul.mubr.bf16.gmra.mxu0 0
    %v878 = vpop.f32.mrf.mxu0
    %v879 = vadd.f32 0.0, %v878
    %v880 = vpop.f32.mrf.mxu0
    %v881 = vadd.f32 0.0, %v880
    %v882 = vpop.f32.mrf.mxu0
    %v883 = vadd.f32 0.0, %v882
    %v884 = vpop.f32.mrf.mxu0
    %v885 = vadd.f32 0.0, %v884
    %886 = vdwg.mxu0
    %v887 = vadd.f32 %v458, %v836
    %v888 = vadd.f32 %v460, %v838
    %v889 = vadd.f32 %v551, %v879
    %v890 = vadd.f32 %v553, %v881
    %v891 = vadd.f32 %v462, %v840
    %v892 = vadd.f32 %v464, %v842
    %v893 = vadd.f32 %v555, %v883
    %v894 = vadd.f32 %v557, %v885
    %v895 = vxor.u32 %v887, 2147483648
    %v896 = vxor.u32 %v891, 2147483648
    %v897 = vmul.f32 %v895, 1.442695
    %v898 = vpow.pop %v897
    %v899 = vmul.f32 %v896, 1.442695
    %v900 = vpow.pop %v899
    %v901 = vadd.f32 %v898, 1.0
    %v902 = vadd.f32 %v900, 1.0
    %v903 = vrcp.pop %v901
    %v904 = vmul.f32 1.0, %v903
    %v905 = vrcp.pop %v902
    %v906 = vmul.f32 1.0, %v905
    %v907 = vxor.u32 %v888, 2147483648
    %v908 = vxor.u32 %v892, 2147483648
    %v909 = vmul.f32 %v907, 1.442695
    %v910 = vpow.pop %v909
    %v911 = vmul.f32 %v908, 1.442695
    %v912 = vpow.pop %v911
    %v913 = vadd.f32 %v910, 1.0
    %v914 = vadd.f32 %v912, 1.0
    %v915 = vrcp.pop %v913
    %v916 = vmul.f32 1.0, %v915
    %v917 = vrcp.pop %v914
    %v918 = vmul.f32 1.0, %v917
    %v919 = vtanh.pop %v889
    %v920 = vtanh.pop %v893
    %v921 = vxor.u32 %v890, 2147483648
    %v922 = vxor.u32 %v894, 2147483648
    %v923 = vmul.f32 %v921, 1.442695
    %v924 = vpow.pop %v923
    %v925 = vmul.f32 %v922, 1.442695
    %v926 = vpow.pop %v925
    %v927 = vadd.f32 %v924, 1.0
    %v928 = vadd.f32 %v926, 1.0
    %v929 = vrcp.pop %v927
    %v930 = vmul.f32 1.0, %v929
    %v931 = vrcp.pop %v928
    %v932 = vmul.f32 1.0, %v931
    %v933 = vmul.f32 %v916, 0.0
    %v934 = vmul.f32 %v918, 0.0
    %v935 = vmul.f32 %v904, %v919
    %v936 = vmul.f32 %v906, %v920
    %v937 = vadd.f32 %v933, %v935
    %v938 = vadd.f32 %v934, %v936
    %v939 = vtanh.pop %v937
    %v940 = vtanh.pop %v938
    %v941 = vmul.f32 %v930, %v939
    %v942 = vmul.f32 %v932, %v940
    %v943 = vpack.c.bf16 %v942, %v941
    %944 = vmatprep.subr.bf16.mxu0 %v766
    %945 = vmatpush1.bf16.msra.mxu0 %v765
    %946 = vmatprep.subr.bf16.mxu0 %v762
    %947 = vmatpush1.bf16.msra.mxu0 %v761
    %948 = vmatprep.subr.bf16.mxu0 %v758
    %949 = vmatpush1.bf16.msra.mxu0 %v757
    %950 = vmatprep.subr.bf16.mxu0 %v754
    %951 = vmatpush1.bf16.msra.mxu0 %v753
    %952 = vmatprep.subr.bf16.mxu0 %v750
    %953 = vmatpush1.bf16.msra.mxu0 %v749
    %954 = vmatprep.subr.bf16.mxu0 %v746
    %955 = vmatpush1.bf16.msra.mxu0 %v745
    %956 = vmatprep.subr.bf16.mxu0 %v742
    %957 = vmatpush1.bf16.msra.mxu0 %v741
    %958 = vmatprep.subr.bf16.mxu0 %v738
    %959 = vmatpush1.bf16.msra.mxu0 %v737
    %960 = vmatprep.subr.bf16.mxu0 0
    %961 = vmatpush2.bf16.msra.mxu0 0
    %962 = vmatprep.subr.bf16.mxu0 0
    %963 = vmatpush2.bf16.msra.mxu0 0
    %964 = vmatprep.subr.bf16.mxu0 0
    %965 = vmatpush2.bf16.msra.mxu0 0
    %966 = vmatprep.subr.bf16.mxu0 0
    %967 = vmatpush2.bf16.msra.mxu0 0
    %968 = vmatprep.subr.bf16.mxu0 0
    %969 = vmatpush2.bf16.msra.mxu0 0
    %970 = vmatprep.subr.bf16.mxu0 0
    %971 = vmatpush2.bf16.msra.mxu0 0
    %972 = vmatprep.subr.bf16.mxu0 0
    %973 = vmatpush2.bf16.msra.mxu0 0
    %974 = vmatprep.subr.bf16.mxu0 0
    %975 = vmatpush2.bf16.msra.mxu0 0
    %976 = vmatprep.mubr.bf16.mxu0 0
    %977 = vmatmul.mubr.bf16.gmra.mxu0 %v943
    %v978 = vpop.f32.mrf.mxu0
    %v979 = vadd.f32 0.0, %v978
    %v980 = vpop.f32.mrf.mxu0
    %v981 = vadd.f32 0.0, %v980
    %v982 = vpop.f32.mrf.mxu0
    %v983 = vadd.f32 0.0, %v982
    %v984 = vpop.f32.mrf.mxu0
    %v985 = vadd.f32 0.0, %v984
    %986 = vdwg.mxu0
    %987 = vmatprep.subr.bf16.mxu0 %v768
    %988 = vmatpush1.bf16.msra.mxu0 %v767
    %989 = vmatprep.subr.bf16.mxu0 %v764
    %990 = vmatpush1.bf16.msra.mxu0 %v763
    %991 = vmatprep.subr.bf16.mxu0 %v760
    %992 = vmatpush1.bf16.msra.mxu0 %v759
    %993 = vmatprep.subr.bf16.mxu0 %v756
    %994 = vmatpush1.bf16.msra.mxu0 %v755
    %995 = vmatprep.subr.bf16.mxu0 %v752
    %996 = vmatpush1.bf16.msra.mxu0 %v751
    %997 = vmatprep.subr.bf16.mxu0 %v748
    %998 = vmatpush1.bf16.msra.mxu0 %v747
    %999 = vmatprep.subr.bf16.mxu0 %v744
    %1000 = vmatpush1.bf16.msra.mxu0 %v743
    %1001 = vmatprep.subr.bf16.mxu0 %v740
    %1002 = vmatpush1.bf16.msra.mxu0 %v739
    %1003 = vmatprep.subr.bf16.mxu0 0
    %1004 = vmatpush2.bf16.msra.mxu0 0
    %1005 = vmatprep.subr.bf16.mxu0 0
    %1006 = vmatpush2.bf16.msra.mxu0 0
    %1007 = vmatprep.subr.bf16.mxu0 0
    %1008 = vmatpush2.bf16.msra.mxu0 0
    %1009 = vmatprep.subr.bf16.mxu0 0
    %1010 = vmatpush2.bf16.msra.mxu0 0
    %1011 = vmatprep.subr.bf16.mxu0 0
    %1012 = vmatpush2.bf16.msra.mxu0 0
    %1013 = vmatprep.subr.bf16.mxu0 0
    %1014 = vmatpush2.bf16.msra.mxu0 0
    %1015 = vmatprep.subr.bf16.mxu0 0
    %1016 = vmatpush2.bf16.msra.mxu0 0
    %1017 = vmatprep.subr.bf16.mxu0 0
    %1018 = vmatpush2.bf16.msra.mxu0 0
    %1019 = vmatprep.mubr.bf16.mxu0 0
    %1020 = vmatmul.mubr.bf16.gmra.mxu0 %v943
    %v1021 = vpop.f32.mrf.mxu0
    %v1022 = vadd.f32 0.0, %v1021
    %v1023 = vpop.f32.mrf.mxu0
    %v1024 = vadd.f32 0.0, %v1023
    %v1025 = vpop.f32.mrf.mxu0
    %v1026 = vadd.f32 0.0, %v1025
    %v1027 = vpop.f32.mrf.mxu0
    %v1028 = vadd.f32 0.0, %v1027
    %1029 = vdwg.mxu0
    %v1030 = vadd.f32 %v468, %v979
    %v1031 = vadd.f32 %v470, %v981
    %v1032 = vadd.f32 %v561, %v1022
    %v1033 = vadd.f32 %v563, %v1024
    %v1034 = vadd.f32 %v472, %v983
    %v1035 = vadd.f32 %v474, %v985
    %v1036 = vadd.f32 %v565, %v1026
    %v1037 = vadd.f32 %v567, %v1028
    %v1038 = vxor.u32 %v1030, 2147483648
    %v1039 = vxor.u32 %v1034, 2147483648
    %v1040 = vmul.f32 %v1038, 1.442695
    %v1041 = vpow.pop %v1040
    %v1042 = vmul.f32 %v1039, 1.442695
    %v1043 = vpow.pop %v1042
    %v1044 = vadd.f32 %v1041, 1.0
    %v1045 = vadd.f32 %v1043, 1.0
    %v1046 = vrcp.pop %v1044
    %v1047 = vmul.f32 1.0, %v1046
    %v1048 = vrcp.pop %v1045
    %v1049 = vmul.f32 1.0, %v1048
    %v1050 = vxor.u32 %v1031, 2147483648
    %v1051 = vxor.u32 %v1035, 2147483648
    %v1052 = vmul.f32 %v1050, 1.442695
    %v1053 = vpow.pop %v1052
    %v1054 = vmul.f32 %v1051, 1.442695
    %v1055 = vpow.pop %v1054
    %v1056 = vadd.f32 %v1053, 1.0
    %v1057 = vadd.f32 %v1055, 1.0
    %v1058 = vrcp.pop %v1056
    %v1059 = vmul.f32 1.0, %v1058
    %v1060 = vrcp.pop %v1057
    %v1061 = vmul.f32 1.0, %v1060
    %v1062 = vtanh.pop %v1032
    %v1063 = vtanh.pop %v1036
    %v1064 = vxor.u32 %v1033, 2147483648
    %v1065 = vxor.u32 %v1037, 2147483648
    %v1066 = vmul.f32 %v1064, 1.442695
    %v1067 = vpow.pop %v1066
    %v1068 = vmul.f32 %v1065, 1.442695
    %v1069 = vpow.pop %v1068
    %v1070 = vadd.f32 %v1067, 1.0
    %v1071 = vadd.f32 %v1069, 1.0
    %v1072 = vrcp.pop %v1070
    %v1073 = vmul.f32 1.0, %v1072
    %v1074 = vrcp.pop %v1071
    %v1075 = vmul.f32 1.0, %v1074
    %v1076 = vmul.f32 %v1059, %v937
    %v1077 = vmul.f32 %v1061, %v938
    %v1078 = vmul.f32 %v1047, %v1062
    %v1079 = vmul.f32 %v1049, %v1063
    %v1080 = vadd.f32 %v1076, %v1078
    %v1081 = vadd.f32 %v1077, %v1079
    %v1082 = vtanh.pop %v1080
    %v1083 = vtanh.pop %v1081
    %v1084 = vmul.f32 %v1073, %v1082
    %v1085 = vmul.f32 %v1075, %v1083
    %v1086 = vpack.c.bf16 %v1085, %v1084
    %1087 = vmatprep.subr.bf16.mxu0 %v766
    %1088 = vmatpush1.bf16.msra.mxu0 %v765
    %1089 = vmatprep.subr.bf16.mxu0 %v762
    %1090 = vmatpush1.bf16.msra.mxu0 %v761
    %1091 = vmatprep.subr.bf16.mxu0 %v758
    %1092 = vmatpush1.bf16.msra.mxu0 %v757
    %1093 = vmatprep.subr.bf16.mxu0 %v754
    %1094 = vmatpush1.bf16.msra.mxu0 %v753
    %1095 = vmatprep.subr.bf16.mxu0 %v750
    %1096 = vmatpush1.bf16.msra.mxu0 %v749
    %1097 = vmatprep.subr.bf16.mxu0 %v746
    %1098 = vmatpush1.bf16.msra.mxu0 %v745
    %1099 = vmatprep.subr.bf16.mxu0 %v742
    %1100 = vmatpush1.bf16.msra.mxu0 %v741
    %1101 = vmatprep.subr.bf16.mxu0 %v738
    %1102 = vmatpush1.bf16.msra.mxu0 %v737
    %1103 = vmatprep.subr.bf16.mxu0 0
    %1104 = vmatpush2.bf16.msra.mxu0 0
    %1105 = vmatprep.subr.bf16.mxu0 0
    %1106 = vmatpush2.bf16.msra.mxu0 0
    %1107 = vmatprep.subr.bf16.mxu0 0
    %1108 = vmatpush2.bf16.msra.mxu0 0
    %1109 = vmatprep.subr.bf16.mxu0 0
    %1110 = vmatpush2.bf16.msra.mxu0 0
    %1111 = vmatprep.subr.bf16.mxu0 0
    %1112 = vmatpush2.bf16.msra.mxu0 0
    %1113 = vmatprep.subr.bf16.mxu0 0
    %1114 = vmatpush2.bf16.msra.mxu0 0
    %1115 = vmatprep.subr.bf16.mxu0 0
    %1116 = vmatpush2.bf16.msra.mxu0 0
    %1117 = vmatprep.subr.bf16.mxu0 0
    %1118 = vmatpush2.bf16.msra.mxu0 0
    %1119 = vmatprep.mubr.bf16.mxu0 0
    %1120 = vmatmul.mubr.bf16.gmra.mxu0 %v1086
    %v1121 = vpop.f32.mrf.mxu0
    %v1122 = vadd.f32 0.0, %v1121
    %v1123 = vpop.f32.mrf.mxu0
    %v1124 = vadd.f32 0.0, %v1123
    %v1125 = vpop.f32.mrf.mxu0
    %v1126 = vadd.f32 0.0, %v1125
    %v1127 = vpop.f32.mrf.mxu0
    %v1128 = vadd.f32 0.0, %v1127
    %1129 = vdwg.mxu0
    %1130 = vmatprep.subr.bf16.mxu0 %v768
    %1131 = vmatpush1.bf16.msra.mxu0 %v767
    %1132 = vmatprep.subr.bf16.mxu0 %v764
    %1133 = vmatpush1.bf16.msra.mxu0 %v763
    %1134 = vmatprep.subr.bf16.mxu0 %v760
    %1135 = vmatpush1.bf16.msra.mxu0 %v759
    %1136 = vmatprep.subr.bf16.mxu0 %v756
    %1137 = vmatpush1.bf16.msra.mxu0 %v755
    %1138 = vmatprep.subr.bf16.mxu0 %v752
    %1139 = vmatpush1.bf16.msra.mxu0 %v751
    %1140 = vmatprep.subr.bf16.mxu0 %v748
    %1141 = vmatpush1.bf16.msra.mxu0 %v747
    %1142 = vmatprep.subr.bf16.mxu0 %v744
    %1143 = vmatpush1.bf16.msra.mxu0 %v743
    %1144 = vmatprep.subr.bf16.mxu0 %v740
    %1145 = vmatpush1.bf16.msra.mxu0 %v739
    %1146 = vmatprep.subr.bf16.mxu0 0
    %1147 = vmatpush2.bf16.msra.mxu0 0
    %1148 = vmatprep.subr.bf16.mxu0 0
    %1149 = vmatpush2.bf16.msra.mxu0 0
    %1150 = vmatprep.subr.bf16.mxu0 0
    %1151 = vmatpush2.bf16.msra.mxu0 0
    %1152 = vmatprep.subr.bf16.mxu0 0
    %1153 = vmatpush2.bf16.msra.mxu0 0
    %1154 = vmatprep.subr.bf16.mxu0 0
    %1155 = vmatpush2.bf16.msra.mxu0 0
    %1156 = vmatprep.subr.bf16.mxu0 0
    %1157 = vmatpush2.bf16.msra.mxu0 0
    %1158 = vmatprep.subr.bf16.mxu0 0
    %1159 = vmatpush2.bf16.msra.mxu0 0
    %1160 = vmatprep.subr.bf16.mxu0 0
    %1161 = vmatpush2.bf16.msra.mxu0 0
    %1162 = vmatprep.mubr.bf16.mxu0 0
    %1163 = vmatmul.mubr.bf16.gmra.mxu0 %v1086
    %v1164 = vpop.f32.mrf.mxu0
    %v1165 = vadd.f32 0.0, %v1164
    %v1166 = vpop.f32.mrf.mxu0
    %v1167 = vadd.f32 0.0, %v1166
    %v1168 = vpop.f32.mrf.mxu0
    %v1169 = vadd.f32 0.0, %v1168
    %v1170 = vpop.f32.mrf.mxu0
    %v1171 = vadd.f32 0.0, %v1170
    %1172 = vdwg.mxu0
    %v1173 = vadd.f32 %v478, %v1122
    %v1174 = vadd.f32 %v480, %v1124
    %v1175 = vadd.f32 %v571, %v1165
    %v1176 = vadd.f32 %v573, %v1167
    %v1177 = vadd.f32 %v482, %v1126
    %v1178 = vadd.f32 %v484, %v1128
    %v1179 = vadd.f32 %v575, %v1169
    %v1180 = vadd.f32 %v577, %v1171
    %v1181 = vxor.u32 %v1173, 2147483648
    %v1182 = vxor.u32 %v1177, 2147483648
    %v1183 = vmul.f32 %v1181, 1.442695
    %v1184 = vpow.pop %v1183
    %v1185 = vmul.f32 %v1182, 1.442695
    %v1186 = vpow.pop %v1185
    %v1187 = vadd.f32 %v1184, 1.0
    %v1188 = vadd.f32 %v1186, 1.0
    %v1189 = vrcp.pop %v1187
    %v1190 = vmul.f32 1.0, %v1189
    %v1191 = vrcp.pop %v1188
    %v1192 = vmul.f32 1.0, %v1191
    %v1193 = vxor.u32 %v1174, 2147483648
    %v1194 = vxor.u32 %v1178, 2147483648
    %v1195 = vmul.f32 %v1193, 1.442695
    %v1196 = vpow.pop %v1195
    %v1197 = vmul.f32 %v1194, 1.442695
    %v1198 = vpow.pop %v1197
    %v1199 = vadd.f32 %v1196, 1.0
    %v1200 = vadd.f32 %v1198, 1.0
    %v1201 = vrcp.pop %v1199
    %v1202 = vmul.f32 1.0, %v1201
    %v1203 = vrcp.pop %v1200
    %v1204 = vmul.f32 1.0, %v1203
    %v1205 = vtanh.pop %v1175
    %v1206 = vtanh.pop %v1179
    %v1207 = vxor.u32 %v1176, 2147483648
    %v1208 = vxor.u32 %v1180, 2147483648
    %v1209 = vmul.f32 %v1207, 1.442695
    %v1210 = vpow.pop %v1209
    %v1211 = vmul.f32 %v1208, 1.442695
    %v1212 = vpow.pop %v1211
    %v1213 = vadd.f32 %v1210, 1.0
    %v1214 = vadd.f32 %v1212, 1.0
    %v1215 = vrcp.pop %v1213
    %v1216 = vmul.f32 1.0, %v1215
    %v1217 = vrcp.pop %v1214
    %v1218 = vmul.f32 1.0, %v1217
    %v1219 = vmul.f32 %v1202, %v1080
    %v1220 = vmul.f32 %v1204, %v1081
    %v1221 = vmul.f32 %v1190, %v1205
    %v1222 = vmul.f32 %v1192, %v1206
    %v1223 = vadd.f32 %v1219, %v1221
    %v1224 = vadd.f32 %v1220, %v1222
    %v1225 = vtanh.pop %v1223
    %v1226 = vtanh.pop %v1224
    %v1227 = vmul.f32 %v1216, %v1225
    %v1228 = vmul.f32 %v1218, %v1226
    %v1229 = vpack.c.bf16 %v1228, %v1227
    %1230 = vmatprep.subr.bf16.mxu0 %v766
    %1231 = vmatpush1.bf16.msra.mxu0 %v765
    %1232 = vmatprep.subr.bf16.mxu0 %v762
    %1233 = vmatpush1.bf16.msra.mxu0 %v761
    %1234 = vmatprep.subr.bf16.mxu0 %v758
    %1235 = vmatpush1.bf16.msra.mxu0 %v757
    %1236 = vmatprep.subr.bf16.mxu0 %v754
    %1237 = vmatpush1.bf16.msra.mxu0 %v753
    %1238 = vmatprep.subr.bf16.mxu0 %v750
    %1239 = vmatpush1.bf16.msra.mxu0 %v749
    %1240 = vmatprep.subr.bf16.mxu0 %v746
    %1241 = vmatpush1.bf16.msra.mxu0 %v745
    %1242 = vmatprep.subr.bf16.mxu0 %v742
    %1243 = vmatpush1.bf16.msra.mxu0 %v741
    %1244 = vmatprep.subr.bf16.mxu0 %v738
    %1245 = vmatpush1.bf16.msra.mxu0 %v737
    %1246 = vmatprep.subr.bf16.mxu0 0
    %1247 = vmatpush2.bf16.msra.mxu0 0
    %1248 = vmatprep.subr.bf16.mxu0 0
    %1249 = vmatpush2.bf16.msra.mxu0 0
    %1250 = vmatprep.subr.bf16.mxu0 0
    %1251 = vmatpush2.bf16.msra.mxu0 0
    %1252 = vmatprep.subr.bf16.mxu0 0
    %1253 = vmatpush2.bf16.msra.mxu0 0
    %1254 = vmatprep.subr.bf16.mxu0 0
    %1255 = vmatpush2.bf16.msra.mxu0 0
    %1256 = vmatprep.subr.bf16.mxu0 0
    %1257 = vmatpush2.bf16.msra.mxu0 0
    %1258 = vmatprep.subr.bf16.mxu0 0
    %1259 = vmatpush2.bf16.msra.mxu0 0
    %1260 = vmatprep.subr.bf16.mxu0 0
    %1261 = vmatpush2.bf16.msra.mxu0 0
    %1262 = vmatprep.mubr.bf16.mxu0 0
    %1263 = vmatmul.mubr.bf16.gmra.mxu0 %v1229
    %v1264 = vpop.f32.mrf.mxu0
    %v1265 = vadd.f32 0.0, %v1264
    %v1266 = vpop.f32.mrf.mxu0
    %v1267 = vadd.f32 0.0, %v1266
    %v1268 = vpop.f32.mrf.mxu0
    %v1269 = vadd.f32 0.0, %v1268
    %v1270 = vpop.f32.mrf.mxu0
    %v1271 = vadd.f32 0.0, %v1270
    %1272 = vdwg.mxu0
    %1273 = vmatprep.subr.bf16.mxu0 %v768
    %1274 = vmatpush1.bf16.msra.mxu0 %v767
    %1275 = vmatprep.subr.bf16.mxu0 %v764
    %1276 = vmatpush1.bf16.msra.mxu0 %v763
    %1277 = vmatprep.subr.bf16.mxu0 %v760
    %1278 = vmatpush1.bf16.msra.mxu0 %v759
    %1279 = vmatprep.subr.bf16.mxu0 %v756
    %1280 = vmatpush1.bf16.msra.mxu0 %v755
    %1281 = vmatprep.subr.bf16.mxu0 %v752
    %1282 = vmatpush1.bf16.msra.mxu0 %v751
    %1283 = vmatprep.subr.bf16.mxu0 %v748
    %1284 = vmatpush1.bf16.msra.mxu0 %v747
    %1285 = vmatprep.subr.bf16.mxu0 %v744
    %1286 = vmatpush1.bf16.msra.mxu0 %v743
    %1287 = vmatprep.subr.bf16.mxu0 %v740
    %1288 = vmatpush1.bf16.msra.mxu0 %v739
    %1289 = vmatprep.subr.bf16.mxu0 0
    %1290 = vmatpush2.bf16.msra.mxu0 0
    %1291 = vmatprep.subr.bf16.mxu0 0
    %1292 = vmatpush2.bf16.msra.mxu0 0
    %1293 = vmatprep.subr.bf16.mxu0 0
    %1294 = vmatpush2.bf16.msra.mxu0 0
    %1295 = vmatprep.subr.bf16.mxu0 0
    %1296 = vmatpush2.bf16.msra.mxu0 0
    %1297 = vmatprep.subr.bf16.mxu0 0
    %1298 = vmatpush2.bf16.msra.mxu0 0
    %1299 = vmatprep.subr.bf16.mxu0 0
    %1300 = vmatpush2.bf16.msra.mxu0 0
    %1301 = vmatprep.subr.bf16.mxu0 0
    %1302 = vmatpush2.bf16.msra.mxu0 0
    %1303 = vmatprep.subr.bf16.mxu0 0
    %1304 = vmatpush2.bf16.msra.mxu0 0
    %1305 = vmatprep.mubr.bf16.mxu0 0
    %1306 = vmatmul.mubr.bf16.gmra.mxu0 %v1229
    %v1307 = vpop.f32.mrf.mxu0
    %v1308 = vadd.f32 0.0, %v1307
    %v1309 = vpop.f32.mrf.mxu0
    %v1310 = vadd.f32 0.0, %v1309
    %v1311 = vpop.f32.mrf.mxu0
    %v1312 = vadd.f32 0.0, %v1311
    %v1313 = vpop.f32.mrf.mxu0
    %v1314 = vadd.f32 0.0, %v1313
    %1315 = vdwg.mxu0
    %v1316 = vadd.f32 %v488, %v1265
    %v1317 = vadd.f32 %v490, %v1267
    %v1318 = vadd.f32 %v581, %v1308
    %v1319 = vadd.f32 %v583, %v1310
    %v1320 = vadd.f32 %v492, %v1269
    %v1321 = vadd.f32 %v494, %v1271
    %v1322 = vadd.f32 %v585, %v1312
    %v1323 = vadd.f32 %v587, %v1314
    %v1324 = vxor.u32 %v1316, 2147483648
    %v1325 = vxor.u32 %v1320, 2147483648
    %v1326 = vmul.f32 %v1324, 1.442695
    %v1327 = vpow.pop %v1326
    %v1328 = vmul.f32 %v1325, 1.442695
    %v1329 = vpow.pop %v1328
    %v1330 = vadd.f32 %v1327, 1.0
    %v1331 = vadd.f32 %v1329, 1.0
    %v1332 = vrcp.pop %v1330
    %v1333 = vmul.f32 1.0, %v1332
    %v1334 = vrcp.pop %v1331
    %v1335 = vmul.f32 1.0, %v1334
    %v1336 = vxor.u32 %v1317, 2147483648
    %v1337 = vxor.u32 %v1321, 2147483648
    %v1338 = vmul.f32 %v1336, 1.442695
    %v1339 = vpow.pop %v1338
    %v1340 = vmul.f32 %v1337, 1.442695
    %v1341 = vpow.pop %v1340
    %v1342 = vadd.f32 %v1339, 1.0
    %v1343 = vadd.f32 %v1341, 1.0
    %v1344 = vrcp.pop %v1342
    %v1345 = vmul.f32 1.0, %v1344
    %v1346 = vrcp.pop %v1343
    %v1347 = vmul.f32 1.0, %v1346
    %v1348 = vtanh.pop %v1318
    %v1349 = vtanh.pop %v1322
    %v1350 = vxor.u32 %v1319, 2147483648
    %v1351 = vxor.u32 %v1323, 2147483648
    %v1352 = vmul.f32 %v1350, 1.442695
    %v1353 = vpow.pop %v1352
    %v1354 = vmul.f32 %v1351, 1.442695
    %v1355 = vpow.pop %v1354
    %v1356 = vadd.f32 %v1353, 1.0
    %v1357 = vadd.f32 %v1355, 1.0
    %v1358 = vrcp.pop %v1356
    %v1359 = vmul.f32 1.0, %v1358
    %v1360 = vrcp.pop %v1357
    %v1361 = vmul.f32 1.0, %v1360
    %v1362 = vmul.f32 %v1345, %v1223
    %v1363 = vmul.f32 %v1347, %v1224
    %v1364 = vmul.f32 %v1333, %v1348
    %v1365 = vmul.f32 %v1335, %v1349
    %v1366 = vadd.f32 %v1362, %v1364
    %v1367 = vadd.f32 %v1363, %v1365
    %v1368 = vtanh.pop %v1366
    %v1369 = vtanh.pop %v1367
    %v1370 = vmul.f32 %v1359, %v1368
    %v1371 = vmul.f32 %v1361, %v1369
    %v1372 = vpack.c.bf16 %v1371, %v1370
    %1373 = vmatprep.subr.bf16.mxu0 %v766
    %1374 = vmatpush1.bf16.msra.mxu0 %v765
    %1375 = vmatprep.subr.bf16.mxu0 %v762
    %1376 = vmatpush1.bf16.msra.mxu0 %v761
    %1377 = vmatprep.subr.bf16.mxu0 %v758
    %1378 = vmatpush1.bf16.msra.mxu0 %v757
    %1379 = vmatprep.subr.bf16.mxu0 %v754
    %1380 = vmatpush1.bf16.msra.mxu0 %v753
    %1381 = vmatprep.subr.bf16.mxu0 %v750
    %1382 = vmatpush1.bf16.msra.mxu0 %v749
    %1383 = vmatprep.subr.bf16.mxu0 %v746
    %1384 = vmatpush1.bf16.msra.mxu0 %v745
    %1385 = vmatprep.subr.bf16.mxu0 %v742
    %1386 = vmatpush1.bf16.msra.mxu0 %v741
    %1387 = vmatprep.subr.bf16.mxu0 %v738
    %1388 = vmatpush1.bf16.msra.mxu0 %v737
    %1389 = vmatprep.subr.bf16.mxu0 0
    %1390 = vmatpush2.bf16.msra.mxu0 0
    %1391 = vmatprep.subr.bf16.mxu0 0
    %1392 = vmatpush2.bf16.msra.mxu0 0
    %1393 = vmatprep.subr.bf16.mxu0 0
    %1394 = vmatpush2.bf16.msra.mxu0 0
    %1395 = vmatprep.subr.bf16.mxu0 0
    %1396 = vmatpush2.bf16.msra.mxu0 0
    %1397 = vmatprep.subr.bf16.mxu0 0
    %1398 = vmatpush2.bf16.msra.mxu0 0
    %1399 = vmatprep.subr.bf16.mxu0 0
    %1400 = vmatpush2.bf16.msra.mxu0 0
    %1401 = vmatprep.subr.bf16.mxu0 0
    %1402 = vmatpush2.bf16.msra.mxu0 0
    %1403 = vmatprep.subr.bf16.mxu0 0
    %1404 = vmatpush2.bf16.msra.mxu0 0
    %1405 = vmatprep.mubr.bf16.mxu0 0
    %1406 = vmatmul.mubr.bf16.gmra.mxu0 %v1372
    %v1407 = vpop.f32.mrf.mxu0
    %v1408 = vadd.f32 0.0, %v1407
    %v1409 = vpop.f32.mrf.mxu0
    %v1410 = vadd.f32 0.0, %v1409
    %v1411 = vpop.f32.mrf.mxu0
    %v1412 = vadd.f32 0.0, %v1411
    %v1413 = vpop.f32.mrf.mxu0
    %v1414 = vadd.f32 0.0, %v1413
    %1415 = vdwg.mxu0
    %1416 = vmatprep.subr.bf16.mxu0 %v768
    %1417 = vmatpush1.bf16.msra.mxu0 %v767
    %1418 = vmatprep.subr.bf16.mxu0 %v764
    %1419 = vmatpush1.bf16.msra.mxu0 %v763
    %1420 = vmatprep.subr.bf16.mxu0 %v760
    %1421 = vmatpush1.bf16.msra.mxu0 %v759
    %1422 = vmatprep.subr.bf16.mxu0 %v756
    %1423 = vmatpush1.bf16.msra.mxu0 %v755
    %1424 = vmatprep.subr.bf16.mxu0 %v752
    %1425 = vmatpush1.bf16.msra.mxu0 %v751
    %1426 = vmatprep.subr.bf16.mxu0 %v748
    %1427 = vmatpush1.bf16.msra.mxu0 %v747
    %1428 = vmatprep.subr.bf16.mxu0 %v744
    %1429 = vmatpush1.bf16.msra.mxu0 %v743
    %1430 = vmatprep.subr.bf16.mxu0 %v740
    %1431 = vmatpush1.bf16.msra.mxu0 %v739
    %1432 = vmatprep.subr.bf16.mxu0 0
    %1433 = vmatpush2.bf16.msra.mxu0 0
    %1434 = vmatprep.subr.bf16.mxu0 0
    %1435 = vmatpush2.bf16.msra.mxu0 0
    %1436 = vmatprep.subr.bf16.mxu0 0
    %1437 = vmatpush2.bf16.msra.mxu0 0
    %1438 = vmatprep.subr.bf16.mxu0 0
    %1439 = vmatpush2.bf16.msra.mxu0 0
    %1440 = vmatprep.subr.bf16.mxu0 0
    %1441 = vmatpush2.bf16.msra.mxu0 0
    %1442 = vmatprep.subr.bf16.mxu0 0
    %1443 = vmatpush2.bf16.msra.mxu0 0
    %1444 = vmatprep.subr.bf16.mxu0 0
    %1445 = vmatpush2.bf16.msra.mxu0 0
    %1446 = vmatprep.subr.bf16.mxu0 0
    %1447 = vmatpush2.bf16.msra.mxu0 0
    %1448 = vmatprep.mubr.bf16.mxu0 0
    %1449 = vmatmul.mubr.bf16.gmra.mxu0 %v1372
    %v1450 = vpop.f32.mrf.mxu0
    %v1451 = vadd.f32 0.0, %v1450
    %v1452 = vpop.f32.mrf.mxu0
    %v1453 = vadd.f32 0.0, %v1452
    %v1454 = vpop.f32.mrf.mxu0
    %v1455 = vadd.f32 0.0, %v1454
    %v1456 = vpop.f32.mrf.mxu0
    %v1457 = vadd.f32 0.0, %v1456
    %1458 = vdwg.mxu0
    %v1459 = vadd.f32 %v498, %v1408
    %v1460 = vadd.f32 %v500, %v1410
    %v1461 = vadd.f32 %v591, %v1451
    %v1462 = vadd.f32 %v593, %v1453
    %v1463 = vadd.f32 %v502, %v1412
    %v1464 = vadd.f32 %v504, %v1414
    %v1465 = vadd.f32 %v595, %v1455
    %v1466 = vadd.f32 %v597, %v1457
    %v1467 = vxor.u32 %v1459, 2147483648
    %v1468 = vxor.u32 %v1463, 2147483648
    %v1469 = vmul.f32 %v1467, 1.442695
    %v1470 = vpow.pop %v1469
    %v1471 = vmul.f32 %v1468, 1.442695
    %v1472 = vpow.pop %v1471
    %v1473 = vadd.f32 %v1470, 1.0
    %v1474 = vadd.f32 %v1472, 1.0
    %v1475 = vrcp.pop %v1473
    %v1476 = vmul.f32 1.0, %v1475
    %v1477 = vrcp.pop %v1474
    %v1478 = vmul.f32 1.0, %v1477
    %v1479 = vxor.u32 %v1460, 2147483648
    %v1480 = vxor.u32 %v1464, 2147483648
    %v1481 = vmul.f32 %v1479, 1.442695
    %v1482 = vpow.pop %v1481
    %v1483 = vmul.f32 %v1480, 1.442695
    %v1484 = vpow.pop %v1483
    %v1485 = vadd.f32 %v1482, 1.0
    %v1486 = vadd.f32 %v1484, 1.0
    %v1487 = vrcp.pop %v1485
    %v1488 = vmul.f32 1.0, %v1487
    %v1489 = vrcp.pop %v1486
    %v1490 = vmul.f32 1.0, %v1489
    %v1491 = vtanh.pop %v1461
    %v1492 = vtanh.pop %v1465
    %v1493 = vxor.u32 %v1462, 2147483648
    %v1494 = vxor.u32 %v1466, 2147483648
    %v1495 = vmul.f32 %v1493, 1.442695
    %v1496 = vpow.pop %v1495
    %v1497 = vmul.f32 %v1494, 1.442695
    %v1498 = vpow.pop %v1497
    %v1499 = vadd.f32 %v1496, 1.0
    %v1500 = vadd.f32 %v1498, 1.0
    %v1501 = vrcp.pop %v1499
    %v1502 = vmul.f32 1.0, %v1501
    %v1503 = vrcp.pop %v1500
    %v1504 = vmul.f32 1.0, %v1503
    %v1505 = vmul.f32 %v1488, %v1366
    %v1506 = vmul.f32 %v1490, %v1367
    %v1507 = vmul.f32 %v1476, %v1491
    %v1508 = vmul.f32 %v1478, %v1492
    %v1509 = vadd.f32 %v1505, %v1507
    %v1510 = vadd.f32 %v1506, %v1508
    %v1511 = vtanh.pop %v1509
    %v1512 = vtanh.pop %v1510
    %v1513 = vmul.f32 %v1502, %v1511
    %v1514 = vmul.f32 %v1504, %v1512
    %v1515 = vpack.c.bf16 %v1514, %v1513
    %1516 = vmatprep.subr.bf16.mxu0 %v766
    %1517 = vmatpush1.bf16.msra.mxu0 %v765
    %1518 = vmatprep.subr.bf16.mxu0 %v762
    %1519 = vmatpush1.bf16.msra.mxu0 %v761
    %1520 = vmatprep.subr.bf16.mxu0 %v758
    %1521 = vmatpush1.bf16.msra.mxu0 %v757
    %1522 = vmatprep.subr.bf16.mxu0 %v754
    %1523 = vmatpush1.bf16.msra.mxu0 %v753
    %1524 = vmatprep.subr.bf16.mxu0 %v750
    %1525 = vmatpush1.bf16.msra.mxu0 %v749
    %1526 = vmatprep.subr.bf16.mxu0 %v746
    %1527 = vmatpush1.bf16.msra.mxu0 %v745
    %1528 = vmatprep.subr.bf16.mxu0 %v742
    %1529 = vmatpush1.bf16.msra.mxu0 %v741
    %1530 = vmatprep.subr.bf16.mxu0 %v738
    %1531 = vmatpush1.bf16.msra.mxu0 %v737
    %1532 = vmatprep.subr.bf16.mxu0 0
    %1533 = vmatpush2.bf16.msra.mxu0 0
    %1534 = vmatprep.subr.bf16.mxu0 0
    %1535 = vmatpush2.bf16.msra.mxu0 0
    %1536 = vmatprep.subr.bf16.mxu0 0
    %1537 = vmatpush2.bf16.msra.mxu0 0
    %1538 = vmatprep.subr.bf16.mxu0 0
    %1539 = vmatpush2.bf16.msra.mxu0 0
    %1540 = vmatprep.subr.bf16.mxu0 0
    %1541 = vmatpush2.bf16.msra.mxu0 0
    %1542 = vmatprep.subr.bf16.mxu0 0
    %1543 = vmatpush2.bf16.msra.mxu0 0
    %1544 = vmatprep.subr.bf16.mxu0 0
    %1545 = vmatpush2.bf16.msra.mxu0 0
    %1546 = vmatprep.subr.bf16.mxu0 0
    %1547 = vmatpush2.bf16.msra.mxu0 0
    %1548 = vmatprep.mubr.bf16.mxu0 0
    %1549 = vmatmul.mubr.bf16.gmra.mxu0 %v1515
    %v1550 = vpop.f32.mrf.mxu0
    %v1551 = vadd.f32 0.0, %v1550
    %v1552 = vpop.f32.mrf.mxu0
    %v1553 = vadd.f32 0.0, %v1552
    %v1554 = vpop.f32.mrf.mxu0
    %v1555 = vadd.f32 0.0, %v1554
    %v1556 = vpop.f32.mrf.mxu0
    %v1557 = vadd.f32 0.0, %v1556
    %1558 = vdwg.mxu0
    %1559 = vmatprep.subr.bf16.mxu0 %v768
    %1560 = vmatpush1.bf16.msra.mxu0 %v767
    %1561 = vmatprep.subr.bf16.mxu0 %v764
    %1562 = vmatpush1.bf16.msra.mxu0 %v763
    %1563 = vmatprep.subr.bf16.mxu0 %v760
    %1564 = vmatpush1.bf16.msra.mxu0 %v759
    %1565 = vmatprep.subr.bf16.mxu0 %v756
    %1566 = vmatpush1.bf16.msra.mxu0 %v755
    %1567 = vmatprep.subr.bf16.mxu0 %v752
    %1568 = vmatpush1.bf16.msra.mxu0 %v751
    %1569 = vmatprep.subr.bf16.mxu0 %v748
    %1570 = vmatpush1.bf16.msra.mxu0 %v747
    %1571 = vmatprep.subr.bf16.mxu0 %v744
    %1572 = vmatpush1.bf16.msra.mxu0 %v743
    %1573 = vmatprep.subr.bf16.mxu0 %v740
    %1574 = vmatpush1.bf16.msra.mxu0 %v739
    %1575 = vmatprep.subr.bf16.mxu0 0
    %1576 = vmatpush2.bf16.msra.mxu0 0
    %1577 = vmatprep.subr.bf16.mxu0 0
    %1578 = vmatpush2.bf16.msra.mxu0 0
    %1579 = vmatprep.subr.bf16.mxu0 0
    %1580 = vmatpush2.bf16.msra.mxu0 0
    %1581 = vmatprep.subr.bf16.mxu0 0
    %1582 = vmatpush2.bf16.msra.mxu0 0
    %1583 = vmatprep.subr.bf16.mxu0 0
    %1584 = vmatpush2.bf16.msra.mxu0 0
    %1585 = vmatprep.subr.bf16.mxu0 0
    %1586 = vmatpush2.bf16.msra.mxu0 0
    %1587 = vmatprep.subr.bf16.mxu0 0
    %1588 = vmatpush2.bf16.msra.mxu0 0
    %1589 = vmatprep.subr.bf16.mxu0 0
    %1590 = vmatpush2.bf16.msra.mxu0 0
    %1591 = vmatprep.mubr.bf16.mxu0 0
    %1592 = vmatmul.mubr.bf16.gmra.mxu0 %v1515
    %v1593 = vpop.f32.mrf.mxu0
    %v1594 = vadd.f32 0.0, %v1593
    %v1595 = vpop.f32.mrf.mxu0
    %v1596 = vadd.f32 0.0, %v1595
    %v1597 = vpop.f32.mrf.mxu0
    %v1598 = vadd.f32 0.0, %v1597
    %v1599 = vpop.f32.mrf.mxu0
    %v1600 = vadd.f32 0.0, %v1599
    %1601 = vdwg.mxu0
    %v1602 = vadd.f32 %v508, %v1551
    %v1603 = vadd.f32 %v510, %v1553
    %v1604 = vadd.f32 %v601, %v1594
    %v1605 = vadd.f32 %v603, %v1596
    %v1606 = vadd.f32 %v512, %v1555
    %v1607 = vadd.f32 %v514, %v1557
    %v1608 = vadd.f32 %v605, %v1598
    %v1609 = vadd.f32 %v607, %v1600
    %v1610 = vxor.u32 %v1602, 2147483648
    %v1611 = vxor.u32 %v1606, 2147483648
    %v1612 = vmul.f32 %v1610, 1.442695
    %v1613 = vpow.pop %v1612
    %v1614 = vmul.f32 %v1611, 1.442695
    %v1615 = vpow.pop %v1614
    %v1616 = vadd.f32 %v1613, 1.0
    %v1617 = vadd.f32 %v1615, 1.0
    %v1618 = vrcp.pop %v1616
    %v1619 = vmul.f32 1.0, %v1618
    %v1620 = vrcp.pop %v1617
    %v1621 = vmul.f32 1.0, %v1620
    %v1622 = vxor.u32 %v1603, 2147483648
    %v1623 = vxor.u32 %v1607, 2147483648
    %v1624 = vmul.f32 %v1622, 1.442695
    %v1625 = vpow.pop %v1624
    %v1626 = vmul.f32 %v1623, 1.442695
    %v1627 = vpow.pop %v1626
    %v1628 = vadd.f32 %v1625, 1.0
    %v1629 = vadd.f32 %v1627, 1.0
    %v1630 = vrcp.pop %v1628
    %v1631 = vmul.f32 1.0, %v1630
    %v1632 = vrcp.pop %v1629
    %v1633 = vmul.f32 1.0, %v1632
    %v1634 = vtanh.pop %v1604
    %v1635 = vtanh.pop %v1608
    %v1636 = vxor.u32 %v1605, 2147483648
    %v1637 = vxor.u32 %v1609, 2147483648
    %v1638 = vmul.f32 %v1636, 1.442695
    %v1639 = vpow.pop %v1638
    %v1640 = vmul.f32 %v1637, 1.442695
    %v1641 = vpow.pop %v1640
    %v1642 = vadd.f32 %v1639, 1.0
    %v1643 = vadd.f32 %v1641, 1.0
    %v1644 = vrcp.pop %v1642
    %v1645 = vmul.f32 1.0, %v1644
    %v1646 = vrcp.pop %v1643
    %v1647 = vmul.f32 1.0, %v1646
    %v1648 = vmul.f32 %v1631, %v1509
    %v1649 = vmul.f32 %v1633, %v1510
    %v1650 = vmul.f32 %v1619, %v1634
    %v1651 = vmul.f32 %v1621, %v1635
    %v1652 = vadd.f32 %v1648, %v1650
    %v1653 = vadd.f32 %v1649, %v1651
    %v1654 = vtanh.pop %v1652
    %v1655 = vtanh.pop %v1653
    %v1656 = vmul.f32 %v1645, %v1654
    %v1657 = vmul.f32 %v1647, %v1655
    %v1658 = vld [vmem:[%s1] sm:$0xff]
    %v1659 = vld [vmem:[%s1 + $0x8] sm:$0xff]
    %v1660 = vpack.c.bf16 %v1657, %v1656
    %v1661 = vpack.c.bf16 %v1659, %v1658
    %v1662 = vld [vmem:[#allocation10] sm:$0xff]
    %v1663 = vld [vmem:[#allocation10 + $0x8] sm:$0xff]
    %v1664 = vld [vmem:[#allocation10 + $0x10] sm:$0xff]
    %v1665 = vld [vmem:[#allocation10 + $0x18] sm:$0xff]
    %v1666 = vld [vmem:[#allocation10 + $0x20] sm:$0xff]
    %v1667 = vld [vmem:[#allocation10 + $0x28] sm:$0xff]
    %v1668 = vld [vmem:[#allocation10 + $0x30] sm:$0xff]
    %v1669 = vld [vmem:[#allocation10 + $0x38] sm:$0xff]
    %v1670 = vld [vmem:[#allocation10 + $0x40] sm:$0xff]
    %v1671 = vld [vmem:[#allocation10 + $0x48] sm:$0xff]
    %v1672 = vld [vmem:[#allocation10 + $0x50] sm:$0xff]
    %v1673 = vld [vmem:[#allocation10 + $0x58] sm:$0xff]
    %v1674 = vld [vmem:[#allocation10 + $0x60] sm:$0xff]
    %v1675 = vld [vmem:[#allocation10 + $0x68] sm:$0xff]
    %v1676 = vld [vmem:[#allocation10 + $0x70] sm:$0xff]
    %v1677 = vld [vmem:[#allocation10 + $0x78] sm:$0xff]
    %v1678 = vld [vmem:[#allocation10 + $0x80] sm:$0xff]
    %v1679 = vld [vmem:[#allocation10 + $0x88] sm:$0xff]
    %v1680 = vld [vmem:[#allocation10 + $0x90] sm:$0xff]
    %v1681 = vld [vmem:[#allocation10 + $0x98] sm:$0xff]
    %v1682 = vld [vmem:[#allocation10 + $0xa0] sm:$0xff]
    %v1683 = vld [vmem:[#allocation10 + $0xa8] sm:$0xff]
    %v1684 = vld [vmem:[#allocation10 + $0xb0] sm:$0xff]
    %v1685 = vld [vmem:[#allocation10 + $0xb8] sm:$0xff]
    %v1686 = vld [vmem:[#allocation10 + $0xc0] sm:$0xff]
    %v1687 = vld [vmem:[#allocation10 + $0xc8] sm:$0xff]
    %v1688 = vld [vmem:[#allocation10 + $0xd0] sm:$0xff]
    %v1689 = vld [vmem:[#allocation10 + $0xd8] sm:$0xff]
    %v1690 = vld [vmem:[#allocation10 + $0xe0] sm:$0xff]
    %v1691 = vld [vmem:[#allocation10 + $0xe8] sm:$0xff]
    %v1692 = vld [vmem:[#allocation10 + $0xf0] sm:$0xff]
    %v1693 = vld [vmem:[#allocation10 + $0xf8] sm:$0xff]
    %v1694 = vld [vmem:[#allocation10 + $0x100] sm:$0xff]
    %v1695 = vld [vmem:[#allocation10 + $0x108] sm:$0xff]
    %v1696 = vld [vmem:[#allocation10 + $0x110] sm:$0xff]
    %v1697 = vld [vmem:[#allocation10 + $0x118] sm:$0xff]
    %v1698 = vld [vmem:[#allocation10 + $0x120] sm:$0xff]
    %v1699 = vld [vmem:[#allocation10 + $0x128] sm:$0xff]
    %v1700 = vld [vmem:[#allocation10 + $0x130] sm:$0xff]
    %v1701 = vld [vmem:[#allocation10 + $0x138] sm:$0xff]
    %v1702 = vld [vmem:[#allocation10 + $0x140] sm:$0xff]
    %v1703 = vld [vmem:[#allocation10 + $0x148] sm:$0xff]
    %v1704 = vld [vmem:[#allocation10 + $0x150] sm:$0xff]
    %v1705 = vld [vmem:[#allocation10 + $0x158] sm:$0xff]
    %v1706 = vld [vmem:[#allocation10 + $0x160] sm:$0xff]
    %v1707 = vld [vmem:[#allocation10 + $0x168] sm:$0xff]
    %v1708 = vld [vmem:[#allocation10 + $0x170] sm:$0xff]
    %v1709 = vld [vmem:[#allocation10 + $0x178] sm:$0xff]
    %v1710 = vld [vmem:[#allocation10 + $0x180] sm:$0xff]
    %v1711 = vld [vmem:[#allocation10 + $0x188] sm:$0xff]
    %v1712 = vld [vmem:[#allocation10 + $0x190] sm:$0xff]
    %v1713 = vld [vmem:[#allocation10 + $0x198] sm:$0xff]
    %v1714 = vld [vmem:[#allocation10 + $0x1a0] sm:$0xff]
    %v1715 = vld [vmem:[#allocation10 + $0x1a8] sm:$0xff]
    %v1716 = vld [vmem:[#allocation10 + $0x1b0] sm:$0xff]
    %v1717 = vld [vmem:[#allocation10 + $0x1b8] sm:$0xff]
    %v1718 = vld [vmem:[#allocation10 + $0x1c0] sm:$0xff]
    %v1719 = vld [vmem:[#allocation10 + $0x1c8] sm:$0xff]
    %v1720 = vld [vmem:[#allocation10 + $0x1d0] sm:$0xff]
    %v1721 = vld [vmem:[#allocation10 + $0x1d8] sm:$0xff]
    %v1722 = vld [vmem:[#allocation10 + $0x1e0] sm:$0xff]
    %v1723 = vld [vmem:[#allocation10 + $0x1e8] sm:$0xff]
    %v1724 = vld [vmem:[#allocation10 + $0x1f0] sm:$0xff]
    %v1725 = vld [vmem:[#allocation10 + $0x1f8] sm:$0xff]
    %v1726 = vld [vmem:[%s6] sm:$0xf]
    %v1728 = vlaneseq
    %v1729 = vshrl.u32 %v1728, 7
    %v1730 = vsub.s32 0, %v1729
    %v1731 = vrot.slane %v1726, %v1730
    %v1732 = vlaneseq
    %v1733 = vshrl.u32 %v1732, 7
    %v1734 = vsub.s32 1, %v1733
    %v1735 = vrot.slane %v1726, %v1734
    %v1736 = vlaneseq
    %v1737 = vshrl.u32 %v1736, 7
    %v1738 = vsub.s32 2, %v1737
    %v1739 = vrot.slane %v1726, %v1738
    %v1740 = vlaneseq
    %v1741 = vshrl.u32 %v1740, 7
    %v1742 = vsub.s32 3, %v1741
    %v1743 = vrot.slane %v1726, %v1742
    %v1812 = vunpack.c.l.b16 %v1662
    %v1813 = vunpack.c.h.b16 %v1662
    %v1814 = vunpack.c.l.b16 %v1663
    %v1815 = vunpack.c.h.b16 %v1663
    %v1816 = vunpack.c.l.b16 %v1664
    %v1817 = vunpack.c.h.b16 %v1664
    %v1818 = vunpack.c.l.b16 %v1665
    %v1819 = vunpack.c.h.b16 %v1665
    %v1820 = vunpack.c.l.b16 %v1666
    %v1821 = vunpack.c.h.b16 %v1666
    %v1822 = vunpack.c.l.b16 %v1667
    %v1823 = vunpack.c.h.b16 %v1667
    %v1824 = vunpack.c.l.b16 %v1668
    %v1825 = vunpack.c.h.b16 %v1668
    %v1826 = vunpack.c.l.b16 %v1669
    %v1827 = vunpack.c.h.b16 %v1669
    %v1828 = vunpack.c.l.b16 %v1670
    %v1829 = vunpack.c.h.b16 %v1670
    %v1830 = vunpack.c.l.b16 %v1671
    %v1831 = vunpack.c.h.b16 %v1671
    %v1832 = vunpack.c.l.b16 %v1672
    %v1833 = vunpack.c.h.b16 %v1672
    %v1834 = vunpack.c.l.b16 %v1673
    %v1835 = vunpack.c.h.b16 %v1673
    %v1836 = vunpack.c.l.b16 %v1674
    %v1837 = vunpack.c.h.b16 %v1674
    %v1838 = vunpack.c.l.b16 %v1675
    %v1839 = vunpack.c.h.b16 %v1675
    %v1840 = vunpack.c.l.b16 %v1676
    %v1841 = vunpack.c.h.b16 %v1676
    %v1842 = vunpack.c.l.b16 %v1677
    %v1843 = vunpack.c.h.b16 %v1677
    %v1844 = vunpack.c.l.b16 %v1678
    %v1845 = vunpack.c.h.b16 %v1678
    %v1846 = vunpack.c.l.b16 %v1679
    %v1847 = vunpack.c.h.b16 %v1679
    %v1848 = vunpack.c.l.b16 %v1680
    %v1849 = vunpack.c.h.b16 %v1680
    %v1850 = vunpack.c.l.b16 %v1681
    %v1851 = vunpack.c.h.b16 %v1681
    %v1852 = vunpack.c.l.b16 %v1682
    %v1853 = vunpack.c.h.b16 %v1682
    %v1854 = vunpack.c.l.b16 %v1683
    %v1855 = vunpack.c.h.b16 %v1683
    %v1856 = vunpack.c.l.b16 %v1684
    %v1857 = vunpack.c.h.b16 %v1684
    %v1858 = vunpack.c.l.b16 %v1685
    %v1859 = vunpack.c.h.b16 %v1685
    %v1860 = vunpack.c.l.b16 %v1686
    %v1861 = vunpack.c.h.b16 %v1686
    %v1862 = vunpack.c.l.b16 %v1687
    %v1863 = vunpack.c.h.b16 %v1687
    %v1864 = vunpack.c.l.b16 %v1688
    %v1865 = vunpack.c.h.b16 %v1688
    %v1866 = vunpack.c.l.b16 %v1689
    %v1867 = vunpack.c.h.b16 %v1689
    %v1868 = vunpack.c.l.b16 %v1690
    %v1869 = vunpack.c.h.b16 %v1690
    %v1870 = vunpack.c.l.b16 %v1691
    %v1871 = vunpack.c.h.b16 %v1691
    %v1872 = vunpack.c.l.b16 %v1692
    %v1873 = vunpack.c.h.b16 %v1692
    %v1874 = vunpack.c.l.b16 %v1693
    %v1875 = vunpack.c.h.b16 %v1693
    %v1876 = vunpack.c.l.b16 %v1694
    %v1877 = vunpack.c.h.b16 %v1694
    %v1878 = vunpack.c.l.b16 %v1695
    %v1879 = vunpack.c.h.b16 %v1695
    %v1880 = vunpack.c.l.b16 %v1696
    %v1881 = vunpack.c.h.b16 %v1696
    %v1882 = vunpack.c.l.b16 %v1697
    %v1883 = vunpack.c.h.b16 %v1697
    %v1884 = vunpack.c.l.b16 %v1698
    %v1885 = vunpack.c.h.b16 %v1698
    %v1886 = vunpack.c.l.b16 %v1699
    %v1887 = vunpack.c.h.b16 %v1699
    %v1888 = vunpack.c.l.b16 %v1700
    %v1889 = vunpack.c.h.b16 %v1700
    %v1890 = vunpack.c.l.b16 %v1701
    %v1891 = vunpack.c.h.b16 %v1701
    %v1892 = vunpack.c.l.b16 %v1702
    %v1893 = vunpack.c.h.b16 %v1702
    %v1894 = vunpack.c.l.b16 %v1703
    %v1895 = vunpack.c.h.b16 %v1703
    %v1896 = vunpack.c.l.b16 %v1704
    %v1897 = vunpack.c.h.b16 %v1704
    %v1898 = vunpack.c.l.b16 %v1705
    %v1899 = vunpack.c.h.b16 %v1705
    %v1900 = vunpack.c.l.b16 %v1706
    %v1901 = vunpack.c.h.b16 %v1706
    %v1902 = vunpack.c.l.b16 %v1707
    %v1903 = vunpack.c.h.b16 %v1707
    %v1904 = vunpack.c.l.b16 %v1708
    %v1905 = vunpack.c.h.b16 %v1708
    %v1906 = vunpack.c.l.b16 %v1709
    %v1907 = vunpack.c.h.b16 %v1709
    %v1908 = vunpack.c.l.b16 %v1710
    %v1909 = vunpack.c.h.b16 %v1710
    %v1910 = vunpack.c.l.b16 %v1711
    %v1911 = vunpack.c.h.b16 %v1711
    %v1912 = vunpack.c.l.b16 %v1712
    %v1913 = vunpack.c.h.b16 %v1712
    %v1914 = vunpack.c.l.b16 %v1713
    %v1915 = vunpack.c.h.b16 %v1713
    %v1916 = vunpack.c.l.b16 %v1714
    %v1917 = vunpack.c.h.b16 %v1714
    %v1918 = vunpack.c.l.b16 %v1715
    %v1919 = vunpack.c.h.b16 %v1715
    %v1920 = vunpack.c.l.b16 %v1716
    %v1921 = vunpack.c.h.b16 %v1716
    %v1922 = vunpack.c.l.b16 %v1717
    %v1923 = vunpack.c.h.b16 %v1717
    %v1924 = vunpack.c.l.b16 %v1718
    %v1925 = vunpack.c.h.b16 %v1718
    %v1926 = vunpack.c.l.b16 %v1719
    %v1927 = vunpack.c.h.b16 %v1719
    %v1928 = vunpack.c.l.b16 %v1720
    %v1929 = vunpack.c.h.b16 %v1720
    %v1930 = vunpack.c.l.b16 %v1721
    %v1931 = vunpack.c.h.b16 %v1721
    %v1932 = vunpack.c.l.b16 %v1722
    %v1933 = vunpack.c.h.b16 %v1722
    %v1934 = vunpack.c.l.b16 %v1723
    %v1935 = vunpack.c.h.b16 %v1723
    %v1936 = vunpack.c.l.b16 %v1724
    %v1937 = vunpack.c.h.b16 %v1724
    %v1938 = vunpack.c.l.b16 %v1725
    %v1939 = vunpack.c.h.b16 %v1725
    %v1940 = vpack.c.b16 %v1816, %v1812
    %v1941 = vpack.c.b16 %v1817, %v1813
    %v1942 = vpack.c.b16 %v1818, %v1814
    %v1943 = vpack.c.b16 %v1819, %v1815
    %v1944 = vpack.c.b16 %v1824, %v1820
    %v1945 = vpack.c.b16 %v1825, %v1821
    %v1946 = vpack.c.b16 %v1826, %v1822
    %v1947 = vpack.c.b16 %v1827, %v1823
    %v1948 = vpack.c.b16 %v1832, %v1828
    %v1949 = vpack.c.b16 %v1833, %v1829
    %v1950 = vpack.c.b16 %v1834, %v1830
    %v1951 = vpack.c.b16 %v1835, %v1831
    %v1952 = vpack.c.b16 %v1840, %v1836
    %v1953 = vpack.c.b16 %v1841, %v1837
    %v1954 = vpack.c.b16 %v1842, %v1838
    %v1955 = vpack.c.b16 %v1843, %v1839
    %v1956 = vpack.c.b16 %v1848, %v1844
    %v1957 = vpack.c.b16 %v1849, %v1845
    %v1958 = vpack.c.b16 %v1850, %v1846
    %v1959 = vpack.c.b16 %v1851, %v1847
    %v1960 = vpack.c.b16 %v1856, %v1852
    %v1961 = vpack.c.b16 %v1857, %v1853
    %v1962 = vpack.c.b16 %v1858, %v1854
    %v1963 = vpack.c.b16 %v1859, %v1855
    %v1964 = vpack.c.b16 %v1864, %v1860
    %v1965 = vpack.c.b16 %v1865, %v1861
    %v1966 = vpack.c.b16 %v1866, %v1862
    %v1967 = vpack.c.b16 %v1867, %v1863
    %v1968 = vpack.c.b16 %v1872, %v1868
    %v1969 = vpack.c.b16 %v1873, %v1869
    %v1970 = vpack.c.b16 %v1874, %v1870
    %v1971 = vpack.c.b16 %v1875, %v1871
    %v1972 = vpack.c.b16 %v1880, %v1876
    %v1973 = vpack.c.b16 %v1881, %v1877
    %v1974 = vpack.c.b16 %v1882, %v1878
    %v1975 = vpack.c.b16 %v1883, %v1879
    %v1976 = vpack.c.b16 %v1888, %v1884
    %v1977 = vpack.c.b16 %v1889, %v1885
    %v1978 = vpack.c.b16 %v1890, %v1886
    %v1979 = vpack.c.b16 %v1891, %v1887
    %v1980 = vpack.c.b16 %v1896, %v1892
    %v1981 = vpack.c.b16 %v1897, %v1893
    %v1982 = vpack.c.b16 %v1898, %v1894
    %v1983 = vpack.c.b16 %v1899, %v1895
    %v1984 = vpack.c.b16 %v1904, %v1900
    %v1985 = vpack.c.b16 %v1905, %v1901
    %v1986 = vpack.c.b16 %v1906, %v1902
    %v1987 = vpack.c.b16 %v1907, %v1903
    %v1988 = vpack.c.b16 %v1912, %v1908
    %v1989 = vpack.c.b16 %v1913, %v1909
    %v1990 = vpack.c.b16 %v1914, %v1910
    %v1991 = vpack.c.b16 %v1915, %v1911
    %v1992 = vpack.c.b16 %v1920, %v1916
    %v1993 = vpack.c.b16 %v1921, %v1917
    %v1994 = vpack.c.b16 %v1922, %v1918
    %v1995 = vpack.c.b16 %v1923, %v1919
    %v1996 = vpack.c.b16 %v1928, %v1924
    %v1997 = vpack.c.b16 %v1929, %v1925
    %v1998 = vpack.c.b16 %v1930, %v1926
    %v1999 = vpack.c.b16 %v1931, %v1927
    %v2000 = vpack.c.b16 %v1936, %v1932
    %v2001 = vpack.c.b16 %v1937, %v1933
    %v2002 = vpack.c.b16 %v1938, %v1934
    %v2003 = vpack.c.b16 %v1939, %v1935
    %2068 = vmatprep.subr.bf16.mxu0 %v1969
    %2069 = vmatpush1.bf16.msra.mxu0 %v1968
    %2070 = vmatprep.subr.bf16.mxu0 %v1965
    %2071 = vmatpush1.bf16.msra.mxu0 %v1964
    %2072 = vmatprep.subr.bf16.mxu0 %v1961
    %2073 = vmatpush1.bf16.msra.mxu0 %v1960
    %2074 = vmatprep.subr.bf16.mxu0 %v1957
    %2075 = vmatpush1.bf16.msra.mxu0 %v1956
    %2076 = vmatprep.subr.bf16.mxu0 %v1953
    %2077 = vmatpush1.bf16.msra.mxu0 %v1952
    %2078 = vmatprep.subr.bf16.mxu0 %v1949
    %2079 = vmatpush1.bf16.msra.mxu0 %v1948
    %2080 = vmatprep.subr.bf16.mxu0 %v1945
    %2081 = vmatpush1.bf16.msra.mxu0 %v1944
    %2082 = vmatprep.subr.bf16.mxu0 %v1941
    %2083 = vmatpush1.bf16.msra.mxu0 %v1940
    %2084 = vmatprep.subr.bf16.mxu0 %v2001
    %2085 = vmatpush2.bf16.msra.mxu0 %v2000
    %2086 = vmatprep.subr.bf16.mxu0 %v1997
    %2087 = vmatpush2.bf16.msra.mxu0 %v1996
    %2088 = vmatprep.subr.bf16.mxu0 %v1993
    %2089 = vmatpush2.bf16.msra.mxu0 %v1992
    %2090 = vmatprep.subr.bf16.mxu0 %v1989
    %2091 = vmatpush2.bf16.msra.mxu0 %v1988
    %2092 = vmatprep.subr.bf16.mxu0 %v1985
    %2093 = vmatpush2.bf16.msra.mxu0 %v1984
    %2094 = vmatprep.subr.bf16.mxu0 %v1981
    %2095 = vmatpush2.bf16.msra.mxu0 %v1980
    %2096 = vmatprep.subr.bf16.mxu0 %v1977
    %2097 = vmatpush2.bf16.msra.mxu0 %v1976
    %2098 = vmatprep.subr.bf16.mxu0 %v1973
    %2099 = vmatpush2.bf16.msra.mxu0 %v1972
    %2100 = vmatprep.mubr.bf16.mxu0 %v1661
    %2101 = vmatmul.mubr.bf16.gmra.mxu0 %v1660
    %v2102 = vpop.f32.mrf.mxu0
    %v2103 = vadd.f32 %v1731, %v2102
    %v2104 = vpop.f32.mrf.mxu0
    %v2105 = vadd.f32 %v1735, %v2104
    %v2106 = vpop.f32.mrf.mxu0
    %v2107 = vadd.f32 %v1731, %v2106
    %v2108 = vpop.f32.mrf.mxu0
    %v2109 = vadd.f32 %v1735, %v2108
    %2110 = vdwg.mxu0
    %2111 = vmatprep.subr.bf16.mxu0 %v1971
    %2112 = vmatpush1.bf16.msra.mxu0 %v1970
    %2113 = vmatprep.subr.bf16.mxu0 %v1967
    %2114 = vmatpush1.bf16.msra.mxu0 %v1966
    %2115 = vmatprep.subr.bf16.mxu0 %v1963
    %2116 = vmatpush1.bf16.msra.mxu0 %v1962
    %2117 = vmatprep.subr.bf16.mxu0 %v1959
    %2118 = vmatpush1.bf16.msra.mxu0 %v1958
    %2119 = vmatprep.subr.bf16.mxu0 %v1955
    %2120 = vmatpush1.bf16.msra.mxu0 %v1954
    %2121 = vmatprep.subr.bf16.mxu0 %v1951
    %2122 = vmatpush1.bf16.msra.mxu0 %v1950
    %2123 = vmatprep.subr.bf16.mxu0 %v1947
    %2124 = vmatpush1.bf16.msra.mxu0 %v1946
    %2125 = vmatprep.subr.bf16.mxu0 %v1943
    %2126 = vmatpush1.bf16.msra.mxu0 %v1942
    %2127 = vmatprep.subr.bf16.mxu0 %v2003
    %2128 = vmatpush2.bf16.msra.mxu0 %v2002
    %2129 = vmatprep.subr.bf16.mxu0 %v1999
    %2130 = vmatpush2.bf16.msra.mxu0 %v1998
    %2131 = vmatprep.subr.bf16.mxu0 %v1995
    %2132 = vmatpush2.bf16.msra.mxu0 %v1994
    %2133 = vmatprep.subr.bf16.mxu0 %v1991
    %2134 = vmatpush2.bf16.msra.mxu0 %v1990
    %2135 = vmatprep.subr.bf16.mxu0 %v1987
    %2136 = vmatpush2.bf16.msra.mxu0 %v1986
    %2137 = vmatprep.subr.bf16.mxu0 %v1983
    %2138 = vmatpush2.bf16.msra.mxu0 %v1982
    %2139 = vmatprep.subr.bf16.mxu0 %v1979
    %2140 = vmatpush2.bf16.msra.mxu0 %v1978
    %2141 = vmatprep.subr.bf16.mxu0 %v1975
    %2142 = vmatpush2.bf16.msra.mxu0 %v1974
    %2143 = vmatprep.mubr.bf16.mxu0 %v1661
    %2144 = vmatmul.mubr.bf16.gmra.mxu0 %v1660
    %v2145 = vpop.f32.mrf.mxu0
    %v2146 = vadd.f32 %v1739, %v2145
    %v2147 = vpop.f32.mrf.mxu0
    %v2148 = vadd.f32 %v1743, %v2147
    %v2149 = vpop.f32.mrf.mxu0
    %v2150 = vadd.f32 %v1739, %v2149
    %v2151 = vpop.f32.mrf.mxu0
    %v2152 = vadd.f32 %v1743, %v2151
    %2153 = vdwg.mxu0
    %v2154 = vld [vmem:[%s7] sm:$0xf]
    %v2155 = vld [vmem:[#allocation11] sm:$0xf]
    %v2156 = vadd.f32 %v2103, %v2105
    %v2157 = vadd.f32 %v2156, %v2146
    %v2158 = vadd.f32 %v2157, %v2148
    %2159 = vadd.xlane.f32.xlu0 %v2158
    %v2160 = vpop.xlane.xlu0 %2159
    %v2161 = vadd.f32 %v2107, %v2109
    %v2162 = vadd.f32 %v2161, %v2150
    %v2163 = vadd.f32 %v2162, %v2152
    %2164 = vadd.xlane.f32.xlu0 %v2163
    %v2165 = vpop.xlane.xlu0 %2164
    %v2166 = vrcp.pop 512.0
    %v2167 = vmul.f32 %v2160, %v2166
    %v2168 = vmul.f32 %v2165, %v2166
    %v2169 = vsub.f32 %v2103, %v2167
    %v2170 = vsub.f32 %v2105, %v2167
    %v2171 = vsub.f32 %v2146, %v2167
    %v2172 = vsub.f32 %v2148, %v2167
    %v2173 = vsub.f32 %v2107, %v2168
    %v2174 = vsub.f32 %v2109, %v2168
    %v2175 = vsub.f32 %v2150, %v2168
    %v2176 = vsub.f32 %v2152, %v2168
    %v2177 = vmul.f32 %v2169, %v2169
    %v2178 = vmul.f32 %v2170, %v2170
    %v2179 = vmul.f32 %v2171, %v2171
    %v2180 = vmul.f32 %v2172, %v2172
    %v2181 = vmul.f32 %v2173, %v2173
    %v2182 = vmul.f32 %v2174, %v2174
    %v2183 = vmul.f32 %v2175, %v2175
    %v2184 = vmul.f32 %v2176, %v2176
    %v2185 = vadd.f32 %v2177, %v2178
    %v2186 = vadd.f32 %v2185, %v2179
    %v2187 = vadd.f32 %v2186, %v2180
    %2188 = vadd.xlane.f32.xlu0 %v2187
    %v2189 = vpop.xlane.xlu0 %2188
    %v2190 = vadd.f32 %v2181, %v2182
    %v2191 = vadd.f32 %v2190, %v2183
    %v2192 = vadd.f32 %v2191, %v2184
    %2193 = vadd.xlane.f32.xlu0 %v2192
    %v2194 = vpop.xlane.xlu0 %2193
    %v2195 = vmul.f32 %v2189, %v2166
    %v2196 = vmul.f32 %v2194, %v2166
    %v2197 = vadd.f32 %v2195, 1e-05
    %v2198 = vadd.f32 %v2196, 1e-05
    %v2199 = vrsqrt.pop %v2197
    %v2200 = vrsqrt.pop %v2198
    %v2201 = vmul.f32 %v2169, %v2199
    %v2202 = vmul.f32 %v2170, %v2199
    %v2203 = vmul.f32 %v2171, %v2199
    %v2204 = vmul.f32 %v2172, %v2199
    %v2205 = vmul.f32 %v2173, %v2200
    %v2206 = vmul.f32 %v2174, %v2200
    %v2207 = vmul.f32 %v2175, %v2200
    %v2208 = vmul.f32 %v2176, %v2200
    %v2210 = vlaneseq
    %v2211 = vshrl.u32 %v2210, 7
    %v2212 = vsub.s32 0, %v2211
    %v2213 = vrot.slane %v2154, %v2212
    %v2214 = vlaneseq
    %v2215 = vshrl.u32 %v2214, 7
    %v2216 = vsub.s32 1, %v2215
    %v2217 = vrot.slane %v2154, %v2216
    %v2218 = vlaneseq
    %v2219 = vshrl.u32 %v2218, 7
    %v2220 = vsub.s32 2, %v2219
    %v2221 = vrot.slane %v2154, %v2220
    %v2222 = vlaneseq
    %v2223 = vshrl.u32 %v2222, 7
    %v2224 = vsub.s32 3, %v2223
    %v2225 = vrot.slane %v2154, %v2224
    %v2230 = vmul.f32 %v2201, %v2213
    %v2231 = vmul.f32 %v2202, %v2217
    %v2232 = vmul.f32 %v2203, %v2221
    %v2233 = vmul.f32 %v2204, %v2225
    %v2234 = vmul.f32 %v2205, %v2213
    %v2235 = vmul.f32 %v2206, %v2217
    %v2236 = vmul.f32 %v2207, %v2221
    %v2237 = vmul.f32 %v2208, %v2225
    %v2239 = vlaneseq
    %v2240 = vshrl.u32 %v2239, 7
    %v2241 = vsub.s32 0, %v2240
    %v2242 = vrot.slane %v2155, %v2241
    %v2243 = vlaneseq
    %v2244 = vshrl.u32 %v2243, 7
    %v2245 = vsub.s32 1, %v2244
    %v2246 = vrot.slane %v2155, %v2245
    %v2247 = vlaneseq
    %v2248 = vshrl.u32 %v2247, 7
    %v2249 = vsub.s32 2, %v2248
    %v2250 = vrot.slane %v2155, %v2249
    %v2251 = vlaneseq
    %v2252 = vshrl.u32 %v2251, 7
    %v2253 = vsub.s32 3, %v2252
    %v2254 = vrot.slane %v2155, %v2253
    %v2259 = vadd.f32 %v2230, %v2242
    %v2260 = vadd.f32 %v2231, %v2246
    %v2261 = vadd.f32 %v2232, %v2250
    %v2262 = vadd.f32 %v2233, %v2254
    %v2263 = vadd.f32 %v2234, %v2242
    %v2264 = vadd.f32 %v2235, %v2246
    %v2265 = vadd.f32 %v2236, %v2250
    %v2266 = vadd.f32 %v2237, %v2254
    %v2267 = vmax.f32 %v2259, 0.0
    %v2268 = vmax.f32 %v2260, 0.0
    %v2269 = vmax.f32 %v2261, 0.0
    %v2270 = vmax.f32 %v2262, 0.0
    %v2271 = vmax.f32 %v2263, 0.0
    %v2272 = vmax.f32 %v2264, 0.0
    %v2273 = vmax.f32 %v2265, 0.0
    %v2274 = vmax.f32 %v2266, 0.0
    %v2275 = vpack.c.bf16 %v2271, %v2267
    %v2276 = vpack.c.bf16 %v2272, %v2268
    %v2277 = vpack.c.bf16 %v2273, %v2269
    %v2278 = vpack.c.bf16 %v2274, %v2270
    %v2279 = vld [vmem:[#allocation13] sm:$0xff]
    %v2280 = vld [vmem:[#allocation13 + $0x8] sm:$0xff]
    %v2281 = vld [vmem:[#allocation13 + $0x10] sm:$0xff]
    %v2282 = vld [vmem:[#allocation13 + $0x18] sm:$0xff]
    %v2283 = vld [vmem:[#allocation13 + $0x20] sm:$0xff]
    %v2284 = vld [vmem:[#allocation13 + $0x28] sm:$0xff]
    %v2285 = vld [vmem:[#allocation13 + $0x30] sm:$0xff]
    %v2286 = vld [vmem:[#allocation13 + $0x38] sm:$0xff]
    %v2287 = vld [vmem:[#allocation13 + $0x40] sm:$0xff]
    %v2288 = vld [vmem:[#allocation13 + $0x48] sm:$0xff]
    %v2289 = vld [vmem:[#allocation13 + $0x50] sm:$0xff]
    %v2290 = vld [vmem:[#allocation13 + $0x58] sm:$0xff]
    %v2291 = vld [vmem:[#allocation13 + $0x60] sm:$0xff]
    %v2292 = vld [vmem:[#allocation13 + $0x68] sm:$0xff]
    %v2293 = vld [vmem:[#allocation13 + $0x70] sm:$0xff]
    %v2294 = vld [vmem:[#allocation13 + $0x78] sm:$0xff]
    %v2295 = vld [vmem:[#allocation13 + $0x80] sm:$0xff]
    %v2296 = vld [vmem:[#allocation13 + $0x88] sm:$0xff]
    %v2297 = vld [vmem:[#allocation13 + $0x90] sm:$0xff]
    %v2298 = vld [vmem:[#allocation13 + $0x98] sm:$0xff]
    %v2299 = vld [vmem:[#allocation13 + $0xa0] sm:$0xff]
    %v2300 = vld [vmem:[#allocation13 + $0xa8] sm:$0xff]
    %v2301 = vld [vmem:[#allocation13 + $0xb0] sm:$0xff]
    %v2302 = vld [vmem:[#allocation13 + $0xb8] sm:$0xff]
    %v2303 = vld [vmem:[#allocation13 + $0xc0] sm:$0xff]
    %v2304 = vld [vmem:[#allocation13 + $0xc8] sm:$0xff]
    %v2305 = vld [vmem:[#allocation13 + $0xd0] sm:$0xff]
    %v2306 = vld [vmem:[#allocation13 + $0xd8] sm:$0xff]
    %v2307 = vld [vmem:[#allocation13 + $0xe0] sm:$0xff]
    %v2308 = vld [vmem:[#allocation13 + $0xe8] sm:$0xff]
    %v2309 = vld [vmem:[#allocation13 + $0xf0] sm:$0xff]
    %v2310 = vld [vmem:[#allocation13 + $0xf8] sm:$0xff]
    %v2311 = vld [vmem:[#allocation13 + $0x100] sm:$0xff]
    %v2312 = vld [vmem:[#allocation13 + $0x108] sm:$0xff]
    %v2313 = vld [vmem:[#allocation13 + $0x110] sm:$0xff]
    %v2314 = vld [vmem:[#allocation13 + $0x118] sm:$0xff]
    %v2315 = vld [vmem:[#allocation13 + $0x120] sm:$0xff]
    %v2316 = vld [vmem:[#allocation13 + $0x128] sm:$0xff]
    %v2317 = vld [vmem:[#allocation13 + $0x130] sm:$0xff]
    %v2318 = vld [vmem:[#allocation13 + $0x138] sm:$0xff]
    %v2319 = vld [vmem:[#allocation13 + $0x140] sm:$0xff]
    %v2320 = vld [vmem:[#allocation13 + $0x148] sm:$0xff]
    %v2321 = vld [vmem:[#allocation13 + $0x150] sm:$0xff]
    %v2322 = vld [vmem:[#allocation13 + $0x158] sm:$0xff]
    %v2323 = vld [vmem:[#allocation13 + $0x160] sm:$0xff]
    %v2324 = vld [vmem:[#allocation13 + $0x168] sm:$0xff]
    %v2325 = vld [vmem:[#allocation13 + $0x170] sm:$0xff]
    %v2326 = vld [vmem:[#allocation13 + $0x178] sm:$0xff]
    %v2327 = vld [vmem:[#allocation13 + $0x180] sm:$0xff]
    %v2328 = vld [vmem:[#allocation13 + $0x188] sm:$0xff]
    %v2329 = vld [vmem:[#allocation13 + $0x190] sm:$0xff]
    %v2330 = vld [vmem:[#allocation13 + $0x198] sm:$0xff]
    %v2331 = vld [vmem:[#allocation13 + $0x1a0] sm:$0xff]
    %v2332 = vld [vmem:[#allocation13 + $0x1a8] sm:$0xff]
    %v2333 = vld [vmem:[#allocation13 + $0x1b0] sm:$0xff]
    %v2334 = vld [vmem:[#allocation13 + $0x1b8] sm:$0xff]
    %v2335 = vld [vmem:[#allocation13 + $0x1c0] sm:$0xff]
    %v2336 = vld [vmem:[#allocation13 + $0x1c8] sm:$0xff]
    %v2337 = vld [vmem:[#allocation13 + $0x1d0] sm:$0xff]
    %v2338 = vld [vmem:[#allocation13 + $0x1d8] sm:$0xff]
    %v2339 = vld [vmem:[#allocation13 + $0x1e0] sm:$0xff]
    %v2340 = vld [vmem:[#allocation13 + $0x1e8] sm:$0xff]
    %v2341 = vld [vmem:[#allocation13 + $0x1f0] sm:$0xff]
    %v2342 = vld [vmem:[#allocation13 + $0x1f8] sm:$0xff]
    %v2343 = vld [vmem:[#allocation13 + $0x200] sm:$0xff]
    %v2344 = vld [vmem:[#allocation13 + $0x208] sm:$0xff]
    %v2345 = vld [vmem:[#allocation13 + $0x210] sm:$0xff]
    %v2346 = vld [vmem:[#allocation13 + $0x218] sm:$0xff]
    %v2347 = vld [vmem:[#allocation13 + $0x220] sm:$0xff]
    %v2348 = vld [vmem:[#allocation13 + $0x228] sm:$0xff]
    %v2349 = vld [vmem:[#allocation13 + $0x230] sm:$0xff]
    %v2350 = vld [vmem:[#allocation13 + $0x238] sm:$0xff]
    %v2351 = vld [vmem:[#allocation13 + $0x240] sm:$0xff]
    %v2352 = vld [vmem:[#allocation13 + $0x248] sm:$0xff]
    %v2353 = vld [vmem:[#allocation13 + $0x250] sm:$0xff]
    %v2354 = vld [vmem:[#allocation13 + $0x258] sm:$0xff]
    %v2355 = vld [vmem:[#allocation13 + $0x260] sm:$0xff]
    %v2356 = vld [vmem:[#allocation13 + $0x268] sm:$0xff]
    %v2357 = vld [vmem:[#allocation13 + $0x270] sm:$0xff]
    %v2358 = vld [vmem:[#allocation13 + $0x278] sm:$0xff]
    %v2359 = vld [vmem:[#allocation13 + $0x280] sm:$0xff]
    %v2360 = vld [vmem:[#allocation13 + $0x288] sm:$0xff]
    %v2361 = vld [vmem:[#allocation13 + $0x290] sm:$0xff]
    %v2362 = vld [vmem:[#allocation13 + $0x298] sm:$0xff]
    %v2363 = vld [vmem:[#allocation13 + $0x2a0] sm:$0xff]
    %v2364 = vld [vmem:[#allocation13 + $0x2a8] sm:$0xff]
    %v2365 = vld [vmem:[#allocation13 + $0x2b0] sm:$0xff]
    %v2366 = vld [vmem:[#allocation13 + $0x2b8] sm:$0xff]
    %v2367 = vld [vmem:[#allocation13 + $0x2c0] sm:$0xff]
    %v2368 = vld [vmem:[#allocation13 + $0x2c8] sm:$0xff]
    %v2369 = vld [vmem:[#allocation13 + $0x2d0] sm:$0xff]
    %v2370 = vld [vmem:[#allocation13 + $0x2d8] sm:$0xff]
    %v2371 = vld [vmem:[#allocation13 + $0x2e0] sm:$0xff]
    %v2372 = vld [vmem:[#allocation13 + $0x2e8] sm:$0xff]
    %v2373 = vld [vmem:[#allocation13 + $0x2f0] sm:$0xff]
    %v2374 = vld [vmem:[#allocation13 + $0x2f8] sm:$0xff]
    %v2375 = vld [vmem:[#allocation13 + $0x300] sm:$0xff]
    %v2376 = vld [vmem:[#allocation13 + $0x308] sm:$0xff]
    %v2377 = vld [vmem:[#allocation13 + $0x310] sm:$0xff]
    %v2378 = vld [vmem:[#allocation13 + $0x318] sm:$0xff]
    %v2379 = vld [vmem:[#allocation13 + $0x320] sm:$0xff]
    %v2380 = vld [vmem:[#allocation13 + $0x328] sm:$0xff]
    %v2381 = vld [vmem:[#allocation13 + $0x330] sm:$0xff]
    %v2382 = vld [vmem:[#allocation13 + $0x338] sm:$0xff]
    %v2383 = vld [vmem:[#allocation13 + $0x340] sm:$0xff]
    %v2384 = vld [vmem:[#allocation13 + $0x348] sm:$0xff]
    %v2385 = vld [vmem:[#allocation13 + $0x350] sm:$0xff]
    %v2386 = vld [vmem:[#allocation13 + $0x358] sm:$0xff]
    %v2387 = vld [vmem:[#allocation13 + $0x360] sm:$0xff]
    %v2388 = vld [vmem:[#allocation13 + $0x368] sm:$0xff]
    %v2389 = vld [vmem:[#allocation13 + $0x370] sm:$0xff]
    %v2390 = vld [vmem:[#allocation13 + $0x378] sm:$0xff]
    %v2391 = vld [vmem:[#allocation13 + $0x380] sm:$0xff]
    %v2392 = vld [vmem:[#allocation13 + $0x388] sm:$0xff]
    %v2393 = vld [vmem:[#allocation13 + $0x390] sm:$0xff]
    %v2394 = vld [vmem:[#allocation13 + $0x398] sm:$0xff]
    %v2395 = vld [vmem:[#allocation13 + $0x3a0] sm:$0xff]
    %v2396 = vld [vmem:[#allocation13 + $0x3a8] sm:$0xff]
    %v2397 = vld [vmem:[#allocation13 + $0x3b0] sm:$0xff]
    %v2398 = vld [vmem:[#allocation13 + $0x3b8] sm:$0xff]
    %v2399 = vld [vmem:[#allocation13 + $0x3c0] sm:$0xff]
    %v2400 = vld [vmem:[#allocation13 + $0x3c8] sm:$0xff]
    %v2401 = vld [vmem:[#allocation13 + $0x3d0] sm:$0xff]
    %v2402 = vld [vmem:[#allocation13 + $0x3d8] sm:$0xff]
    %v2403 = vld [vmem:[#allocation13 + $0x3e0] sm:$0xff]
    %v2404 = vld [vmem:[#allocation13 + $0x3e8] sm:$0xff]
    %v2405 = vld [vmem:[#allocation13 + $0x3f0] sm:$0xff]
    %v2406 = vld [vmem:[#allocation13 + $0x3f8] sm:$0xff]
    %v2407 = vld [vmem:[%s10] sm:$0xf]
    %v2409 = vlaneseq
    %v2410 = vshrl.u32 %v2409, 7
    %v2411 = vsub.s32 0, %v2410
    %v2412 = vrot.slane %v2407, %v2411
    %v2413 = vlaneseq
    %v2414 = vshrl.u32 %v2413, 7
    %v2415 = vsub.s32 1, %v2414
    %v2416 = vrot.slane %v2407, %v2415
    %v2417 = vlaneseq
    %v2418 = vshrl.u32 %v2417, 7
    %v2419 = vsub.s32 2, %v2418
    %v2420 = vrot.slane %v2407, %v2419
    %v2421 = vlaneseq
    %v2422 = vshrl.u32 %v2421, 7
    %v2423 = vsub.s32 3, %v2422
    %v2424 = vrot.slane %v2407, %v2423
    %v2557 = vunpack.c.l.b16 %v2279
    %v2558 = vunpack.c.h.b16 %v2279
    %v2559 = vunpack.c.l.b16 %v2280
    %v2560 = vunpack.c.h.b16 %v2280
    %v2561 = vunpack.c.l.b16 %v2281
    %v2562 = vunpack.c.h.b16 %v2281
    %v2563 = vunpack.c.l.b16 %v2282
    %v2564 = vunpack.c.h.b16 %v2282
    %v2565 = vunpack.c.l.b16 %v2283
    %v2566 = vunpack.c.h.b16 %v2283
    %v2567 = vunpack.c.l.b16 %v2284
    %v2568 = vunpack.c.h.b16 %v2284
    %v2569 = vunpack.c.l.b16 %v2285
    %v2570 = vunpack.c.h.b16 %v2285
    %v2571 = vunpack.c.l.b16 %v2286
    %v2572 = vunpack.c.h.b16 %v2286
    %v2573 = vunpack.c.l.b16 %v2287
    %v2574 = vunpack.c.h.b16 %v2287
    %v2575 = vunpack.c.l.b16 %v2288
    %v2576 = vunpack.c.h.b16 %v2288
    %v2577 = vunpack.c.l.b16 %v2289
    %v2578 = vunpack.c.h.b16 %v2289
    %v2579 = vunpack.c.l.b16 %v2290
    %v2580 = vunpack.c.h.b16 %v2290
    %v2581 = vunpack.c.l.b16 %v2291
    %v2582 = vunpack.c.h.b16 %v2291
    %v2583 = vunpack.c.l.b16 %v2292
    %v2584 = vunpack.c.h.b16 %v2292
    %v2585 = vunpack.c.l.b16 %v2293
    %v2586 = vunpack.c.h.b16 %v2293
    %v2587 = vunpack.c.l.b16 %v2294
    %v2588 = vunpack.c.h.b16 %v2294
    %v2589 = vunpack.c.l.b16 %v2295
    %v2590 = vunpack.c.h.b16 %v2295
    %v2591 = vunpack.c.l.b16 %v2296
    %v2592 = vunpack.c.h.b16 %v2296
    %v2593 = vunpack.c.l.b16 %v2297
    %v2594 = vunpack.c.h.b16 %v2297
    %v2595 = vunpack.c.l.b16 %v2298
    %v2596 = vunpack.c.h.b16 %v2298
    %v2597 = vunpack.c.l.b16 %v2299
    %v2598 = vunpack.c.h.b16 %v2299
    %v2599 = vunpack.c.l.b16 %v2300
    %v2600 = vunpack.c.h.b16 %v2300
    %v2601 = vunpack.c.l.b16 %v2301
    %v2602 = vunpack.c.h.b16 %v2301
    %v2603 = vunpack.c.l.b16 %v2302
    %v2604 = vunpack.c.h.b16 %v2302
    %v2605 = vunpack.c.l.b16 %v2303
    %v2606 = vunpack.c.h.b16 %v2303
    %v2607 = vunpack.c.l.b16 %v2304
    %v2608 = vunpack.c.h.b16 %v2304
    %v2609 = vunpack.c.l.b16 %v2305
    %v2610 = vunpack.c.h.b16 %v2305
    %v2611 = vunpack.c.l.b16 %v2306
    %v2612 = vunpack.c.h.b16 %v2306
    %v2613 = vunpack.c.l.b16 %v2307
    %v2614 = vunpack.c.h.b16 %v2307
    %v2615 = vunpack.c.l.b16 %v2308
    %v2616 = vunpack.c.h.b16 %v2308
    %v2617 = vunpack.c.l.b16 %v2309
    %v2618 = vunpack.c.h.b16 %v2309
    %v2619 = vunpack.c.l.b16 %v2310
    %v2620 = vunpack.c.h.b16 %v2310
    %v2621 = vunpack.c.l.b16 %v2311
    %v2622 = vunpack.c.h.b16 %v2311
    %v2623 = vunpack.c.l.b16 %v2312
    %v2624 = vunpack.c.h.b16 %v2312
    %v2625 = vunpack.c.l.b16 %v2313
    %v2626 = vunpack.c.h.b16 %v2313
    %v2627 = vunpack.c.l.b16 %v2314
    %v2628 = vunpack.c.h.b16 %v2314
    %v2629 = vunpack.c.l.b16 %v2315
    %v2630 = vunpack.c.h.b16 %v2315
    %v2631 = vunpack.c.l.b16 %v2316
    %v2632 = vunpack.c.h.b16 %v2316
    %v2633 = vunpack.c.l.b16 %v2317
    %v2634 = vunpack.c.h.b16 %v2317
    %v2635 = vunpack.c.l.b16 %v2318
    %v2636 = vunpack.c.h.b16 %v2318
    %v2637 = vunpack.c.l.b16 %v2319
    %v2638 = vunpack.c.h.b16 %v2319
    %v2639 = vunpack.c.l.b16 %v2320
    %v2640 = vunpack.c.h.b16 %v2320
    %v2641 = vunpack.c.l.b16 %v2321
    %v2642 = vunpack.c.h.b16 %v2321
    %v2643 = vunpack.c.l.b16 %v2322
    %v2644 = vunpack.c.h.b16 %v2322
    %v2645 = vunpack.c.l.b16 %v2323
    %v2646 = vunpack.c.h.b16 %v2323
    %v2647 = vunpack.c.l.b16 %v2324
    %v2648 = vunpack.c.h.b16 %v2324
    %v2649 = vunpack.c.l.b16 %v2325
    %v2650 = vunpack.c.h.b16 %v2325
    %v2651 = vunpack.c.l.b16 %v2326
    %v2652 = vunpack.c.h.b16 %v2326
    %v2653 = vunpack.c.l.b16 %v2327
    %v2654 = vunpack.c.h.b16 %v2327
    %v2655 = vunpack.c.l.b16 %v2328
    %v2656 = vunpack.c.h.b16 %v2328
    %v2657 = vunpack.c.l.b16 %v2329
    %v2658 = vunpack.c.h.b16 %v2329
    %v2659 = vunpack.c.l.b16 %v2330
    %v2660 = vunpack.c.h.b16 %v2330
    %v2661 = vunpack.c.l.b16 %v2331
    %v2662 = vunpack.c.h.b16 %v2331
    %v2663 = vunpack.c.l.b16 %v2332
    %v2664 = vunpack.c.h.b16 %v2332
    %v2665 = vunpack.c.l.b16 %v2333
    %v2666 = vunpack.c.h.b16 %v2333
    %v2667 = vunpack.c.l.b16 %v2334
    %v2668 = vunpack.c.h.b16 %v2334
    %v2669 = vunpack.c.l.b16 %v2335
    %v2670 = vunpack.c.h.b16 %v2335
    %v2671 = vunpack.c.l.b16 %v2336
    %v2672 = vunpack.c.h.b16 %v2336
    %v2673 = vunpack.c.l.b16 %v2337
    %v2674 = vunpack.c.h.b16 %v2337
    %v2675 = vunpack.c.l.b16 %v2338
    %v2676 = vunpack.c.h.b16 %v2338
    %v2677 = vunpack.c.l.b16 %v2339
    %v2678 = vunpack.c.h.b16 %v2339
    %v2679 = vunpack.c.l.b16 %v2340
    %v2680 = vunpack.c.h.b16 %v2340
    %v2681 = vunpack.c.l.b16 %v2341
    %v2682 = vunpack.c.h.b16 %v2341
    %v2683 = vunpack.c.l.b16 %v2342
    %v2684 = vunpack.c.h.b16 %v2342
    %v2685 = vunpack.c.l.b16 %v2343
    %v2686 = vunpack.c.h.b16 %v2343
    %v2687 = vunpack.c.l.b16 %v2344
    %v2688 = vunpack.c.h.b16 %v2344
    %v2689 = vunpack.c.l.b16 %v2345
    %v2690 = vunpack.c.h.b16 %v2345
    %v2691 = vunpack.c.l.b16 %v2346
    %v2692 = vunpack.c.h.b16 %v2346
    %v2693 = vunpack.c.l.b16 %v2347
    %v2694 = vunpack.c.h.b16 %v2347
    %v2695 = vunpack.c.l.b16 %v2348
    %v2696 = vunpack.c.h.b16 %v2348
    %v2697 = vunpack.c.l.b16 %v2349
    %v2698 = vunpack.c.h.b16 %v2349
    %v2699 = vunpack.c.l.b16 %v2350
    %v2700 = vunpack.c.h.b16 %v2350
    %v2701 = vunpack.c.l.b16 %v2351
    %v2702 = vunpack.c.h.b16 %v2351
    %v2703 = vunpack.c.l.b16 %v2352
    %v2704 = vunpack.c.h.b16 %v2352
    %v2705 = vunpack.c.l.b16 %v2353
    %v2706 = vunpack.c.h.b16 %v2353
    %v2707 = vunpack.c.l.b16 %v2354
    %v2708 = vunpack.c.h.b16 %v2354
    %v2709 = vunpack.c.l.b16 %v2355
    %v2710 = vunpack.c.h.b16 %v2355
    %v2711 = vunpack.c.l.b16 %v2356
    %v2712 = vunpack.c.h.b16 %v2356
    %v2713 = vunpack.c.l.b16 %v2357
    %v2714 = vunpack.c.h.b16 %v2357
    %v2715 = vunpack.c.l.b16 %v2358
    %v2716 = vunpack.c.h.b16 %v2358
    %v2717 = vunpack.c.l.b16 %v2359
    %v2718 = vunpack.c.h.b16 %v2359
    %v2719 = vunpack.c.l.b16 %v2360
    %v2720 = vunpack.c.h.b16 %v2360
    %v2721 = vunpack.c.l.b16 %v2361
    %v2722 = vunpack.c.h.b16 %v2361
    %v2723 = vunpack.c.l.b16 %v2362
    %v2724 = vunpack.c.h.b16 %v2362
    %v2725 = vunpack.c.l.b16 %v2363
    %v2726 = vunpack.c.h.b16 %v2363
    %v2727 = vunpack.c.l.b16 %v2364
    %v2728 = vunpack.c.h.b16 %v2364
    %v2729 = vunpack.c.l.b16 %v2365
    %v2730 = vunpack.c.h.b16 %v2365
    %v2731 = vunpack.c.l.b16 %v2366
    %v2732 = vunpack.c.h.b16 %v2366
    %v2733 = vunpack.c.l.b16 %v2367
    %v2734 = vunpack.c.h.b16 %v2367
    %v2735 = vunpack.c.l.b16 %v2368
    %v2736 = vunpack.c.h.b16 %v2368
    %v2737 = vunpack.c.l.b16 %v2369
    %v2738 = vunpack.c.h.b16 %v2369
    %v2739 = vunpack.c.l.b16 %v2370
    %v2740 = vunpack.c.h.b16 %v2370
    %v2741 = vunpack.c.l.b16 %v2371
    %v2742 = vunpack.c.h.b16 %v2371
    %v2743 = vunpack.c.l.b16 %v2372
    %v2744 = vunpack.c.h.b16 %v2372
    %v2745 = vunpack.c.l.b16 %v2373
    %v2746 = vunpack.c.h.b16 %v2373
    %v2747 = vunpack.c.l.b16 %v2374
    %v2748 = vunpack.c.h.b16 %v2374
    %v2749 = vunpack.c.l.b16 %v2375
    %v2750 = vunpack.c.h.b16 %v2375
    %v2751 = vunpack.c.l.b16 %v2376
    %v2752 = vunpack.c.h.b16 %v2376
    %v2753 = vunpack.c.l.b16 %v2377
    %v2754 = vunpack.c.h.b16 %v2377
    %v2755 = vunpack.c.l.b16 %v2378
    %v2756 = vunpack.c.h.b16 %v2378
    %v2757 = vunpack.c.l.b16 %v2379
    %v2758 = vunpack.c.h.b16 %v2379
    %v2759 = vunpack.c.l.b16 %v2380
    %v2760 = vunpack.c.h.b16 %v2380
    %v2761 = vunpack.c.l.b16 %v2381
    %v2762 = vunpack.c.h.b16 %v2381
    %v2763 = vunpack.c.l.b16 %v2382
    %v2764 = vunpack.c.h.b16 %v2382
    %v2765 = vunpack.c.l.b16 %v2383
    %v2766 = vunpack.c.h.b16 %v2383
    %v2767 = vunpack.c.l.b16 %v2384
    %v2768 = vunpack.c.h.b16 %v2384
    %v2769 = vunpack.c.l.b16 %v2385
    %v2770 = vunpack.c.h.b16 %v2385
    %v2771 = vunpack.c.l.b16 %v2386
    %v2772 = vunpack.c.h.b16 %v2386
    %v2773 = vunpack.c.l.b16 %v2387
    %v2774 = vunpack.c.h.b16 %v2387
    %v2775 = vunpack.c.l.b16 %v2388
    %v2776 = vunpack.c.h.b16 %v2388
    %v2777 = vunpack.c.l.b16 %v2389
    %v2778 = vunpack.c.h.b16 %v2389
    %v2779 = vunpack.c.l.b16 %v2390
    %v2780 = vunpack.c.h.b16 %v2390
    %v2781 = vunpack.c.l.b16 %v2391
    %v2782 = vunpack.c.h.b16 %v2391
    %v2783 = vunpack.c.l.b16 %v2392
    %v2784 = vunpack.c.h.b16 %v2392
    %v2785 = vunpack.c.l.b16 %v2393
    %v2786 = vunpack.c.h.b16 %v2393
    %v2787 = vunpack.c.l.b16 %v2394
    %v2788 = vunpack.c.h.b16 %v2394
    %v2789 = vunpack.c.l.b16 %v2395
    %v2790 = vunpack.c.h.b16 %v2395
    %v2791 = vunpack.c.l.b16 %v2396
    %v2792 = vunpack.c.h.b16 %v2396
    %v2793 = vunpack.c.l.b16 %v2397
    %v2794 = vunpack.c.h.b16 %v2397
    %v2795 = vunpack.c.l.b16 %v2398
    %v2796 = vunpack.c.h.b16 %v2398
    %v2797 = vunpack.c.l.b16 %v2399
    %v2798 = vunpack.c.h.b16 %v2399
    %v2799 = vunpack.c.l.b16 %v2400
    %v2800 = vunpack.c.h.b16 %v2400
    %v2801 = vunpack.c.l.b16 %v2401
    %v2802 = vunpack.c.h.b16 %v2401
    %v2803 = vunpack.c.l.b16 %v2402
    %v2804 = vunpack.c.h.b16 %v2402
    %v2805 = vunpack.c.l.b16 %v2403
    %v2806 = vunpack.c.h.b16 %v2403
    %v2807 = vunpack.c.l.b16 %v2404
    %v2808 = vunpack.c.h.b16 %v2404
    %v2809 = vunpack.c.l.b16 %v2405
    %v2810 = vunpack.c.h.b16 %v2405
    %v2811 = vunpack.c.l.b16 %v2406
    %v2812 = vunpack.c.h.b16 %v2406
    %v2813 = vpack.c.b16 %v2561, %v2557
    %v2814 = vpack.c.b16 %v2562, %v2558
    %v2815 = vpack.c.b16 %v2563, %v2559
    %v2816 = vpack.c.b16 %v2564, %v2560
    %v2817 = vpack.c.b16 %v2569, %v2565
    %v2818 = vpack.c.b16 %v2570, %v2566
    %v2819 = vpack.c.b16 %v2571, %v2567
    %v2820 = vpack.c.b16 %v2572, %v2568
    %v2821 = vpack.c.b16 %v2577, %v2573
    %v2822 = vpack.c.b16 %v2578, %v2574
    %v2823 = vpack.c.b16 %v2579, %v2575
    %v2824 = vpack.c.b16 %v2580, %v2576
    %v2825 = vpack.c.b16 %v2585, %v2581
    %v2826 = vpack.c.b16 %v2586, %v2582
    %v2827 = vpack.c.b16 %v2587, %v2583
    %v2828 = vpack.c.b16 %v2588, %v2584
    %v2829 = vpack.c.b16 %v2593, %v2589
    %v2830 = vpack.c.b16 %v2594, %v2590
    %v2831 = vpack.c.b16 %v2595, %v2591
    %v2832 = vpack.c.b16 %v2596, %v2592
    %v2833 = vpack.c.b16 %v2601, %v2597
    %v2834 = vpack.c.b16 %v2602, %v2598
    %v2835 = vpack.c.b16 %v2603, %v2599
    %v2836 = vpack.c.b16 %v2604, %v2600
    %v2837 = vpack.c.b16 %v2609, %v2605
    %v2838 = vpack.c.b16 %v2610, %v2606
    %v2839 = vpack.c.b16 %v2611, %v2607
    %v2840 = vpack.c.b16 %v2612, %v2608
    %v2841 = vpack.c.b16 %v2617, %v2613
    %v2842 = vpack.c.b16 %v2618, %v2614
    %v2843 = vpack.c.b16 %v2619, %v2615
    %v2844 = vpack.c.b16 %v2620, %v2616
    %v2845 = vpack.c.b16 %v2625, %v2621
    %v2846 = vpack.c.b16 %v2626, %v2622
    %v2847 = vpack.c.b16 %v2627, %v2623
    %v2848 = vpack.c.b16 %v2628, %v2624
    %v2849 = vpack.c.b16 %v2633, %v2629
    %v2850 = vpack.c.b16 %v2634, %v2630
    %v2851 = vpack.c.b16 %v2635, %v2631
    %v2852 = vpack.c.b16 %v2636, %v2632
    %v2853 = vpack.c.b16 %v2641, %v2637
    %v2854 = vpack.c.b16 %v2642, %v2638
    %v2855 = vpack.c.b16 %v2643, %v2639
    %v2856 = vpack.c.b16 %v2644, %v2640
    %v2857 = vpack.c.b16 %v2649, %v2645
    %v2858 = vpack.c.b16 %v2650, %v2646
    %v2859 = vpack.c.b16 %v2651, %v2647
    %v2860 = vpack.c.b16 %v2652, %v2648
    %v2861 = vpack.c.b16 %v2657, %v2653
    %v2862 = vpack.c.b16 %v2658, %v2654
    %v2863 = vpack.c.b16 %v2659, %v2655
    %v2864 = vpack.c.b16 %v2660, %v2656
    %v2865 = vpack.c.b16 %v2665, %v2661
    %v2866 = vpack.c.b16 %v2666, %v2662
    %v2867 = vpack.c.b16 %v2667, %v2663
    %v2868 = vpack.c.b16 %v2668, %v2664
    %v2869 = vpack.c.b16 %v2673, %v2669
    %v2870 = vpack.c.b16 %v2674, %v2670
    %v2871 = vpack.c.b16 %v2675, %v2671
    %v2872 = vpack.c.b16 %v2676, %v2672
    %v2873 = vpack.c.b16 %v2681, %v2677
    %v2874 = vpack.c.b16 %v2682, %v2678
    %v2875 = vpack.c.b16 %v2683, %v2679
    %v2876 = vpack.c.b16 %v2684, %v2680
    %v2877 = vpack.c.b16 %v2689, %v2685
    %v2878 = vpack.c.b16 %v2690, %v2686
    %v2879 = vpack.c.b16 %v2691, %v2687
    %v2880 = vpack.c.b16 %v2692, %v2688
    %v2881 = vpack.c.b16 %v2697, %v2693
    %v2882 = vpack.c.b16 %v2698, %v2694
    %v2883 = vpack.c.b16 %v2699, %v2695
    %v2884 = vpack.c.b16 %v2700, %v2696
    %v2885 = vpack.c.b16 %v2705, %v2701
    %v2886 = vpack.c.b16 %v2706, %v2702
    %v2887 = vpack.c.b16 %v2707, %v2703
    %v2888 = vpack.c.b16 %v2708, %v2704
    %v2889 = vpack.c.b16 %v2713, %v2709
    %v2890 = vpack.c.b16 %v2714, %v2710
    %v2891 = vpack.c.b16 %v2715, %v2711
    %v2892 = vpack.c.b16 %v2716, %v2712
    %v2893 = vpack.c.b16 %v2721, %v2717
    %v2894 = vpack.c.b16 %v2722, %v2718
    %v2895 = vpack.c.b16 %v2723, %v2719
    %v2896 = vpack.c.b16 %v2724, %v2720
    %v2897 = vpack.c.b16 %v2729, %v2725
    %v2898 = vpack.c.b16 %v2730, %v2726
    %v2899 = vpack.c.b16 %v2731, %v2727
    %v2900 = vpack.c.b16 %v2732, %v2728
    %v2901 = vpack.c.b16 %v2737, %v2733
    %v2902 = vpack.c.b16 %v2738, %v2734
    %v2903 = vpack.c.b16 %v2739, %v2735
    %v2904 = vpack.c.b16 %v2740, %v2736
    %v2905 = vpack.c.b16 %v2745, %v2741
    %v2906 = vpack.c.b16 %v2746, %v2742
    %v2907 = vpack.c.b16 %v2747, %v2743
    %v2908 = vpack.c.b16 %v2748, %v2744
    %v2909 = vpack.c.b16 %v2753, %v2749
    %v2910 = vpack.c.b16 %v2754, %v2750
    %v2911 = vpack.c.b16 %v2755, %v2751
    %v2912 = vpack.c.b16 %v2756, %v2752
    %v2913 = vpack.c.b16 %v2761, %v2757
    %v2914 = vpack.c.b16 %v2762, %v2758
    %v2915 = vpack.c.b16 %v2763, %v2759
    %v2916 = vpack.c.b16 %v2764, %v2760
    %v2917 = vpack.c.b16 %v2769, %v2765
    %v2918 = vpack.c.b16 %v2770, %v2766
    %v2919 = vpack.c.b16 %v2771, %v2767
    %v2920 = vpack.c.b16 %v2772, %v2768
    %v2921 = vpack.c.b16 %v2777, %v2773
    %v2922 = vpack.c.b16 %v2778, %v2774
    %v2923 = vpack.c.b16 %v2779, %v2775
    %v2924 = vpack.c.b16 %v2780, %v2776
    %v2925 = vpack.c.b16 %v2785, %v2781
    %v2926 = vpack.c.b16 %v2786, %v2782
    %v2927 = vpack.c.b16 %v2787, %v2783
    %v2928 = vpack.c.b16 %v2788, %v2784
    %v2929 = vpack.c.b16 %v2793, %v2789
    %v2930 = vpack.c.b16 %v2794, %v2790
    %v2931 = vpack.c.b16 %v2795, %v2791
    %v2932 = vpack.c.b16 %v2796, %v2792
    %v2933 = vpack.c.b16 %v2801, %v2797
    %v2934 = vpack.c.b16 %v2802, %v2798
    %v2935 = vpack.c.b16 %v2803, %v2799
    %v2936 = vpack.c.b16 %v2804, %v2800
    %v2937 = vpack.c.b16 %v2809, %v2805
    %v2938 = vpack.c.b16 %v2810, %v2806
    %v2939 = vpack.c.b16 %v2811, %v2807
    %v2940 = vpack.c.b16 %v2812, %v2808
    %3069 = vmatprep.subr.bf16.mxu0 %v2842
    %3070 = vmatpush1.bf16.msra.mxu0 %v2841
    %3071 = vmatprep.subr.bf16.mxu0 %v2838
    %3072 = vmatpush1.bf16.msra.mxu0 %v2837
    %3073 = vmatprep.subr.bf16.mxu0 %v2834
    %3074 = vmatpush1.bf16.msra.mxu0 %v2833
    %3075 = vmatprep.subr.bf16.mxu0 %v2830
    %3076 = vmatpush1.bf16.msra.mxu0 %v2829
    %3077 = vmatprep.subr.bf16.mxu0 %v2826
    %3078 = vmatpush1.bf16.msra.mxu0 %v2825
    %3079 = vmatprep.subr.bf16.mxu0 %v2822
    %3080 = vmatpush1.bf16.msra.mxu0 %v2821
    %3081 = vmatprep.subr.bf16.mxu0 %v2818
    %3082 = vmatpush1.bf16.msra.mxu0 %v2817
    %3083 = vmatprep.subr.bf16.mxu0 %v2814
    %3084 = vmatpush1.bf16.msra.mxu0 %v2813
    %3085 = vmatprep.subr.bf16.mxu0 %v2874
    %3086 = vmatpush2.bf16.msra.mxu0 %v2873
    %3087 = vmatprep.subr.bf16.mxu0 %v2870
    %3088 = vmatpush2.bf16.msra.mxu0 %v2869
    %3089 = vmatprep.subr.bf16.mxu0 %v2866
    %3090 = vmatpush2.bf16.msra.mxu0 %v2865
    %3091 = vmatprep.subr.bf16.mxu0 %v2862
    %3092 = vmatpush2.bf16.msra.mxu0 %v2861
    %3093 = vmatprep.subr.bf16.mxu0 %v2858
    %3094 = vmatpush2.bf16.msra.mxu0 %v2857
    %3095 = vmatprep.subr.bf16.mxu0 %v2854
    %3096 = vmatpush2.bf16.msra.mxu0 %v2853
    %3097 = vmatprep.subr.bf16.mxu0 %v2850
    %3098 = vmatpush2.bf16.msra.mxu0 %v2849
    %3099 = vmatprep.subr.bf16.mxu0 %v2846
    %3100 = vmatpush2.bf16.msra.mxu0 %v2845
    %3101 = vmatprep.mubr.bf16.mxu0 %v2276
    %3102 = vmatmul.mubr.bf16.gmra.mxu0 %v2275
    %v3103 = vpop.f32.mrf.mxu0
    %v3104 = vadd.f32 %v2412, %v3103
    %v3105 = vpop.f32.mrf.mxu0
    %v3106 = vadd.f32 %v2416, %v3105
    %v3107 = vpop.f32.mrf.mxu0
    %v3108 = vadd.f32 %v2412, %v3107
    %v3109 = vpop.f32.mrf.mxu0
    %v3110 = vadd.f32 %v2416, %v3109
    %3111 = vdwg.mxu0
    %3112 = vmatprep.subr.bf16.mxu0 %v2906
    %3113 = vmatpush1.bf16.msra.mxu0 %v2905
    %3114 = vmatprep.subr.bf16.mxu0 %v2902
    %3115 = vmatpush1.bf16.msra.mxu0 %v2901
    %3116 = vmatprep.subr.bf16.mxu0 %v2898
    %3117 = vmatpush1.bf16.msra.mxu0 %v2897
    %3118 = vmatprep.subr.bf16.mxu0 %v2894
    %3119 = vmatpush1.bf16.msra.mxu0 %v2893
    %3120 = vmatprep.subr.bf16.mxu0 %v2890
    %3121 = vmatpush1.bf16.msra.mxu0 %v2889
    %3122 = vmatprep.subr.bf16.mxu0 %v2886
    %3123 = vmatpush1.bf16.msra.mxu0 %v2885
    %3124 = vmatprep.subr.bf16.mxu0 %v2882
    %3125 = vmatpush1.bf16.msra.mxu0 %v2881
    %3126 = vmatprep.subr.bf16.mxu0 %v2878
    %3127 = vmatpush1.bf16.msra.mxu0 %v2877
    %3128 = vmatprep.subr.bf16.mxu0 %v2938
    %3129 = vmatpush2.bf16.msra.mxu0 %v2937
    %3130 = vmatprep.subr.bf16.mxu0 %v2934
    %3131 = vmatpush2.bf16.msra.mxu0 %v2933
    %3132 = vmatprep.subr.bf16.mxu0 %v2930
    %3133 = vmatpush2.bf16.msra.mxu0 %v2929
    %3134 = vmatprep.subr.bf16.mxu0 %v2926
    %3135 = vmatpush2.bf16.msra.mxu0 %v2925
    %3136 = vmatprep.subr.bf16.mxu0 %v2922
    %3137 = vmatpush2.bf16.msra.mxu0 %v2921
    %3138 = vmatprep.subr.bf16.mxu0 %v2918
    %3139 = vmatpush2.bf16.msra.mxu0 %v2917
    %3140 = vmatprep.subr.bf16.mxu0 %v2914
    %3141 = vmatpush2.bf16.msra.mxu0 %v2913
    %3142 = vmatprep.subr.bf16.mxu0 %v2910
    %3143 = vmatpush2.bf16.msra.mxu0 %v2909
    %3144 = vmatprep.mubr.bf16.mxu0 %v2278
    %3145 = vmatmul.mubr.bf16.gmra.mxu0 %v2277
    %v3146 = vpop.f32.mrf.mxu0
    %v3147 = vadd.f32 %v3104, %v3146
    %v3148 = vpop.f32.mrf.mxu0
    %v3149 = vadd.f32 %v3106, %v3148
    %v3150 = vpop.f32.mrf.mxu0
    %v3151 = vadd.f32 %v3108, %v3150
    %v3152 = vpop.f32.mrf.mxu0
    %v3153 = vadd.f32 %v3110, %v3152
    %3154 = vdwg.mxu0
    %3155 = vmatprep.subr.bf16.mxu0 %v2844
    %3156 = vmatpush1.bf16.msra.mxu0 %v2843
    %3157 = vmatprep.subr.bf16.mxu0 %v2840
    %3158 = vmatpush1.bf16.msra.mxu0 %v2839
    %3159 = vmatprep.subr.bf16.mxu0 %v2836
    %3160 = vmatpush1.bf16.msra.mxu0 %v2835
    %3161 = vmatprep.subr.bf16.mxu0 %v2832
    %3162 = vmatpush1.bf16.msra.mxu0 %v2831
    %3163 = vmatprep.subr.bf16.mxu0 %v2828
    %3164 = vmatpush1.bf16.msra.mxu0 %v2827
    %3165 = vmatprep.subr.bf16.mxu0 %v2824
    %3166 = vmatpush1.bf16.msra.mxu0 %v2823
    %3167 = vmatprep.subr.bf16.mxu0 %v2820
    %3168 = vmatpush1.bf16.msra.mxu0 %v2819
    %3169 = vmatprep.subr.bf16.mxu0 %v2816
    %3170 = vmatpush1.bf16.msra.mxu0 %v2815
    %3171 = vmatprep.subr.bf16.mxu0 %v2876
    %3172 = vmatpush2.bf16.msra.mxu0 %v2875
    %3173 = vmatprep.subr.bf16.mxu0 %v2872
    %3174 = vmatpush2.bf16.msra.mxu0 %v2871
    %3175 = vmatprep.subr.bf16.mxu0 %v2868
    %3176 = vmatpush2.bf16.msra.mxu0 %v2867
    %3177 = vmatprep.subr.bf16.mxu0 %v2864
    %3178 = vmatpush2.bf16.msra.mxu0 %v2863
    %3179 = vmatprep.subr.bf16.mxu0 %v2860
    %3180 = vmatpush2.bf16.msra.mxu0 %v2859
    %3181 = vmatprep.subr.bf16.mxu0 %v2856
    %3182 = vmatpush2.bf16.msra.mxu0 %v2855
    %3183 = vmatprep.subr.bf16.mxu0 %v2852
    %3184 = vmatpush2.bf16.msra.mxu0 %v2851
    %3185 = vmatprep.subr.bf16.mxu0 %v2848
    %3186 = vmatpush2.bf16.msra.mxu0 %v2847
    %3187 = vmatprep.mubr.bf16.mxu0 %v2276
    %3188 = vmatmul.mubr.bf16.gmra.mxu0 %v2275
    %v3189 = vpop.f32.mrf.mxu0
    %v3190 = vadd.f32 %v2420, %v3189
    %v3191 = vpop.f32.mrf.mxu0
    %v3192 = vadd.f32 %v2424, %v3191
    %v3193 = vpop.f32.mrf.mxu0
    %v3194 = vadd.f32 %v2420, %v3193
    %v3195 = vpop.f32.mrf.mxu0
    %v3196 = vadd.f32 %v2424, %v3195
    %3197 = vdwg.mxu0
    %3198 = vmatprep.subr.bf16.mxu0 %v2908
    %3199 = vmatpush1.bf16.msra.mxu0 %v2907
    %3200 = vmatprep.subr.bf16.mxu0 %v2904
    %3201 = vmatpush1.bf16.msra.mxu0 %v2903
    %3202 = vmatprep.subr.bf16.mxu0 %v2900
    %3203 = vmatpush1.bf16.msra.mxu0 %v2899
    %3204 = vmatprep.subr.bf16.mxu0 %v2896
    %3205 = vmatpush1.bf16.msra.mxu0 %v2895
    %3206 = vmatprep.subr.bf16.mxu0 %v2892
    %3207 = vmatpush1.bf16.msra.mxu0 %v2891
    %3208 = vmatprep.subr.bf16.mxu0 %v2888
    %3209 = vmatpush1.bf16.msra.mxu0 %v2887
    %3210 = vmatprep.subr.bf16.mxu0 %v2884
    %3211 = vmatpush1.bf16.msra.mxu0 %v2883
    %3212 = vmatprep.subr.bf16.mxu0 %v2880
    %3213 = vmatpush1.bf16.msra.mxu0 %v2879
    %3214 = vmatprep.subr.bf16.mxu0 %v2940
    %3215 = vmatpush2.bf16.msra.mxu0 %v2939
    %3216 = vmatprep.subr.bf16.mxu0 %v2936
    %3217 = vmatpush2.bf16.msra.mxu0 %v2935
    %3218 = vmatprep.subr.bf16.mxu0 %v2932
    %3219 = vmatpush2.bf16.msra.mxu0 %v2931
    %3220 = vmatprep.subr.bf16.mxu0 %v2928
    %3221 = vmatpush2.bf16.msra.mxu0 %v2927
    %3222 = vmatprep.subr.bf16.mxu0 %v2924
    %3223 = vmatpush2.bf16.msra.mxu0 %v2923
    %3224 = vmatprep.subr.bf16.mxu0 %v2920
    %3225 = vmatpush2.bf16.msra.mxu0 %v2919
    %3226 = vmatprep.subr.bf16.mxu0 %v2916
    %3227 = vmatpush2.bf16.msra.mxu0 %v2915
    %3228 = vmatprep.subr.bf16.mxu0 %v2912
    %3229 = vmatpush2.bf16.msra.mxu0 %v2911
    %3230 = vmatprep.mubr.bf16.mxu0 %v2278
    %3231 = vmatmul.mubr.bf16.gmra.mxu0 %v2277
    %v3232 = vpop.f32.mrf.mxu0
    %v3233 = vadd.f32 %v3190, %v3232
    %v3234 = vpop.f32.mrf.mxu0
    %v3235 = vadd.f32 %v3192, %v3234
    %v3236 = vpop.f32.mrf.mxu0
    %v3237 = vadd.f32 %v3194, %v3236
    %v3238 = vpop.f32.mrf.mxu0
    %v3239 = vadd.f32 %v3196, %v3238
    %3240 = vdwg.mxu0
    %v3241 = vld [vmem:[%s11] sm:$0xf]
    %v3242 = vld [vmem:[#allocation14] sm:$0xf]
    %v3243 = vadd.f32 %v3147, %v3149
    %v3244 = vadd.f32 %v3243, %v3233
    %v3245 = vadd.f32 %v3244, %v3235
    %3246 = vadd.xlane.f32.xlu0 %v3245
    %v3247 = vpop.xlane.xlu0 %3246
    %v3248 = vadd.f32 %v3151, %v3153
    %v3249 = vadd.f32 %v3248, %v3237
    %v3250 = vadd.f32 %v3249, %v3239
    %3251 = vadd.xlane.f32.xlu0 %v3250
    %v3252 = vpop.xlane.xlu0 %3251
    %v3253 = vmul.f32 %v3247, %v2166
    %v3254 = vmul.f32 %v3252, %v2166
    %v3255 = vsub.f32 %v3147, %v3253
    %v3256 = vsub.f32 %v3149, %v3253
    %v3257 = vsub.f32 %v3233, %v3253
    %v3258 = vsub.f32 %v3235, %v3253
    %v3259 = vsub.f32 %v3151, %v3254
    %v3260 = vsub.f32 %v3153, %v3254
    %v3261 = vsub.f32 %v3237, %v3254
    %v3262 = vsub.f32 %v3239, %v3254
    %v3263 = vmul.f32 %v3255, %v3255
    %v3264 = vmul.f32 %v3256, %v3256
    %v3265 = vmul.f32 %v3257, %v3257
    %v3266 = vmul.f32 %v3258, %v3258
    %v3267 = vmul.f32 %v3259, %v3259
    %v3268 = vmul.f32 %v3260, %v3260
    %v3269 = vmul.f32 %v3261, %v3261
    %v3270 = vmul.f32 %v3262, %v3262
    %v3271 = vadd.f32 %v3263, %v3264
    %v3272 = vadd.f32 %v3271, %v3265
    %v3273 = vadd.f32 %v3272, %v3266
    %3274 = vadd.xlane.f32.xlu0 %v3273
    %v3275 = vpop.xlane.xlu0 %3274
    %v3276 = vadd.f32 %v3267, %v3268
    %v3277 = vadd.f32 %v3276, %v3269
    %v3278 = vadd.f32 %v3277, %v3270
    %3279 = vadd.xlane.f32.xlu0 %v3278
    %v3280 = vpop.xlane.xlu0 %3279
    %v3281 = vmul.f32 %v3275, %v2166
    %v3282 = vmul.f32 %v3280, %v2166
    %v3283 = vadd.f32 %v3281, 1e-05
    %v3284 = vadd.f32 %v3282, 1e-05
    %v3285 = vrsqrt.pop %v3283
    %v3286 = vrsqrt.pop %v3284
    %v3287 = vmul.f32 %v3255, %v3285
    %v3288 = vmul.f32 %v3256, %v3285
    %v3289 = vmul.f32 %v3257, %v3285
    %v3290 = vmul.f32 %v3258, %v3285
    %v3291 = vmul.f32 %v3259, %v3286
    %v3292 = vmul.f32 %v3260, %v3286
    %v3293 = vmul.f32 %v3261, %v3286
    %v3294 = vmul.f32 %v3262, %v3286
    %v3296 = vlaneseq
    %v3297 = vshrl.u32 %v3296, 7
    %v3298 = vsub.s32 0, %v3297
    %v3299 = vrot.slane %v3241, %v3298
    %v3300 = vlaneseq
    %v3301 = vshrl.u32 %v3300, 7
    %v3302 = vsub.s32 1, %v3301
    %v3303 = vrot.slane %v3241, %v3302
    %v3304 = vlaneseq
    %v3305 = vshrl.u32 %v3304, 7
    %v3306 = vsub.s32 2, %v3305
    %v3307 = vrot.slane %v3241, %v3306
    %v3308 = vlaneseq
    %v3309 = vshrl.u32 %v3308, 7
    %v3310 = vsub.s32 3, %v3309
    %v3311 = vrot.slane %v3241, %v3310
    %v3316 = vmul.f32 %v3287, %v3299
    %v3317 = vmul.f32 %v3288, %v3303
    %v3318 = vmul.f32 %v3289, %v3307
    %v3319 = vmul.f32 %v3290, %v3311
    %v3320 = vmul.f32 %v3291, %v3299
    %v3321 = vmul.f32 %v3292, %v3303
    %v3322 = vmul.f32 %v3293, %v3307
    %v3323 = vmul.f32 %v3294, %v3311
    %v3325 = vlaneseq
    %v3326 = vshrl.u32 %v3325, 7
    %v3327 = vsub.s32 0, %v3326
    %v3328 = vrot.slane %v3242, %v3327
    %v3329 = vlaneseq
    %v3330 = vshrl.u32 %v3329, 7
    %v3331 = vsub.s32 1, %v3330
    %v3332 = vrot.slane %v3242, %v3331
    %v3333 = vlaneseq
    %v3334 = vshrl.u32 %v3333, 7
    %v3335 = vsub.s32 2, %v3334
    %v3336 = vrot.slane %v3242, %v3335
    %v3337 = vlaneseq
    %v3338 = vshrl.u32 %v3337, 7
    %v3339 = vsub.s32 3, %v3338
    %v3340 = vrot.slane %v3242, %v3339
    %v3345 = vadd.f32 %v3316, %v3328
    %v3346 = vadd.f32 %v3317, %v3332
    %v3347 = vadd.f32 %v3318, %v3336
    %v3348 = vadd.f32 %v3319, %v3340
    %v3349 = vadd.f32 %v3320, %v3328
    %v3350 = vadd.f32 %v3321, %v3332
    %v3351 = vadd.f32 %v3322, %v3336
    %v3352 = vadd.f32 %v3323, %v3340
    %v3353 = vmax.f32 %v3345, 0.0
    %v3354 = vmax.f32 %v3346, 0.0
    %v3355 = vmax.f32 %v3347, 0.0
    %v3356 = vmax.f32 %v3348, 0.0
    %v3357 = vmax.f32 %v3349, 0.0
    %v3358 = vmax.f32 %v3350, 0.0
    %v3359 = vmax.f32 %v3351, 0.0
    %v3360 = vmax.f32 %v3352, 0.0
    %v3361 = vpack.c.bf16 %v3357, %v3353
    %v3362 = vpack.c.bf16 %v3358, %v3354
    %v3363 = vpack.c.bf16 %v3359, %v3355
    %v3364 = vpack.c.bf16 %v3360, %v3356
    %v3365 = vld [vmem:[#allocation16] sm:$0xff]
    %v3366 = vld [vmem:[#allocation16 + $0x8] sm:$0xff]
    %v3367 = vld [vmem:[#allocation16 + $0x10] sm:$0xff]
    %v3368 = vld [vmem:[#allocation16 + $0x18] sm:$0xff]
    %v3369 = vld [vmem:[#allocation16 + $0x20] sm:$0xff]
    %v3370 = vld [vmem:[#allocation16 + $0x28] sm:$0xff]
    %v3371 = vld [vmem:[#allocation16 + $0x30] sm:$0xff]
    %v3372 = vld [vmem:[#allocation16 + $0x38] sm:$0xff]
    %v3373 = vld [vmem:[#allocation16 + $0x40] sm:$0xff]
    %v3374 = vld [vmem:[#allocation16 + $0x48] sm:$0xff]
    %v3375 = vld [vmem:[#allocation16 + $0x50] sm:$0xff]
    %v3376 = vld [vmem:[#allocation16 + $0x58] sm:$0xff]
    %v3377 = vld [vmem:[#allocation16 + $0x60] sm:$0xff]
    %v3378 = vld [vmem:[#allocation16 + $0x68] sm:$0xff]
    %v3379 = vld [vmem:[#allocation16 + $0x70] sm:$0xff]
    %v3380 = vld [vmem:[#allocation16 + $0x78] sm:$0xff]
    %v3381 = vld [vmem:[#allocation16 + $0x80] sm:$0xff]
    %v3382 = vld [vmem:[#allocation16 + $0x88] sm:$0xff]
    %v3383 = vld [vmem:[#allocation16 + $0x90] sm:$0xff]
    %v3384 = vld [vmem:[#allocation16 + $0x98] sm:$0xff]
    %v3385 = vld [vmem:[#allocation16 + $0xa0] sm:$0xff]
    %v3386 = vld [vmem:[#allocation16 + $0xa8] sm:$0xff]
    %v3387 = vld [vmem:[#allocation16 + $0xb0] sm:$0xff]
    %v3388 = vld [vmem:[#allocation16 + $0xb8] sm:$0xff]
    %v3389 = vld [vmem:[#allocation16 + $0xc0] sm:$0xff]
    %v3390 = vld [vmem:[#allocation16 + $0xc8] sm:$0xff]
    %v3391 = vld [vmem:[#allocation16 + $0xd0] sm:$0xff]
    %v3392 = vld [vmem:[#allocation16 + $0xd8] sm:$0xff]
    %v3393 = vld [vmem:[#allocation16 + $0xe0] sm:$0xff]
    %v3394 = vld [vmem:[#allocation16 + $0xe8] sm:$0xff]
    %v3395 = vld [vmem:[#allocation16 + $0xf0] sm:$0xff]
    %v3396 = vld [vmem:[#allocation16 + $0xf8] sm:$0xff]
    %v3397 = vld [vmem:[#allocation16 + $0x100] sm:$0xff]
    %v3398 = vld [vmem:[#allocation16 + $0x108] sm:$0xff]
    %v3399 = vld [vmem:[#allocation16 + $0x110] sm:$0xff]
    %v3400 = vld [vmem:[#allocation16 + $0x118] sm:$0xff]
    %v3401 = vld [vmem:[#allocation16 + $0x120] sm:$0xff]
    %v3402 = vld [vmem:[#allocation16 + $0x128] sm:$0xff]
    %v3403 = vld [vmem:[#allocation16 + $0x130] sm:$0xff]
    %v3404 = vld [vmem:[#allocation16 + $0x138] sm:$0xff]
    %v3405 = vld [vmem:[#allocation16 + $0x140] sm:$0xff]
    %v3406 = vld [vmem:[#allocation16 + $0x148] sm:$0xff]
    %v3407 = vld [vmem:[#allocation16 + $0x150] sm:$0xff]
    %v3408 = vld [vmem:[#allocation16 + $0x158] sm:$0xff]
    %v3409 = vld [vmem:[#allocation16 + $0x160] sm:$0xff]
    %v3410 = vld [vmem:[#allocation16 + $0x168] sm:$0xff]
    %v3411 = vld [vmem:[#allocation16 + $0x170] sm:$0xff]
    %v3412 = vld [vmem:[#allocation16 + $0x178] sm:$0xff]
    %v3413 = vld [vmem:[#allocation16 + $0x180] sm:$0xff]
    %v3414 = vld [vmem:[#allocation16 + $0x188] sm:$0xff]
    %v3415 = vld [vmem:[#allocation16 + $0x190] sm:$0xff]
    %v3416 = vld [vmem:[#allocation16 + $0x198] sm:$0xff]
    %v3417 = vld [vmem:[#allocation16 + $0x1a0] sm:$0xff]
    %v3418 = vld [vmem:[#allocation16 + $0x1a8] sm:$0xff]
    %v3419 = vld [vmem:[#allocation16 + $0x1b0] sm:$0xff]
    %v3420 = vld [vmem:[#allocation16 + $0x1b8] sm:$0xff]
    %v3421 = vld [vmem:[#allocation16 + $0x1c0] sm:$0xff]
    %v3422 = vld [vmem:[#allocation16 + $0x1c8] sm:$0xff]
    %v3423 = vld [vmem:[#allocation16 + $0x1d0] sm:$0xff]
    %v3424 = vld [vmem:[#allocation16 + $0x1d8] sm:$0xff]
    %v3425 = vld [vmem:[#allocation16 + $0x1e0] sm:$0xff]
    %v3426 = vld [vmem:[#allocation16 + $0x1e8] sm:$0xff]
    %v3427 = vld [vmem:[#allocation16 + $0x1f0] sm:$0xff]
    %v3428 = vld [vmem:[#allocation16 + $0x1f8] sm:$0xff]
    %v3429 = vld [vmem:[#allocation16 + $0x200] sm:$0xff]
    %v3430 = vld [vmem:[#allocation16 + $0x208] sm:$0xff]
    %v3431 = vld [vmem:[#allocation16 + $0x210] sm:$0xff]
    %v3432 = vld [vmem:[#allocation16 + $0x218] sm:$0xff]
    %v3433 = vld [vmem:[#allocation16 + $0x220] sm:$0xff]
    %v3434 = vld [vmem:[#allocation16 + $0x228] sm:$0xff]
    %v3435 = vld [vmem:[#allocation16 + $0x230] sm:$0xff]
    %v3436 = vld [vmem:[#allocation16 + $0x238] sm:$0xff]
    %v3437 = vld [vmem:[#allocation16 + $0x240] sm:$0xff]
    %v3438 = vld [vmem:[#allocation16 + $0x248] sm:$0xff]
    %v3439 = vld [vmem:[#allocation16 + $0x250] sm:$0xff]
    %v3440 = vld [vmem:[#allocation16 + $0x258] sm:$0xff]
    %v3441 = vld [vmem:[#allocation16 + $0x260] sm:$0xff]
    %v3442 = vld [vmem:[#allocation16 + $0x268] sm:$0xff]
    %v3443 = vld [vmem:[#allocation16 + $0x270] sm:$0xff]
    %v3444 = vld [vmem:[#allocation16 + $0x278] sm:$0xff]
    %v3445 = vld [vmem:[#allocation16 + $0x280] sm:$0xff]
    %v3446 = vld [vmem:[#allocation16 + $0x288] sm:$0xff]
    %v3447 = vld [vmem:[#allocation16 + $0x290] sm:$0xff]
    %v3448 = vld [vmem:[#allocation16 + $0x298] sm:$0xff]
    %v3449 = vld [vmem:[#allocation16 + $0x2a0] sm:$0xff]
    %v3450 = vld [vmem:[#allocation16 + $0x2a8] sm:$0xff]
    %v3451 = vld [vmem:[#allocation16 + $0x2b0] sm:$0xff]
    %v3452 = vld [vmem:[#allocation16 + $0x2b8] sm:$0xff]
    %v3453 = vld [vmem:[#allocation16 + $0x2c0] sm:$0xff]
    %v3454 = vld [vmem:[#allocation16 + $0x2c8] sm:$0xff]
    %v3455 = vld [vmem:[#allocation16 + $0x2d0] sm:$0xff]
    %v3456 = vld [vmem:[#allocation16 + $0x2d8] sm:$0xff]
    %v3457 = vld [vmem:[#allocation16 + $0x2e0] sm:$0xff]
    %v3458 = vld [vmem:[#allocation16 + $0x2e8] sm:$0xff]
    %v3459 = vld [vmem:[#allocation16 + $0x2f0] sm:$0xff]
    %v3460 = vld [vmem:[#allocation16 + $0x2f8] sm:$0xff]
    %v3461 = vld [vmem:[#allocation16 + $0x300] sm:$0xff]
    %v3462 = vld [vmem:[#allocation16 + $0x308] sm:$0xff]
    %v3463 = vld [vmem:[#allocation16 + $0x310] sm:$0xff]
    %v3464 = vld [vmem:[#allocation16 + $0x318] sm:$0xff]
    %v3465 = vld [vmem:[#allocation16 + $0x320] sm:$0xff]
    %v3466 = vld [vmem:[#allocation16 + $0x328] sm:$0xff]
    %v3467 = vld [vmem:[#allocation16 + $0x330] sm:$0xff]
    %v3468 = vld [vmem:[#allocation16 + $0x338] sm:$0xff]
    %v3469 = vld [vmem:[#allocation16 + $0x340] sm:$0xff]
    %v3470 = vld [vmem:[#allocation16 + $0x348] sm:$0xff]
    %v3471 = vld [vmem:[#allocation16 + $0x350] sm:$0xff]
    %v3472 = vld [vmem:[#allocation16 + $0x358] sm:$0xff]
    %v3473 = vld [vmem:[#allocation16 + $0x360] sm:$0xff]
    %v3474 = vld [vmem:[#allocation16 + $0x368] sm:$0xff]
    %v3475 = vld [vmem:[#allocation16 + $0x370] sm:$0xff]
    %v3476 = vld [vmem:[#allocation16 + $0x378] sm:$0xff]
    %v3477 = vld [vmem:[#allocation16 + $0x380] sm:$0xff]
    %v3478 = vld [vmem:[#allocation16 + $0x388] sm:$0xff]
    %v3479 = vld [vmem:[#allocation16 + $0x390] sm:$0xff]
    %v3480 = vld [vmem:[#allocation16 + $0x398] sm:$0xff]
    %v3481 = vld [vmem:[#allocation16 + $0x3a0] sm:$0xff]
    %v3482 = vld [vmem:[#allocation16 + $0x3a8] sm:$0xff]
    %v3483 = vld [vmem:[#allocation16 + $0x3b0] sm:$0xff]
    %v3484 = vld [vmem:[#allocation16 + $0x3b8] sm:$0xff]
    %v3485 = vld [vmem:[#allocation16 + $0x3c0] sm:$0xff]
    %v3486 = vld [vmem:[#allocation16 + $0x3c8] sm:$0xff]
    %v3487 = vld [vmem:[#allocation16 + $0x3d0] sm:$0xff]
    %v3488 = vld [vmem:[#allocation16 + $0x3d8] sm:$0xff]
    %v3489 = vld [vmem:[#allocation16 + $0x3e0] sm:$0xff]
    %v3490 = vld [vmem:[#allocation16 + $0x3e8] sm:$0xff]
    %v3491 = vld [vmem:[#allocation16 + $0x3f0] sm:$0xff]
    %v3492 = vld [vmem:[#allocation16 + $0x3f8] sm:$0xff]
    %v3493 = vld [vmem:[#allocation17] sm:$0xf]
    %v3495 = vlaneseq
    %v3496 = vshrl.u32 %v3495, 7
    %v3497 = vsub.s32 0, %v3496
    %v3498 = vrot.slane %v3493, %v3497
    %v3499 = vlaneseq
    %v3500 = vshrl.u32 %v3499, 7
    %v3501 = vsub.s32 1, %v3500
    %v3502 = vrot.slane %v3493, %v3501
    %v3503 = vlaneseq
    %v3504 = vshrl.u32 %v3503, 7
    %v3505 = vsub.s32 2, %v3504
    %v3506 = vrot.slane %v3493, %v3505
    %v3507 = vlaneseq
    %v3508 = vshrl.u32 %v3507, 7
    %v3509 = vsub.s32 3, %v3508
    %v3510 = vrot.slane %v3493, %v3509
    %v3643 = vunpack.c.l.b16 %v3365
    %v3644 = vunpack.c.h.b16 %v3365
    %v3645 = vunpack.c.l.b16 %v3366
    %v3646 = vunpack.c.h.b16 %v3366
    %v3647 = vunpack.c.l.b16 %v3367
    %v3648 = vunpack.c.h.b16 %v3367
    %v3649 = vunpack.c.l.b16 %v3368
    %v3650 = vunpack.c.h.b16 %v3368
    %v3651 = vunpack.c.l.b16 %v3369
    %v3652 = vunpack.c.h.b16 %v3369
    %v3653 = vunpack.c.l.b16 %v3370
    %v3654 = vunpack.c.h.b16 %v3370
    %v3655 = vunpack.c.l.b16 %v3371
    %v3656 = vunpack.c.h.b16 %v3371
    %v3657 = vunpack.c.l.b16 %v3372
    %v3658 = vunpack.c.h.b16 %v3372
    %v3659 = vunpack.c.l.b16 %v3373
    %v3660 = vunpack.c.h.b16 %v3373
    %v3661 = vunpack.c.l.b16 %v3374
    %v3662 = vunpack.c.h.b16 %v3374
    %v3663 = vunpack.c.l.b16 %v3375
    %v3664 = vunpack.c.h.b16 %v3375
    %v3665 = vunpack.c.l.b16 %v3376
    %v3666 = vunpack.c.h.b16 %v3376
    %v3667 = vunpack.c.l.b16 %v3377
    %v3668 = vunpack.c.h.b16 %v3377
    %v3669 = vunpack.c.l.b16 %v3378
    %v3670 = vunpack.c.h.b16 %v3378
    %v3671 = vunpack.c.l.b16 %v3379
    %v3672 = vunpack.c.h.b16 %v3379
    %v3673 = vunpack.c.l.b16 %v3380
    %v3674 = vunpack.c.h.b16 %v3380
    %v3675 = vunpack.c.l.b16 %v3381
    %v3676 = vunpack.c.h.b16 %v3381
    %v3677 = vunpack.c.l.b16 %v3382
    %v3678 = vunpack.c.h.b16 %v3382
    %v3679 = vunpack.c.l.b16 %v3383
    %v3680 = vunpack.c.h.b16 %v3383
    %v3681 = vunpack.c.l.b16 %v3384
    %v3682 = vunpack.c.h.b16 %v3384
    %v3683 = vunpack.c.l.b16 %v3385
    %v3684 = vunpack.c.h.b16 %v3385
    %v3685 = vunpack.c.l.b16 %v3386
    %v3686 = vunpack.c.h.b16 %v3386
    %v3687 = vunpack.c.l.b16 %v3387
    %v3688 = vunpack.c.h.b16 %v3387
    %v3689 = vunpack.c.l.b16 %v3388
    %v3690 = vunpack.c.h.b16 %v3388
    %v3691 = vunpack.c.l.b16 %v3389
    %v3692 = vunpack.c.h.b16 %v3389
    %v3693 = vunpack.c.l.b16 %v3390
    %v3694 = vunpack.c.h.b16 %v3390
    %v3695 = vunpack.c.l.b16 %v3391
    %v3696 = vunpack.c.h.b16 %v3391
    %v3697 = vunpack.c.l.b16 %v3392
    %v3698 = vunpack.c.h.b16 %v3392
    %v3699 = vunpack.c.l.b16 %v3393
    %v3700 = vunpack.c.h.b16 %v3393
    %v3701 = vunpack.c.l.b16 %v3394
    %v3702 = vunpack.c.h.b16 %v3394
    %v3703 = vunpack.c.l.b16 %v3395
    %v3704 = vunpack.c.h.b16 %v3395
    %v3705 = vunpack.c.l.b16 %v3396
    %v3706 = vunpack.c.h.b16 %v3396
    %v3707 = vunpack.c.l.b16 %v3397
    %v3708 = vunpack.c.h.b16 %v3397
    %v3709 = vunpack.c.l.b16 %v3398
    %v3710 = vunpack.c.h.b16 %v3398
    %v3711 = vunpack.c.l.b16 %v3399
    %v3712 = vunpack.c.h.b16 %v3399
    %v3713 = vunpack.c.l.b16 %v3400
    %v3714 = vunpack.c.h.b16 %v3400
    %v3715 = vunpack.c.l.b16 %v3401
    %v3716 = vunpack.c.h.b16 %v3401
    %v3717 = vunpack.c.l.b16 %v3402
    %v3718 = vunpack.c.h.b16 %v3402
    %v3719 = vunpack.c.l.b16 %v3403
    %v3720 = vunpack.c.h.b16 %v3403
    %v3721 = vunpack.c.l.b16 %v3404
    %v3722 = vunpack.c.h.b16 %v3404
    %v3723 = vunpack.c.l.b16 %v3405
    %v3724 = vunpack.c.h.b16 %v3405
    %v3725 = vunpack.c.l.b16 %v3406
    %v3726 = vunpack.c.h.b16 %v3406
    %v3727 = vunpack.c.l.b16 %v3407
    %v3728 = vunpack.c.h.b16 %v3407
    %v3729 = vunpack.c.l.b16 %v3408
    %v3730 = vunpack.c.h.b16 %v3408
    %v3731 = vunpack.c.l.b16 %v3409
    %v3732 = vunpack.c.h.b16 %v3409
    %v3733 = vunpack.c.l.b16 %v3410
    %v3734 = vunpack.c.h.b16 %v3410
    %v3735 = vunpack.c.l.b16 %v3411
    %v3736 = vunpack.c.h.b16 %v3411
    %v3737 = vunpack.c.l.b16 %v3412
    %v3738 = vunpack.c.h.b16 %v3412
    %v3739 = vunpack.c.l.b16 %v3413
    %v3740 = vunpack.c.h.b16 %v3413
    %v3741 = vunpack.c.l.b16 %v3414
    %v3742 = vunpack.c.h.b16 %v3414
    %v3743 = vunpack.c.l.b16 %v3415
    %v3744 = vunpack.c.h.b16 %v3415
    %v3745 = vunpack.c.l.b16 %v3416
    %v3746 = vunpack.c.h.b16 %v3416
    %v3747 = vunpack.c.l.b16 %v3417
    %v3748 = vunpack.c.h.b16 %v3417
    %v3749 = vunpack.c.l.b16 %v3418
    %v3750 = vunpack.c.h.b16 %v3418
    %v3751 = vunpack.c.l.b16 %v3419
    %v3752 = vunpack.c.h.b16 %v3419
    %v3753 = vunpack.c.l.b16 %v3420
    %v3754 = vunpack.c.h.b16 %v3420
    %v3755 = vunpack.c.l.b16 %v3421
    %v3756 = vunpack.c.h.b16 %v3421
    %v3757 = vunpack.c.l.b16 %v3422
    %v3758 = vunpack.c.h.b16 %v3422
    %v3759 = vunpack.c.l.b16 %v3423
    %v3760 = vunpack.c.h.b16 %v3423
    %v3761 = vunpack.c.l.b16 %v3424
    %v3762 = vunpack.c.h.b16 %v3424
    %v3763 = vunpack.c.l.b16 %v3425
    %v3764 = vunpack.c.h.b16 %v3425
    %v3765 = vunpack.c.l.b16 %v3426
    %v3766 = vunpack.c.h.b16 %v3426
    %v3767 = vunpack.c.l.b16 %v3427
    %v3768 = vunpack.c.h.b16 %v3427
    %v3769 = vunpack.c.l.b16 %v3428
    %v3770 = vunpack.c.h.b16 %v3428
    %v3771 = vunpack.c.l.b16 %v3429
    %v3772 = vunpack.c.h.b16 %v3429
    %v3773 = vunpack.c.l.b16 %v3430
    %v3774 = vunpack.c.h.b16 %v3430
    %v3775 = vunpack.c.l.b16 %v3431
    %v3776 = vunpack.c.h.b16 %v3431
    %v3777 = vunpack.c.l.b16 %v3432
    %v3778 = vunpack.c.h.b16 %v3432
    %v3779 = vunpack.c.l.b16 %v3433
    %v3780 = vunpack.c.h.b16 %v3433
    %v3781 = vunpack.c.l.b16 %v3434
    %v3782 = vunpack.c.h.b16 %v3434
    %v3783 = vunpack.c.l.b16 %v3435
    %v3784 = vunpack.c.h.b16 %v3435
    %v3785 = vunpack.c.l.b16 %v3436
    %v3786 = vunpack.c.h.b16 %v3436
    %v3787 = vunpack.c.l.b16 %v3437
    %v3788 = vunpack.c.h.b16 %v3437
    %v3789 = vunpack.c.l.b16 %v3438
    %v3790 = vunpack.c.h.b16 %v3438
    %v3791 = vunpack.c.l.b16 %v3439
    %v3792 = vunpack.c.h.b16 %v3439
    %v3793 = vunpack.c.l.b16 %v3440
    %v3794 = vunpack.c.h.b16 %v3440
    %v3795 = vunpack.c.l.b16 %v3441
    %v3796 = vunpack.c.h.b16 %v3441
    %v3797 = vunpack.c.l.b16 %v3442
    %v3798 = vunpack.c.h.b16 %v3442
    %v3799 = vunpack.c.l.b16 %v3443
    %v3800 = vunpack.c.h.b16 %v3443
    %v3801 = vunpack.c.l.b16 %v3444
    %v3802 = vunpack.c.h.b16 %v3444
    %v3803 = vunpack.c.l.b16 %v3445
    %v3804 = vunpack.c.h.b16 %v3445
    %v3805 = vunpack.c.l.b16 %v3446
    %v3806 = vunpack.c.h.b16 %v3446
    %v3807 = vunpack.c.l.b16 %v3447
    %v3808 = vunpack.c.h.b16 %v3447
    %v3809 = vunpack.c.l.b16 %v3448
    %v3810 = vunpack.c.h.b16 %v3448
    %v3811 = vunpack.c.l.b16 %v3449
    %v3812 = vunpack.c.h.b16 %v3449
    %v3813 = vunpack.c.l.b16 %v3450
    %v3814 = vunpack.c.h.b16 %v3450
    %v3815 = vunpack.c.l.b16 %v3451
    %v3816 = vunpack.c.h.b16 %v3451
    %v3817 = vunpack.c.l.b16 %v3452
    %v3818 = vunpack.c.h.b16 %v3452
    %v3819 = vunpack.c.l.b16 %v3453
    %v3820 = vunpack.c.h.b16 %v3453
    %v3821 = vunpack.c.l.b16 %v3454
    %v3822 = vunpack.c.h.b16 %v3454
    %v3823 = vunpack.c.l.b16 %v3455
    %v3824 = vunpack.c.h.b16 %v3455
    %v3825 = vunpack.c.l.b16 %v3456
    %v3826 = vunpack.c.h.b16 %v3456
    %v3827 = vunpack.c.l.b16 %v3457
    %v3828 = vunpack.c.h.b16 %v3457
    %v3829 = vunpack.c.l.b16 %v3458
    %v3830 = vunpack.c.h.b16 %v3458
    %v3831 = vunpack.c.l.b16 %v3459
    %v3832 = vunpack.c.h.b16 %v3459
    %v3833 = vunpack.c.l.b16 %v3460
    %v3834 = vunpack.c.h.b16 %v3460
    %v3835 = vunpack.c.l.b16 %v3461
    %v3836 = vunpack.c.h.b16 %v3461
    %v3837 = vunpack.c.l.b16 %v3462
    %v3838 = vunpack.c.h.b16 %v3462
    %v3839 = vunpack.c.l.b16 %v3463
    %v3840 = vunpack.c.h.b16 %v3463
    %v3841 = vunpack.c.l.b16 %v3464
    %v3842 = vunpack.c.h.b16 %v3464
    %v3843 = vunpack.c.l.b16 %v3465
    %v3844 = vunpack.c.h.b16 %v3465
    %v3845 = vunpack.c.l.b16 %v3466
    %v3846 = vunpack.c.h.b16 %v3466
    %v3847 = vunpack.c.l.b16 %v3467
    %v3848 = vunpack.c.h.b16 %v3467
    %v3849 = vunpack.c.l.b16 %v3468
    %v3850 = vunpack.c.h.b16 %v3468
    %v3851 = vunpack.c.l.b16 %v3469
    %v3852 = vunpack.c.h.b16 %v3469
    %v3853 = vunpack.c.l.b16 %v3470
    %v3854 = vunpack.c.h.b16 %v3470
    %v3855 = vunpack.c.l.b16 %v3471
    %v3856 = vunpack.c.h.b16 %v3471
    %v3857 = vunpack.c.l.b16 %v3472
    %v3858 = vunpack.c.h.b16 %v3472
    %v3859 = vunpack.c.l.b16 %v3473
    %v3860 = vunpack.c.h.b16 %v3473
    %v3861 = vunpack.c.l.b16 %v3474
    %v3862 = vunpack.c.h.b16 %v3474
    %v3863 = vunpack.c.l.b16 %v3475
    %v3864 = vunpack.c.h.b16 %v3475
    %v3865 = vunpack.c.l.b16 %v3476
    %v3866 = vunpack.c.h.b16 %v3476
    %v3867 = vunpack.c.l.b16 %v3477
    %v3868 = vunpack.c.h.b16 %v3477
    %v3869 = vunpack.c.l.b16 %v3478
    %v3870 = vunpack.c.h.b16 %v3478
    %v3871 = vunpack.c.l.b16 %v3479
    %v3872 = vunpack.c.h.b16 %v3479
    %v3873 = vunpack.c.l.b16 %v3480
    %v3874 = vunpack.c.h.b16 %v3480
    %v3875 = vunpack.c.l.b16 %v3481
    %v3876 = vunpack.c.h.b16 %v3481
    %v3877 = vunpack.c.l.b16 %v3482
    %v3878 = vunpack.c.h.b16 %v3482
    %v3879 = vunpack.c.l.b16 %v3483
    %v3880 = vunpack.c.h.b16 %v3483
    %v3881 = vunpack.c.l.b16 %v3484
    %v3882 = vunpack.c.h.b16 %v3484
    %v3883 = vunpack.c.l.b16 %v3485
    %v3884 = vunpack.c.h.b16 %v3485
    %v3885 = vunpack.c.l.b16 %v3486
    %v3886 = vunpack.c.h.b16 %v3486
    %v3887 = vunpack.c.l.b16 %v3487
    %v3888 = vunpack.c.h.b16 %v3487
    %v3889 = vunpack.c.l.b16 %v3488
    %v3890 = vunpack.c.h.b16 %v3488
    %v3891 = vunpack.c.l.b16 %v3489
    %v3892 = vunpack.c.h.b16 %v3489
    %v3893 = vunpack.c.l.b16 %v3490
    %v3894 = vunpack.c.h.b16 %v3490
    %v3895 = vunpack.c.l.b16 %v3491
    %v3896 = vunpack.c.h.b16 %v3491
    %v3897 = vunpack.c.l.b16 %v3492
    %v3898 = vunpack.c.h.b16 %v3492
    %v3899 = vpack.c.b16 %v3647, %v3643
    %v3900 = vpack.c.b16 %v3648, %v3644
    %v3901 = vpack.c.b16 %v3649, %v3645
    %v3902 = vpack.c.b16 %v3650, %v3646
    %v3903 = vpack.c.b16 %v3655, %v3651
    %v3904 = vpack.c.b16 %v3656, %v3652
    %v3905 = vpack.c.b16 %v3657, %v3653
    %v3906 = vpack.c.b16 %v3658, %v3654
    %v3907 = vpack.c.b16 %v3663, %v3659
    %v3908 = vpack.c.b16 %v3664, %v3660
    %v3909 = vpack.c.b16 %v3665, %v3661
    %v3910 = vpack.c.b16 %v3666, %v3662
    %v3911 = vpack.c.b16 %v3671, %v3667
    %v3912 = vpack.c.b16 %v3672, %v3668
    %v3913 = vpack.c.b16 %v3673, %v3669
    %v3914 = vpack.c.b16 %v3674, %v3670
    %v3915 = vpack.c.b16 %v3679, %v3675
    %v3916 = vpack.c.b16 %v3680, %v3676
    %v3917 = vpack.c.b16 %v3681, %v3677
    %v3918 = vpack.c.b16 %v3682, %v3678
    %v3919 = vpack.c.b16 %v3687, %v3683
    %v3920 = vpack.c.b16 %v3688, %v3684
    %v3921 = vpack.c.b16 %v3689, %v3685
    %v3922 = vpack.c.b16 %v3690, %v3686
    %v3923 = vpack.c.b16 %v3695, %v3691
    %v3924 = vpack.c.b16 %v3696, %v3692
    %v3925 = vpack.c.b16 %v3697, %v3693
    %v3926 = vpack.c.b16 %v3698, %v3694
    %v3927 = vpack.c.b16 %v3703, %v3699
    %v3928 = vpack.c.b16 %v3704, %v3700
    %v3929 = vpack.c.b16 %v3705, %v3701
    %v3930 = vpack.c.b16 %v3706, %v3702
    %v3931 = vpack.c.b16 %v3711, %v3707
    %v3932 = vpack.c.b16 %v3712, %v3708
    %v3933 = vpack.c.b16 %v3713, %v3709
    %v3934 = vpack.c.b16 %v3714, %v3710
    %v3935 = vpack.c.b16 %v3719, %v3715
    %v3936 = vpack.c.b16 %v3720, %v3716
    %v3937 = vpack.c.b16 %v3721, %v3717
    %v3938 = vpack.c.b16 %v3722, %v3718
    %v3939 = vpack.c.b16 %v3727, %v3723
    %v3940 = vpack.c.b16 %v3728, %v3724
    %v3941 = vpack.c.b16 %v3729, %v3725
    %v3942 = vpack.c.b16 %v3730, %v3726
    %v3943 = vpack.c.b16 %v3735, %v3731
    %v3944 = vpack.c.b16 %v3736, %v3732
    %v3945 = vpack.c.b16 %v3737, %v3733
    %v3946 = vpack.c.b16 %v3738, %v3734
    %v3947 = vpack.c.b16 %v3743, %v3739
    %v3948 = vpack.c.b16 %v3744, %v3740
    %v3949 = vpack.c.b16 %v3745, %v3741
    %v3950 = vpack.c.b16 %v3746, %v3742
    %v3951 = vpack.c.b16 %v3751, %v3747
    %v3952 = vpack.c.b16 %v3752, %v3748
    %v3953 = vpack.c.b16 %v3753, %v3749
    %v3954 = vpack.c.b16 %v3754, %v3750
    %v3955 = vpack.c.b16 %v3759, %v3755
    %v3956 = vpack.c.b16 %v3760, %v3756
    %v3957 = vpack.c.b16 %v3761, %v3757
    %v3958 = vpack.c.b16 %v3762, %v3758
    %v3959 = vpack.c.b16 %v3767, %v3763
    %v3960 = vpack.c.b16 %v3768, %v3764
    %v3961 = vpack.c.b16 %v3769, %v3765
    %v3962 = vpack.c.b16 %v3770, %v3766
    %v3963 = vpack.c.b16 %v3775, %v3771
    %v3964 = vpack.c.b16 %v3776, %v3772
    %v3965 = vpack.c.b16 %v3777, %v3773
    %v3966 = vpack.c.b16 %v3778, %v3774
    %v3967 = vpack.c.b16 %v3783, %v3779
    %v3968 = vpack.c.b16 %v3784, %v3780
    %v3969 = vpack.c.b16 %v3785, %v3781
    %v3970 = vpack.c.b16 %v3786, %v3782
    %v3971 = vpack.c.b16 %v3791, %v3787
    %v3972 = vpack.c.b16 %v3792, %v3788
    %v3973 = vpack.c.b16 %v3793, %v3789
    %v3974 = vpack.c.b16 %v3794, %v3790
    %v3975 = vpack.c.b16 %v3799, %v3795
    %v3976 = vpack.c.b16 %v3800, %v3796
    %v3977 = vpack.c.b16 %v3801, %v3797
    %v3978 = vpack.c.b16 %v3802, %v3798
    %v3979 = vpack.c.b16 %v3807, %v3803
    %v3980 = vpack.c.b16 %v3808, %v3804
    %v3981 = vpack.c.b16 %v3809, %v3805
    %v3982 = vpack.c.b16 %v3810, %v3806
    %v3983 = vpack.c.b16 %v3815, %v3811
    %v3984 = vpack.c.b16 %v3816, %v3812
    %v3985 = vpack.c.b16 %v3817, %v3813
    %v3986 = vpack.c.b16 %v3818, %v3814
    %v3987 = vpack.c.b16 %v3823, %v3819
    %v3988 = vpack.c.b16 %v3824, %v3820
    %v3989 = vpack.c.b16 %v3825, %v3821
    %v3990 = vpack.c.b16 %v3826, %v3822
    %v3991 = vpack.c.b16 %v3831, %v3827
    %v3992 = vpack.c.b16 %v3832, %v3828
    %v3993 = vpack.c.b16 %v3833, %v3829
    %v3994 = vpack.c.b16 %v3834, %v3830
    %v3995 = vpack.c.b16 %v3839, %v3835
    %v3996 = vpack.c.b16 %v3840, %v3836
    %v3997 = vpack.c.b16 %v3841, %v3837
    %v3998 = vpack.c.b16 %v3842, %v3838
    %v3999 = vpack.c.b16 %v3847, %v3843
    %v4000 = vpack.c.b16 %v3848, %v3844
    %v4001 = vpack.c.b16 %v3849, %v3845
    %v4002 = vpack.c.b16 %v3850, %v3846
    %v4003 = vpack.c.b16 %v3855, %v3851
    %v4004 = vpack.c.b16 %v3856, %v3852
    %v4005 = vpack.c.b16 %v3857, %v3853
    %v4006 = vpack.c.b16 %v3858, %v3854
    %v4007 = vpack.c.b16 %v3863, %v3859
    %v4008 = vpack.c.b16 %v3864, %v3860
    %v4009 = vpack.c.b16 %v3865, %v3861
    %v4010 = vpack.c.b16 %v3866, %v3862
    %v4011 = vpack.c.b16 %v3871, %v3867
    %v4012 = vpack.c.b16 %v3872, %v3868
    %v4013 = vpack.c.b16 %v3873, %v3869
    %v4014 = vpack.c.b16 %v3874, %v3870
    %v4015 = vpack.c.b16 %v3879, %v3875
    %v4016 = vpack.c.b16 %v3880, %v3876
    %v4017 = vpack.c.b16 %v3881, %v3877
    %v4018 = vpack.c.b16 %v3882, %v3878
    %v4019 = vpack.c.b16 %v3887, %v3883
    %v4020 = vpack.c.b16 %v3888, %v3884
    %v4021 = vpack.c.b16 %v3889, %v3885
    %v4022 = vpack.c.b16 %v3890, %v3886
    %v4023 = vpack.c.b16 %v3895, %v3891
    %v4024 = vpack.c.b16 %v3896, %v3892
    %v4025 = vpack.c.b16 %v3897, %v3893
    %v4026 = vpack.c.b16 %v3898, %v3894
    %4155 = vmatprep.subr.bf16.mxu0 %v3928
    %4156 = vmatpush1.bf16.msra.mxu0 %v3927
    %4157 = vmatprep.subr.bf16.mxu0 %v3924
    %4158 = vmatpush1.bf16.msra.mxu0 %v3923
    %4159 = vmatprep.subr.bf16.mxu0 %v3920
    %4160 = vmatpush1.bf16.msra.mxu0 %v3919
    %4161 = vmatprep.subr.bf16.mxu0 %v3916
    %4162 = vmatpush1.bf16.msra.mxu0 %v3915
    %4163 = vmatprep.subr.bf16.mxu0 %v3912
    %4164 = vmatpush1.bf16.msra.mxu0 %v3911
    %4165 = vmatprep.subr.bf16.mxu0 %v3908
    %4166 = vmatpush1.bf16.msra.mxu0 %v3907
    %4167 = vmatprep.subr.bf16.mxu0 %v3904
    %4168 = vmatpush1.bf16.msra.mxu0 %v3903
    %4169 = vmatprep.subr.bf16.mxu0 %v3900
    %4170 = vmatpush1.bf16.msra.mxu0 %v3899
    %4171 = vmatprep.subr.bf16.mxu0 %v3960
    %4172 = vmatpush2.bf16.msra.mxu0 %v3959
    %4173 = vmatprep.subr.bf16.mxu0 %v3956
    %4174 = vmatpush2.bf16.msra.mxu0 %v3955
    %4175 = vmatprep.subr.bf16.mxu0 %v3952
    %4176 = vmatpush2.bf16.msra.mxu0 %v3951
    %4177 = vmatprep.subr.bf16.mxu0 %v3948
    %4178 = vmatpush2.bf16.msra.mxu0 %v3947
    %4179 = vmatprep.subr.bf16.mxu0 %v3944
    %4180 = vmatpush2.bf16.msra.mxu0 %v3943
    %4181 = vmatprep.subr.bf16.mxu0 %v3940
    %4182 = vmatpush2.bf16.msra.mxu0 %v3939
    %4183 = vmatprep.subr.bf16.mxu0 %v3936
    %4184 = vmatpush2.bf16.msra.mxu0 %v3935
    %4185 = vmatprep.subr.bf16.mxu0 %v3932
    %4186 = vmatpush2.bf16.msra.mxu0 %v3931
    %4187 = vmatprep.mubr.bf16.mxu0 %v3362
    %4188 = vmatmul.mubr.bf16.gmra.mxu0 %v3361
    %v4189 = vpop.f32.mrf.mxu0
    %v4190 = vadd.f32 %v3498, %v4189
    %v4191 = vpop.f32.mrf.mxu0
    %v4192 = vadd.f32 %v3502, %v4191
    %v4193 = vpop.f32.mrf.mxu0
    %v4194 = vadd.f32 %v3498, %v4193
    %v4195 = vpop.f32.mrf.mxu0
    %v4196 = vadd.f32 %v3502, %v4195
    %4197 = vdwg.mxu0
    %4198 = vmatprep.subr.bf16.mxu0 %v3992
    %4199 = vmatpush1.bf16.msra.mxu0 %v3991
    %4200 = vmatprep.subr.bf16.mxu0 %v3988
    %4201 = vmatpush1.bf16.msra.mxu0 %v3987
    %4202 = vmatprep.subr.bf16.mxu0 %v3984
    %4203 = vmatpush1.bf16.msra.mxu0 %v3983
    %4204 = vmatprep.subr.bf16.mxu0 %v3980
    %4205 = vmatpush1.bf16.msra.mxu0 %v3979
    %4206 = vmatprep.subr.bf16.mxu0 %v3976
    %4207 = vmatpush1.bf16.msra.mxu0 %v3975
    %4208 = vmatprep.subr.bf16.mxu0 %v3972
    %4209 = vmatpush1.bf16.msra.mxu0 %v3971
    %4210 = vmatprep.subr.bf16.mxu0 %v3968
    %4211 = vmatpush1.bf16.msra.mxu0 %v3967
    %4212 = vmatprep.subr.bf16.mxu0 %v3964
    %4213 = vmatpush1.bf16.msra.mxu0 %v3963
    %4214 = vmatprep.subr.bf16.mxu0 %v4024
    %4215 = vmatpush2.bf16.msra.mxu0 %v4023
    %4216 = vmatprep.subr.bf16.mxu0 %v4020
    %4217 = vmatpush2.bf16.msra.mxu0 %v4019
    %4218 = vmatprep.subr.bf16.mxu0 %v4016
    %4219 = vmatpush2.bf16.msra.mxu0 %v4015
    %4220 = vmatprep.subr.bf16.mxu0 %v4012
    %4221 = vmatpush2.bf16.msra.mxu0 %v4011
    %4222 = vmatprep.subr.bf16.mxu0 %v4008
    %4223 = vmatpush2.bf16.msra.mxu0 %v4007
    %4224 = vmatprep.subr.bf16.mxu0 %v4004
    %4225 = vmatpush2.bf16.msra.mxu0 %v4003
    %4226 = vmatprep.subr.bf16.mxu0 %v4000
    %4227 = vmatpush2.bf16.msra.mxu0 %v3999
    %4228 = vmatprep.subr.bf16.mxu0 %v3996
    %4229 = vmatpush2.bf16.msra.mxu0 %v3995
    %4230 = vmatprep.mubr.bf16.mxu0 %v3364
    %4231 = vmatmul.mubr.bf16.gmra.mxu0 %v3363
    %v4232 = vpop.f32.mrf.mxu0
    %v4233 = vadd.f32 %v4190, %v4232
    %v4234 = vpop.f32.mrf.mxu0
    %v4235 = vadd.f32 %v4192, %v4234
    %v4236 = vpop.f32.mrf.mxu0
    %v4237 = vadd.f32 %v4194, %v4236
    %v4238 = vpop.f32.mrf.mxu0
    %v4239 = vadd.f32 %v4196, %v4238
    %4240 = vdwg.mxu0
    %4241 = vmatprep.subr.bf16.mxu0 %v3930
    %4242 = vmatpush1.bf16.msra.mxu0 %v3929
    %4243 = vmatprep.subr.bf16.mxu0 %v3926
    %4244 = vmatpush1.bf16.msra.mxu0 %v3925
    %4245 = vmatprep.subr.bf16.mxu0 %v3922
    %4246 = vmatpush1.bf16.msra.mxu0 %v3921
    %4247 = vmatprep.subr.bf16.mxu0 %v3918
    %4248 = vmatpush1.bf16.msra.mxu0 %v3917
    %4249 = vmatprep.subr.bf16.mxu0 %v3914
    %4250 = vmatpush1.bf16.msra.mxu0 %v3913
    %4251 = vmatprep.subr.bf16.mxu0 %v3910
    %4252 = vmatpush1.bf16.msra.mxu0 %v3909
    %4253 = vmatprep.subr.bf16.mxu0 %v3906
    %4254 = vmatpush1.bf16.msra.mxu0 %v3905
    %4255 = vmatprep.subr.bf16.mxu0 %v3902
    %4256 = vmatpush1.bf16.msra.mxu0 %v3901
    %4257 = vmatprep.subr.bf16.mxu0 %v3962
    %4258 = vmatpush2.bf16.msra.mxu0 %v3961
    %4259 = vmatprep.subr.bf16.mxu0 %v3958
    %4260 = vmatpush2.bf16.msra.mxu0 %v3957
    %4261 = vmatprep.subr.bf16.mxu0 %v3954
    %4262 = vmatpush2.bf16.msra.mxu0 %v3953
    %4263 = vmatprep.subr.bf16.mxu0 %v3950
    %4264 = vmatpush2.bf16.msra.mxu0 %v3949
    %4265 = vmatprep.subr.bf16.mxu0 %v3946
    %4266 = vmatpush2.bf16.msra.mxu0 %v3945
    %4267 = vmatprep.subr.bf16.mxu0 %v3942
    %4268 = vmatpush2.bf16.msra.mxu0 %v3941
    %4269 = vmatprep.subr.bf16.mxu0 %v3938
    %4270 = vmatpush2.bf16.msra.mxu0 %v3937
    %4271 = vmatprep.subr.bf16.mxu0 %v3934
    %4272 = vmatpush2.bf16.msra.mxu0 %v3933
    %4273 = vmatprep.mubr.bf16.mxu0 %v3362
    %4274 = vmatmul.mubr.bf16.gmra.mxu0 %v3361
    %v4275 = vpop.f32.mrf.mxu0
    %v4276 = vadd.f32 %v3506, %v4275
    %v4277 = vpop.f32.mrf.mxu0
    %v4278 = vadd.f32 %v3510, %v4277
    %v4279 = vpop.f32.mrf.mxu0
    %v4280 = vadd.f32 %v3506, %v4279
    %v4281 = vpop.f32.mrf.mxu0
    %v4282 = vadd.f32 %v3510, %v4281
    %4283 = vdwg.mxu0
    %4284 = vmatprep.subr.bf16.mxu0 %v3994
    %4285 = vmatpush1.bf16.msra.mxu0 %v3993
    %4286 = vmatprep.subr.bf16.mxu0 %v3990
    %4287 = vmatpush1.bf16.msra.mxu0 %v3989
    %4288 = vmatprep.subr.bf16.mxu0 %v3986
    %4289 = vmatpush1.bf16.msra.mxu0 %v3985
    %4290 = vmatprep.subr.bf16.mxu0 %v3982
    %4291 = vmatpush1.bf16.msra.mxu0 %v3981
    %4292 = vmatprep.subr.bf16.mxu0 %v3978
    %4293 = vmatpush1.bf16.msra.mxu0 %v3977
    %4294 = vmatprep.subr.bf16.mxu0 %v3974
    %4295 = vmatpush1.bf16.msra.mxu0 %v3973
    %4296 = vmatprep.subr.bf16.mxu0 %v3970
    %4297 = vmatpush1.bf16.msra.mxu0 %v3969
    %4298 = vmatprep.subr.bf16.mxu0 %v3966
    %4299 = vmatpush1.bf16.msra.mxu0 %v3965
    %4300 = vmatprep.subr.bf16.mxu0 %v4026
    %4301 = vmatpush2.bf16.msra.mxu0 %v4025
    %4302 = vmatprep.subr.bf16.mxu0 %v4022
    %4303 = vmatpush2.bf16.msra.mxu0 %v4021
    %4304 = vmatprep.subr.bf16.mxu0 %v4018
    %4305 = vmatpush2.bf16.msra.mxu0 %v4017
    %4306 = vmatprep.subr.bf16.mxu0 %v4014
    %4307 = vmatpush2.bf16.msra.mxu0 %v4013
    %4308 = vmatprep.subr.bf16.mxu0 %v4010
    %4309 = vmatpush2.bf16.msra.mxu0 %v4009
    %4310 = vmatprep.subr.bf16.mxu0 %v4006
    %4311 = vmatpush2.bf16.msra.mxu0 %v4005
    %4312 = vmatprep.subr.bf16.mxu0 %v4002
    %4313 = vmatpush2.bf16.msra.mxu0 %v4001
    %4314 = vmatprep.subr.bf16.mxu0 %v3998
    %4315 = vmatpush2.bf16.msra.mxu0 %v3997
    %4316 = vmatprep.mubr.bf16.mxu0 %v3364
    %4317 = vmatmul.mubr.bf16.gmra.mxu0 %v3363
    %v4318 = vpop.f32.mrf.mxu0
    %v4319 = vadd.f32 %v4276, %v4318
    %v4320 = vpop.f32.mrf.mxu0
    %v4321 = vadd.f32 %v4278, %v4320
    %v4322 = vpop.f32.mrf.mxu0
    %v4323 = vadd.f32 %v4280, %v4322
    %v4324 = vpop.f32.mrf.mxu0
    %v4325 = vadd.f32 %v4282, %v4324
    %4326 = vdwg.mxu0
    %v4327 = vld [vmem:[#allocation19] sm:$0xf]
    %v4328 = vld [vmem:[#allocation20] sm:$0xf]
    %v4329 = vadd.f32 %v4233, %v4235
    %v4330 = vadd.f32 %v4329, %v4319
    %v4331 = vadd.f32 %v4330, %v4321
    %4332 = vadd.xlane.f32.xlu0 %v4331
    %v4333 = vpop.xlane.xlu0 %4332
    %v4334 = vadd.f32 %v4237, %v4239
    %v4335 = vadd.f32 %v4334, %v4323
    %v4336 = vadd.f32 %v4335, %v4325
    %4337 = vadd.xlane.f32.xlu0 %v4336
    %v4338 = vpop.xlane.xlu0 %4337
    %v4339 = vmul.f32 %v4333, %v2166
    %v4340 = vmul.f32 %v4338, %v2166
    %v4341 = vsub.f32 %v4233, %v4339
    %v4342 = vsub.f32 %v4235, %v4339
    %v4343 = vsub.f32 %v4319, %v4339
    %v4344 = vsub.f32 %v4321, %v4339
    %v4345 = vsub.f32 %v4237, %v4340
    %v4346 = vsub.f32 %v4239, %v4340
    %v4347 = vsub.f32 %v4323, %v4340
    %v4348 = vsub.f32 %v4325, %v4340
    %v4349 = vmul.f32 %v4341, %v4341
    %v4350 = vmul.f32 %v4342, %v4342
    %v4351 = vmul.f32 %v4343, %v4343
    %v4352 = vmul.f32 %v4344, %v4344
    %v4353 = vmul.f32 %v4345, %v4345
    %v4354 = vmul.f32 %v4346, %v4346
    %v4355 = vmul.f32 %v4347, %v4347
    %v4356 = vmul.f32 %v4348, %v4348
    %v4357 = vadd.f32 %v4349, %v4350
    %v4358 = vadd.f32 %v4357, %v4351
    %v4359 = vadd.f32 %v4358, %v4352
    %4360 = vadd.xlane.f32.xlu0 %v4359
    %v4361 = vpop.xlane.xlu0 %4360
    %v4362 = vadd.f32 %v4353, %v4354
    %v4363 = vadd.f32 %v4362, %v4355
    %v4364 = vadd.f32 %v4363, %v4356
    %4365 = vadd.xlane.f32.xlu0 %v4364
    %v4366 = vpop.xlane.xlu0 %4365
    %v4367 = vmul.f32 %v4361, %v2166
    %v4368 = vmul.f32 %v4366, %v2166
    %v4369 = vadd.f32 %v4367, 1e-05
    %v4370 = vadd.f32 %v4368, 1e-05
    %v4371 = vrsqrt.pop %v4369
    %v4372 = vrsqrt.pop %v4370
    %v4373 = vmul.f32 %v4341, %v4371
    %v4374 = vmul.f32 %v4342, %v4371
    %v4375 = vmul.f32 %v4343, %v4371
    %v4376 = vmul.f32 %v4344, %v4371
    %v4377 = vmul.f32 %v4345, %v4372
    %v4378 = vmul.f32 %v4346, %v4372
    %v4379 = vmul.f32 %v4347, %v4372
    %v4380 = vmul.f32 %v4348, %v4372
    %v4382 = vlaneseq
    %v4383 = vshrl.u32 %v4382, 7
    %v4384 = vsub.s32 0, %v4383
    %v4385 = vrot.slane %v4327, %v4384
    %v4386 = vlaneseq
    %v4387 = vshrl.u32 %v4386, 7
    %v4388 = vsub.s32 1, %v4387
    %v4389 = vrot.slane %v4327, %v4388
    %v4390 = vlaneseq
    %v4391 = vshrl.u32 %v4390, 7
    %v4392 = vsub.s32 2, %v4391
    %v4393 = vrot.slane %v4327, %v4392
    %v4394 = vlaneseq
    %v4395 = vshrl.u32 %v4394, 7
    %v4396 = vsub.s32 3, %v4395
    %v4397 = vrot.slane %v4327, %v4396
    %v4402 = vmul.f32 %v4373, %v4385
    %v4403 = vmul.f32 %v4374, %v4389
    %v4404 = vmul.f32 %v4375, %v4393
    %v4405 = vmul.f32 %v4376, %v4397
    %v4406 = vmul.f32 %v4377, %v4385
    %v4407 = vmul.f32 %v4378, %v4389
    %v4408 = vmul.f32 %v4379, %v4393
    %v4409 = vmul.f32 %v4380, %v4397
    %v4411 = vlaneseq
    %v4412 = vshrl.u32 %v4411, 7
    %v4413 = vsub.s32 0, %v4412
    %v4414 = vrot.slane %v4328, %v4413
    %v4415 = vlaneseq
    %v4416 = vshrl.u32 %v4415, 7
    %v4417 = vsub.s32 1, %v4416
    %v4418 = vrot.slane %v4328, %v4417
    %v4419 = vlaneseq
    %v4420 = vshrl.u32 %v4419, 7
    %v4421 = vsub.s32 2, %v4420
    %v4422 = vrot.slane %v4328, %v4421
    %v4423 = vlaneseq
    %v4424 = vshrl.u32 %v4423, 7
    %v4425 = vsub.s32 3, %v4424
    %v4426 = vrot.slane %v4328, %v4425
    %v4431 = vadd.f32 %v4402, %v4414
    %v4432 = vadd.f32 %v4403, %v4418
    %v4433 = vadd.f32 %v4404, %v4422
    %v4434 = vadd.f32 %v4405, %v4426
    %v4435 = vadd.f32 %v4406, %v4414
    %v4436 = vadd.f32 %v4407, %v4418
    %v4437 = vadd.f32 %v4408, %v4422
    %v4438 = vadd.f32 %v4409, %v4426
    %v4439 = vmax.f32 %v4431, 0.0
    %v4440 = vmax.f32 %v4432, 0.0
    %v4441 = vmax.f32 %v4433, 0.0
    %v4442 = vmax.f32 %v4434, 0.0
    %v4443 = vmax.f32 %v4435, 0.0
    %v4444 = vmax.f32 %v4436, 0.0
    %v4445 = vmax.f32 %v4437, 0.0
    %v4446 = vmax.f32 %v4438, 0.0
    %v4447 = vpack.c.bf16 %v4443, %v4439
    %v4448 = vpack.c.bf16 %v4444, %v4440
    %v4449 = vpack.c.bf16 %v4445, %v4441
    %v4450 = vpack.c.bf16 %v4446, %v4442
    %v4451 = vld [vmem:[#allocation22] sm:$0xff]
    %v4452 = vld [vmem:[#allocation22 + $0x8] sm:$0xff]
    %v4453 = vld [vmem:[#allocation22 + $0x10] sm:$0xff]
    %v4454 = vld [vmem:[#allocation22 + $0x18] sm:$0xff]
    %v4455 = vld [vmem:[#allocation22 + $0x20] sm:$0xff]
    %v4456 = vld [vmem:[#allocation22 + $0x28] sm:$0xff]
    %v4457 = vld [vmem:[#allocation22 + $0x30] sm:$0xff]
    %v4458 = vld [vmem:[#allocation22 + $0x38] sm:$0xff]
    %v4459 = vld [vmem:[#allocation22 + $0x40] sm:$0xff]
    %v4460 = vld [vmem:[#allocation22 + $0x48] sm:$0xff]
    %v4461 = vld [vmem:[#allocation22 + $0x50] sm:$0xff]
    %v4462 = vld [vmem:[#allocation22 + $0x58] sm:$0xff]
    %v4463 = vld [vmem:[#allocation22 + $0x60] sm:$0xff]
    %v4464 = vld [vmem:[#allocation22 + $0x68] sm:$0xff]
    %v4465 = vld [vmem:[#allocation22 + $0x70] sm:$0xff]
    %v4466 = vld [vmem:[#allocation22 + $0x78] sm:$0xff]
    %v4467 = vld [vmem:[#allocation22 + $0x80] sm:$0xff]
    %v4468 = vld [vmem:[#allocation22 + $0x88] sm:$0xff]
    %v4469 = vld [vmem:[#allocation22 + $0x90] sm:$0xff]
    %v4470 = vld [vmem:[#allocation22 + $0x98] sm:$0xff]
    %v4471 = vld [vmem:[#allocation22 + $0xa0] sm:$0xff]
    %v4472 = vld [vmem:[#allocation22 + $0xa8] sm:$0xff]
    %v4473 = vld [vmem:[#allocation22 + $0xb0] sm:$0xff]
    %v4474 = vld [vmem:[#allocation22 + $0xb8] sm:$0xff]
    %v4475 = vld [vmem:[#allocation22 + $0xc0] sm:$0xff]
    %v4476 = vld [vmem:[#allocation22 + $0xc8] sm:$0xff]
    %v4477 = vld [vmem:[#allocation22 + $0xd0] sm:$0xff]
    %v4478 = vld [vmem:[#allocation22 + $0xd8] sm:$0xff]
    %v4479 = vld [vmem:[#allocation22 + $0xe0] sm:$0xff]
    %v4480 = vld [vmem:[#allocation22 + $0xe8] sm:$0xff]
    %v4481 = vld [vmem:[#allocation22 + $0xf0] sm:$0xff]
    %v4482 = vld [vmem:[#allocation22 + $0xf8] sm:$0xff]
    %v4483 = vld [vmem:[#allocation22 + $0x100] sm:$0xff]
    %v4484 = vld [vmem:[#allocation22 + $0x108] sm:$0xff]
    %v4485 = vld [vmem:[#allocation22 + $0x110] sm:$0xff]
    %v4486 = vld [vmem:[#allocation22 + $0x118] sm:$0xff]
    %v4487 = vld [vmem:[#allocation22 + $0x120] sm:$0xff]
    %v4488 = vld [vmem:[#allocation22 + $0x128] sm:$0xff]
    %v4489 = vld [vmem:[#allocation22 + $0x130] sm:$0xff]
    %v4490 = vld [vmem:[#allocation22 + $0x138] sm:$0xff]
    %v4491 = vld [vmem:[#allocation22 + $0x140] sm:$0xff]
    %v4492 = vld [vmem:[#allocation22 + $0x148] sm:$0xff]
    %v4493 = vld [vmem:[#allocation22 + $0x150] sm:$0xff]
    %v4494 = vld [vmem:[#allocation22 + $0x158] sm:$0xff]
    %v4495 = vld [vmem:[#allocation22 + $0x160] sm:$0xff]
    %v4496 = vld [vmem:[#allocation22 + $0x168] sm:$0xff]
    %v4497 = vld [vmem:[#allocation22 + $0x170] sm:$0xff]
    %v4498 = vld [vmem:[#allocation22 + $0x178] sm:$0xff]
    %v4499 = vld [vmem:[#allocation22 + $0x180] sm:$0xff]
    %v4500 = vld [vmem:[#allocation22 + $0x188] sm:$0xff]
    %v4501 = vld [vmem:[#allocation22 + $0x190] sm:$0xff]
    %v4502 = vld [vmem:[#allocation22 + $0x198] sm:$0xff]
    %v4503 = vld [vmem:[#allocation22 + $0x1a0] sm:$0xff]
    %v4504 = vld [vmem:[#allocation22 + $0x1a8] sm:$0xff]
    %v4505 = vld [vmem:[#allocation22 + $0x1b0] sm:$0xff]
    %v4506 = vld [vmem:[#allocation22 + $0x1b8] sm:$0xff]
    %v4507 = vld [vmem:[#allocation22 + $0x1c0] sm:$0xff]
    %v4508 = vld [vmem:[#allocation22 + $0x1c8] sm:$0xff]
    %v4509 = vld [vmem:[#allocation22 + $0x1d0] sm:$0xff]
    %v4510 = vld [vmem:[#allocation22 + $0x1d8] sm:$0xff]
    %v4511 = vld [vmem:[#allocation22 + $0x1e0] sm:$0xff]
    %v4512 = vld [vmem:[#allocation22 + $0x1e8] sm:$0xff]
    %v4513 = vld [vmem:[#allocation22 + $0x1f0] sm:$0xff]
    %v4514 = vld [vmem:[#allocation22 + $0x1f8] sm:$0xff]
    %v4515 = vld [vmem:[#allocation22 + $0x200] sm:$0xff]
    %v4516 = vld [vmem:[#allocation22 + $0x208] sm:$0xff]
    %v4517 = vld [vmem:[#allocation22 + $0x210] sm:$0xff]
    %v4518 = vld [vmem:[#allocation22 + $0x218] sm:$0xff]
    %v4519 = vld [vmem:[#allocation22 + $0x220] sm:$0xff]
    %v4520 = vld [vmem:[#allocation22 + $0x228] sm:$0xff]
    %v4521 = vld [vmem:[#allocation22 + $0x230] sm:$0xff]
    %v4522 = vld [vmem:[#allocation22 + $0x238] sm:$0xff]
    %v4523 = vld [vmem:[#allocation22 + $0x240] sm:$0xff]
    %v4524 = vld [vmem:[#allocation22 + $0x248] sm:$0xff]
    %v4525 = vld [vmem:[#allocation22 + $0x250] sm:$0xff]
    %v4526 = vld [vmem:[#allocation22 + $0x258] sm:$0xff]
    %v4527 = vld [vmem:[#allocation22 + $0x260] sm:$0xff]
    %v4528 = vld [vmem:[#allocation22 + $0x268] sm:$0xff]
    %v4529 = vld [vmem:[#allocation22 + $0x270] sm:$0xff]
    %v4530 = vld [vmem:[#allocation22 + $0x278] sm:$0xff]
    %v4531 = vld [vmem:[#allocation22 + $0x280] sm:$0xff]
    %v4532 = vld [vmem:[#allocation22 + $0x288] sm:$0xff]
    %v4533 = vld [vmem:[#allocation22 + $0x290] sm:$0xff]
    %v4534 = vld [vmem:[#allocation22 + $0x298] sm:$0xff]
    %v4535 = vld [vmem:[#allocation22 + $0x2a0] sm:$0xff]
    %v4536 = vld [vmem:[#allocation22 + $0x2a8] sm:$0xff]
    %v4537 = vld [vmem:[#allocation22 + $0x2b0] sm:$0xff]
    %v4538 = vld [vmem:[#allocation22 + $0x2b8] sm:$0xff]
    %v4539 = vld [vmem:[#allocation22 + $0x2c0] sm:$0xff]
    %v4540 = vld [vmem:[#allocation22 + $0x2c8] sm:$0xff]
    %v4541 = vld [vmem:[#allocation22 + $0x2d0] sm:$0xff]
    %v4542 = vld [vmem:[#allocation22 + $0x2d8] sm:$0xff]
    %v4543 = vld [vmem:[#allocation22 + $0x2e0] sm:$0xff]
    %v4544 = vld [vmem:[#allocation22 + $0x2e8] sm:$0xff]
    %v4545 = vld [vmem:[#allocation22 + $0x2f0] sm:$0xff]
    %v4546 = vld [vmem:[#allocation22 + $0x2f8] sm:$0xff]
    %v4547 = vld [vmem:[#allocation22 + $0x300] sm:$0xff]
    %v4548 = vld [vmem:[#allocation22 + $0x308] sm:$0xff]
    %v4549 = vld [vmem:[#allocation22 + $0x310] sm:$0xff]
    %v4550 = vld [vmem:[#allocation22 + $0x318] sm:$0xff]
    %v4551 = vld [vmem:[#allocation22 + $0x320] sm:$0xff]
    %v4552 = vld [vmem:[#allocation22 + $0x328] sm:$0xff]
    %v4553 = vld [vmem:[#allocation22 + $0x330] sm:$0xff]
    %v4554 = vld [vmem:[#allocation22 + $0x338] sm:$0xff]
    %v4555 = vld [vmem:[#allocation22 + $0x340] sm:$0xff]
    %v4556 = vld [vmem:[#allocation22 + $0x348] sm:$0xff]
    %v4557 = vld [vmem:[#allocation22 + $0x350] sm:$0xff]
    %v4558 = vld [vmem:[#allocation22 + $0x358] sm:$0xff]
    %v4559 = vld [vmem:[#allocation22 + $0x360] sm:$0xff]
    %v4560 = vld [vmem:[#allocation22 + $0x368] sm:$0xff]
    %v4561 = vld [vmem:[#allocation22 + $0x370] sm:$0xff]
    %v4562 = vld [vmem:[#allocation22 + $0x378] sm:$0xff]
    %v4563 = vld [vmem:[#allocation22 + $0x380] sm:$0xff]
    %v4564 = vld [vmem:[#allocation22 + $0x388] sm:$0xff]
    %v4565 = vld [vmem:[#allocation22 + $0x390] sm:$0xff]
    %v4566 = vld [vmem:[#allocation22 + $0x398] sm:$0xff]
    %v4567 = vld [vmem:[#allocation22 + $0x3a0] sm:$0xff]
    %v4568 = vld [vmem:[#allocation22 + $0x3a8] sm:$0xff]
    %v4569 = vld [vmem:[#allocation22 + $0x3b0] sm:$0xff]
    %v4570 = vld [vmem:[#allocation22 + $0x3b8] sm:$0xff]
    %v4571 = vld [vmem:[#allocation22 + $0x3c0] sm:$0xff]
    %v4572 = vld [vmem:[#allocation22 + $0x3c8] sm:$0xff]
    %v4573 = vld [vmem:[#allocation22 + $0x3d0] sm:$0xff]
    %v4574 = vld [vmem:[#allocation22 + $0x3d8] sm:$0xff]
    %v4575 = vld [vmem:[#allocation22 + $0x3e0] sm:$0xff]
    %v4576 = vld [vmem:[#allocation22 + $0x3e8] sm:$0xff]
    %v4577 = vld [vmem:[#allocation22 + $0x3f0] sm:$0xff]
    %v4578 = vld [vmem:[#allocation22 + $0x3f8] sm:$0xff]
    %v4579 = vld [vmem:[#allocation23] sm:$0xf]
    %v4581 = vlaneseq
    %v4582 = vshrl.u32 %v4581, 7
    %v4583 = vsub.s32 0, %v4582
    %v4584 = vrot.slane %v4579, %v4583
    %v4585 = vlaneseq
    %v4586 = vshrl.u32 %v4585, 7
    %v4587 = vsub.s32 1, %v4586
    %v4588 = vrot.slane %v4579, %v4587
    %v4589 = vlaneseq
    %v4590 = vshrl.u32 %v4589, 7
    %v4591 = vsub.s32 2, %v4590
    %v4592 = vrot.slane %v4579, %v4591
    %v4593 = vlaneseq
    %v4594 = vshrl.u32 %v4593, 7
    %v4595 = vsub.s32 3, %v4594
    %v4596 = vrot.slane %v4579, %v4595
    %v4729 = vunpack.c.l.b16 %v4451
    %v4730 = vunpack.c.h.b16 %v4451
    %v4731 = vunpack.c.l.b16 %v4452
    %v4732 = vunpack.c.h.b16 %v4452
    %v4733 = vunpack.c.l.b16 %v4453
    %v4734 = vunpack.c.h.b16 %v4453
    %v4735 = vunpack.c.l.b16 %v4454
    %v4736 = vunpack.c.h.b16 %v4454
    %v4737 = vunpack.c.l.b16 %v4455
    %v4738 = vunpack.c.h.b16 %v4455
    %v4739 = vunpack.c.l.b16 %v4456
    %v4740 = vunpack.c.h.b16 %v4456
    %v4741 = vunpack.c.l.b16 %v4457
    %v4742 = vunpack.c.h.b16 %v4457
    %v4743 = vunpack.c.l.b16 %v4458
    %v4744 = vunpack.c.h.b16 %v4458
    %v4745 = vunpack.c.l.b16 %v4459
    %v4746 = vunpack.c.h.b16 %v4459
    %v4747 = vunpack.c.l.b16 %v4460
    %v4748 = vunpack.c.h.b16 %v4460
    %v4749 = vunpack.c.l.b16 %v4461
    %v4750 = vunpack.c.h.b16 %v4461
    %v4751 = vunpack.c.l.b16 %v4462
    %v4752 = vunpack.c.h.b16 %v4462
    %v4753 = vunpack.c.l.b16 %v4463
    %v4754 = vunpack.c.h.b16 %v4463
    %v4755 = vunpack.c.l.b16 %v4464
    %v4756 = vunpack.c.h.b16 %v4464
    %v4757 = vunpack.c.l.b16 %v4465
    %v4758 = vunpack.c.h.b16 %v4465
    %v4759 = vunpack.c.l.b16 %v4466
    %v4760 = vunpack.c.h.b16 %v4466
    %v4761 = vunpack.c.l.b16 %v4467
    %v4762 = vunpack.c.h.b16 %v4467
    %v4763 = vunpack.c.l.b16 %v4468
    %v4764 = vunpack.c.h.b16 %v4468
    %v4765 = vunpack.c.l.b16 %v4469
    %v4766 = vunpack.c.h.b16 %v4469
    %v4767 = vunpack.c.l.b16 %v4470
    %v4768 = vunpack.c.h.b16 %v4470
    %v4769 = vunpack.c.l.b16 %v4471
    %v4770 = vunpack.c.h.b16 %v4471
    %v4771 = vunpack.c.l.b16 %v4472
    %v4772 = vunpack.c.h.b16 %v4472
    %v4773 = vunpack.c.l.b16 %v4473
    %v4774 = vunpack.c.h.b16 %v4473
    %v4775 = vunpack.c.l.b16 %v4474
    %v4776 = vunpack.c.h.b16 %v4474
    %v4777 = vunpack.c.l.b16 %v4475
    %v4778 = vunpack.c.h.b16 %v4475
    %v4779 = vunpack.c.l.b16 %v4476
    %v4780 = vunpack.c.h.b16 %v4476
    %v4781 = vunpack.c.l.b16 %v4477
    %v4782 = vunpack.c.h.b16 %v4477
    %v4783 = vunpack.c.l.b16 %v4478
    %v4784 = vunpack.c.h.b16 %v4478
    %v4785 = vunpack.c.l.b16 %v4479
    %v4786 = vunpack.c.h.b16 %v4479
    %v4787 = vunpack.c.l.b16 %v4480
    %v4788 = vunpack.c.h.b16 %v4480
    %v4789 = vunpack.c.l.b16 %v4481
    %v4790 = vunpack.c.h.b16 %v4481
    %v4791 = vunpack.c.l.b16 %v4482
    %v4792 = vunpack.c.h.b16 %v4482
    %v4793 = vunpack.c.l.b16 %v4483
    %v4794 = vunpack.c.h.b16 %v4483
    %v4795 = vunpack.c.l.b16 %v4484
    %v4796 = vunpack.c.h.b16 %v4484
    %v4797 = vunpack.c.l.b16 %v4485
    %v4798 = vunpack.c.h.b16 %v4485
    %v4799 = vunpack.c.l.b16 %v4486
    %v4800 = vunpack.c.h.b16 %v4486
    %v4801 = vunpack.c.l.b16 %v4487
    %v4802 = vunpack.c.h.b16 %v4487
    %v4803 = vunpack.c.l.b16 %v4488
    %v4804 = vunpack.c.h.b16 %v4488
    %v4805 = vunpack.c.l.b16 %v4489
    %v4806 = vunpack.c.h.b16 %v4489
    %v4807 = vunpack.c.l.b16 %v4490
    %v4808 = vunpack.c.h.b16 %v4490
    %v4809 = vunpack.c.l.b16 %v4491
    %v4810 = vunpack.c.h.b16 %v4491
    %v4811 = vunpack.c.l.b16 %v4492
    %v4812 = vunpack.c.h.b16 %v4492
    %v4813 = vunpack.c.l.b16 %v4493
    %v4814 = vunpack.c.h.b16 %v4493
    %v4815 = vunpack.c.l.b16 %v4494
    %v4816 = vunpack.c.h.b16 %v4494
    %v4817 = vunpack.c.l.b16 %v4495
    %v4818 = vunpack.c.h.b16 %v4495
    %v4819 = vunpack.c.l.b16 %v4496
    %v4820 = vunpack.c.h.b16 %v4496
    %v4821 = vunpack.c.l.b16 %v4497
    %v4822 = vunpack.c.h.b16 %v4497
    %v4823 = vunpack.c.l.b16 %v4498
    %v4824 = vunpack.c.h.b16 %v4498
    %v4825 = vunpack.c.l.b16 %v4499
    %v4826 = vunpack.c.h.b16 %v4499
    %v4827 = vunpack.c.l.b16 %v4500
    %v4828 = vunpack.c.h.b16 %v4500
    %v4829 = vunpack.c.l.b16 %v4501
    %v4830 = vunpack.c.h.b16 %v4501
    %v4831 = vunpack.c.l.b16 %v4502
    %v4832 = vunpack.c.h.b16 %v4502
    %v4833 = vunpack.c.l.b16 %v4503
    %v4834 = vunpack.c.h.b16 %v4503
    %v4835 = vunpack.c.l.b16 %v4504
    %v4836 = vunpack.c.h.b16 %v4504
    %v4837 = vunpack.c.l.b16 %v4505
    %v4838 = vunpack.c.h.b16 %v4505
    %v4839 = vunpack.c.l.b16 %v4506
    %v4840 = vunpack.c.h.b16 %v4506
    %v4841 = vunpack.c.l.b16 %v4507
    %v4842 = vunpack.c.h.b16 %v4507
    %v4843 = vunpack.c.l.b16 %v4508
    %v4844 = vunpack.c.h.b16 %v4508
    %v4845 = vunpack.c.l.b16 %v4509
    %v4846 = vunpack.c.h.b16 %v4509
    %v4847 = vunpack.c.l.b16 %v4510
    %v4848 = vunpack.c.h.b16 %v4510
    %v4849 = vunpack.c.l.b16 %v4511
    %v4850 = vunpack.c.h.b16 %v4511
    %v4851 = vunpack.c.l.b16 %v4512
    %v4852 = vunpack.c.h.b16 %v4512
    %v4853 = vunpack.c.l.b16 %v4513
    %v4854 = vunpack.c.h.b16 %v4513
    %v4855 = vunpack.c.l.b16 %v4514
    %v4856 = vunpack.c.h.b16 %v4514
    %v4857 = vunpack.c.l.b16 %v4515
    %v4858 = vunpack.c.h.b16 %v4515
    %v4859 = vunpack.c.l.b16 %v4516
    %v4860 = vunpack.c.h.b16 %v4516
    %v4861 = vunpack.c.l.b16 %v4517
    %v4862 = vunpack.c.h.b16 %v4517
    %v4863 = vunpack.c.l.b16 %v4518
    %v4864 = vunpack.c.h.b16 %v4518
    %v4865 = vunpack.c.l.b16 %v4519
    %v4866 = vunpack.c.h.b16 %v4519
    %v4867 = vunpack.c.l.b16 %v4520
    %v4868 = vunpack.c.h.b16 %v4520
    %v4869 = vunpack.c.l.b16 %v4521
    %v4870 = vunpack.c.h.b16 %v4521
    %v4871 = vunpack.c.l.b16 %v4522
    %v4872 = vunpack.c.h.b16 %v4522
    %v4873 = vunpack.c.l.b16 %v4523
    %v4874 = vunpack.c.h.b16 %v4523
    %v4875 = vunpack.c.l.b16 %v4524
    %v4876 = vunpack.c.h.b16 %v4524
    %v4877 = vunpack.c.l.b16 %v4525
    %v4878 = vunpack.c.h.b16 %v4525
    %v4879 = vunpack.c.l.b16 %v4526
    %v4880 = vunpack.c.h.b16 %v4526
    %v4881 = vunpack.c.l.b16 %v4527
    %v4882 = vunpack.c.h.b16 %v4527
    %v4883 = vunpack.c.l.b16 %v4528
    %v4884 = vunpack.c.h.b16 %v4528
    %v4885 = vunpack.c.l.b16 %v4529
    %v4886 = vunpack.c.h.b16 %v4529
    %v4887 = vunpack.c.l.b16 %v4530
    %v4888 = vunpack.c.h.b16 %v4530
    %v4889 = vunpack.c.l.b16 %v4531
    %v4890 = vunpack.c.h.b16 %v4531
    %v4891 = vunpack.c.l.b16 %v4532
    %v4892 = vunpack.c.h.b16 %v4532
    %v4893 = vunpack.c.l.b16 %v4533
    %v4894 = vunpack.c.h.b16 %v4533
    %v4895 = vunpack.c.l.b16 %v4534
    %v4896 = vunpack.c.h.b16 %v4534
    %v4897 = vunpack.c.l.b16 %v4535
    %v4898 = vunpack.c.h.b16 %v4535
    %v4899 = vunpack.c.l.b16 %v4536
    %v4900 = vunpack.c.h.b16 %v4536
    %v4901 = vunpack.c.l.b16 %v4537
    %v4902 = vunpack.c.h.b16 %v4537
    %v4903 = vunpack.c.l.b16 %v4538
    %v4904 = vunpack.c.h.b16 %v4538
    %v4905 = vunpack.c.l.b16 %v4539
    %v4906 = vunpack.c.h.b16 %v4539
    %v4907 = vunpack.c.l.b16 %v4540
    %v4908 = vunpack.c.h.b16 %v4540
    %v4909 = vunpack.c.l.b16 %v4541
    %v4910 = vunpack.c.h.b16 %v4541
    %v4911 = vunpack.c.l.b16 %v4542
    %v4912 = vunpack.c.h.b16 %v4542
    %v4913 = vunpack.c.l.b16 %v4543
    %v4914 = vunpack.c.h.b16 %v4543
    %v4915 = vunpack.c.l.b16 %v4544
    %v4916 = vunpack.c.h.b16 %v4544
    %v4917 = vunpack.c.l.b16 %v4545
    %v4918 = vunpack.c.h.b16 %v4545
    %v4919 = vunpack.c.l.b16 %v4546
    %v4920 = vunpack.c.h.b16 %v4546
    %v4921 = vunpack.c.l.b16 %v4547
    %v4922 = vunpack.c.h.b16 %v4547
    %v4923 = vunpack.c.l.b16 %v4548
    %v4924 = vunpack.c.h.b16 %v4548
    %v4925 = vunpack.c.l.b16 %v4549
    %v4926 = vunpack.c.h.b16 %v4549
    %v4927 = vunpack.c.l.b16 %v4550
    %v4928 = vunpack.c.h.b16 %v4550
    %v4929 = vunpack.c.l.b16 %v4551
    %v4930 = vunpack.c.h.b16 %v4551
    %v4931 = vunpack.c.l.b16 %v4552
    %v4932 = vunpack.c.h.b16 %v4552
    %v4933 = vunpack.c.l.b16 %v4553
    %v4934 = vunpack.c.h.b16 %v4553
    %v4935 = vunpack.c.l.b16 %v4554
    %v4936 = vunpack.c.h.b16 %v4554
    %v4937 = vunpack.c.l.b16 %v4555
    %v4938 = vunpack.c.h.b16 %v4555
    %v4939 = vunpack.c.l.b16 %v4556
    %v4940 = vunpack.c.h.b16 %v4556
    %v4941 = vunpack.c.l.b16 %v4557
    %v4942 = vunpack.c.h.b16 %v4557
    %v4943 = vunpack.c.l.b16 %v4558
    %v4944 = vunpack.c.h.b16 %v4558
    %v4945 = vunpack.c.l.b16 %v4559
    %v4946 = vunpack.c.h.b16 %v4559
    %v4947 = vunpack.c.l.b16 %v4560
    %v4948 = vunpack.c.h.b16 %v4560
    %v4949 = vunpack.c.l.b16 %v4561
    %v4950 = vunpack.c.h.b16 %v4561
    %v4951 = vunpack.c.l.b16 %v4562
    %v4952 = vunpack.c.h.b16 %v4562
    %v4953 = vunpack.c.l.b16 %v4563
    %v4954 = vunpack.c.h.b16 %v4563
    %v4955 = vunpack.c.l.b16 %v4564
    %v4956 = vunpack.c.h.b16 %v4564
    %v4957 = vunpack.c.l.b16 %v4565
    %v4958 = vunpack.c.h.b16 %v4565
    %v4959 = vunpack.c.l.b16 %v4566
    %v4960 = vunpack.c.h.b16 %v4566
    %v4961 = vunpack.c.l.b16 %v4567
    %v4962 = vunpack.c.h.b16 %v4567
    %v4963 = vunpack.c.l.b16 %v4568
    %v4964 = vunpack.c.h.b16 %v4568
    %v4965 = vunpack.c.l.b16 %v4569
    %v4966 = vunpack.c.h.b16 %v4569
    %v4967 = vunpack.c.l.b16 %v4570
    %v4968 = vunpack.c.h.b16 %v4570
    %v4969 = vunpack.c.l.b16 %v4571
    %v4970 = vunpack.c.h.b16 %v4571
    %v4971 = vunpack.c.l.b16 %v4572
    %v4972 = vunpack.c.h.b16 %v4572
    %v4973 = vunpack.c.l.b16 %v4573
    %v4974 = vunpack.c.h.b16 %v4573
    %v4975 = vunpack.c.l.b16 %v4574
    %v4976 = vunpack.c.h.b16 %v4574
    %v4977 = vunpack.c.l.b16 %v4575
    %v4978 = vunpack.c.h.b16 %v4575
    %v4979 = vunpack.c.l.b16 %v4576
    %v4980 = vunpack.c.h.b16 %v4576
    %v4981 = vunpack.c.l.b16 %v4577
    %v4982 = vunpack.c.h.b16 %v4577
    %v4983 = vunpack.c.l.b16 %v4578
    %v4984 = vunpack.c.h.b16 %v4578
    %v4985 = vpack.c.b16 %v4733, %v4729
    %v4986 = vpack.c.b16 %v4734, %v4730
    %v4987 = vpack.c.b16 %v4735, %v4731
    %v4988 = vpack.c.b16 %v4736, %v4732
    %v4989 = vpack.c.b16 %v4741, %v4737
    %v4990 = vpack.c.b16 %v4742, %v4738
    %v4991 = vpack.c.b16 %v4743, %v4739
    %v4992 = vpack.c.b16 %v4744, %v4740
    %v4993 = vpack.c.b16 %v4749, %v4745
    %v4994 = vpack.c.b16 %v4750, %v4746
    %v4995 = vpack.c.b16 %v4751, %v4747
    %v4996 = vpack.c.b16 %v4752, %v4748
    %v4997 = vpack.c.b16 %v4757, %v4753
    %v4998 = vpack.c.b16 %v4758, %v4754
    %v4999 = vpack.c.b16 %v4759, %v4755
    %v5000 = vpack.c.b16 %v4760, %v4756
    %v5001 = vpack.c.b16 %v4765, %v4761
    %v5002 = vpack.c.b16 %v4766, %v4762
    %v5003 = vpack.c.b16 %v4767, %v4763
    %v5004 = vpack.c.b16 %v4768, %v4764
    %v5005 = vpack.c.b16 %v4773, %v4769
    %v5006 = vpack.c.b16 %v4774, %v4770
    %v5007 = vpack.c.b16 %v4775, %v4771
    %v5008 = vpack.c.b16 %v4776, %v4772
    %v5009 = vpack.c.b16 %v4781, %v4777
    %v5010 = vpack.c.b16 %v4782, %v4778
    %v5011 = vpack.c.b16 %v4783, %v4779
    %v5012 = vpack.c.b16 %v4784, %v4780
    %v5013 = vpack.c.b16 %v4789, %v4785
    %v5014 = vpack.c.b16 %v4790, %v4786
    %v5015 = vpack.c.b16 %v4791, %v4787
    %v5016 = vpack.c.b16 %v4792, %v4788
    %v5017 = vpack.c.b16 %v4797, %v4793
    %v5018 = vpack.c.b16 %v4798, %v4794
    %v5019 = vpack.c.b16 %v4799, %v4795
    %v5020 = vpack.c.b16 %v4800, %v4796
    %v5021 = vpack.c.b16 %v4805, %v4801
    %v5022 = vpack.c.b16 %v4806, %v4802
    %v5023 = vpack.c.b16 %v4807, %v4803
    %v5024 = vpack.c.b16 %v4808, %v4804
    %v5025 = vpack.c.b16 %v4813, %v4809
    %v5026 = vpack.c.b16 %v4814, %v4810
    %v5027 = vpack.c.b16 %v4815, %v4811
    %v5028 = vpack.c.b16 %v4816, %v4812
    %v5029 = vpack.c.b16 %v4821, %v4817
    %v5030 = vpack.c.b16 %v4822, %v4818
    %v5031 = vpack.c.b16 %v4823, %v4819
    %v5032 = vpack.c.b16 %v4824, %v4820
    %v5033 = vpack.c.b16 %v4829, %v4825
    %v5034 = vpack.c.b16 %v4830, %v4826
    %v5035 = vpack.c.b16 %v4831, %v4827
    %v5036 = vpack.c.b16 %v4832, %v4828
    %v5037 = vpack.c.b16 %v4837, %v4833
    %v5038 = vpack.c.b16 %v4838, %v4834
    %v5039 = vpack.c.b16 %v4839, %v4835
    %v5040 = vpack.c.b16 %v4840, %v4836
    %v5041 = vpack.c.b16 %v4845, %v4841
    %v5042 = vpack.c.b16 %v4846, %v4842
    %v5043 = vpack.c.b16 %v4847, %v4843
    %v5044 = vpack.c.b16 %v4848, %v4844
    %v5045 = vpack.c.b16 %v4853, %v4849
    %v5046 = vpack.c.b16 %v4854, %v4850
    %v5047 = vpack.c.b16 %v4855, %v4851
    %v5048 = vpack.c.b16 %v4856, %v4852
    %v5049 = vpack.c.b16 %v4861, %v4857
    %v5050 = vpack.c.b16 %v4862, %v4858
    %v5051 = vpack.c.b16 %v4863, %v4859
    %v5052 = vpack.c.b16 %v4864, %v4860
    %v5053 = vpack.c.b16 %v4869, %v4865
    %v5054 = vpack.c.b16 %v4870, %v4866
    %v5055 = vpack.c.b16 %v4871, %v4867
    %v5056 = vpack.c.b16 %v4872, %v4868
    %v5057 = vpack.c.b16 %v4877, %v4873
    %v5058 = vpack.c.b16 %v4878, %v4874
    %v5059 = vpack.c.b16 %v4879, %v4875
    %v5060 = vpack.c.b16 %v4880, %v4876
    %v5061 = vpack.c.b16 %v4885, %v4881
    %v5062 = vpack.c.b16 %v4886, %v4882
    %v5063 = vpack.c.b16 %v4887, %v4883
    %v5064 = vpack.c.b16 %v4888, %v4884
    %v5065 = vpack.c.b16 %v4893, %v4889
    %v5066 = vpack.c.b16 %v4894, %v4890
    %v5067 = vpack.c.b16 %v4895, %v4891
    %v5068 = vpack.c.b16 %v4896, %v4892
    %v5069 = vpack.c.b16 %v4901, %v4897
    %v5070 = vpack.c.b16 %v4902, %v4898
    %v5071 = vpack.c.b16 %v4903, %v4899
    %v5072 = vpack.c.b16 %v4904, %v4900
    %v5073 = vpack.c.b16 %v4909, %v4905
    %v5074 = vpack.c.b16 %v4910, %v4906
    %v5075 = vpack.c.b16 %v4911, %v4907
    %v5076 = vpack.c.b16 %v4912, %v4908
    %v5077 = vpack.c.b16 %v4917, %v4913
    %v5078 = vpack.c.b16 %v4918, %v4914
    %v5079 = vpack.c.b16 %v4919, %v4915
    %v5080 = vpack.c.b16 %v4920, %v4916
    %v5081 = vpack.c.b16 %v4925, %v4921
    %v5082 = vpack.c.b16 %v4926, %v4922
    %v5083 = vpack.c.b16 %v4927, %v4923
    %v5084 = vpack.c.b16 %v4928, %v4924
    %v5085 = vpack.c.b16 %v4933, %v4929
    %v5086 = vpack.c.b16 %v4934, %v4930
    %v5087 = vpack.c.b16 %v4935, %v4931
    %v5088 = vpack.c.b16 %v4936, %v4932
    %v5089 = vpack.c.b16 %v4941, %v4937
    %v5090 = vpack.c.b16 %v4942, %v4938
    %v5091 = vpack.c.b16 %v4943, %v4939
    %v5092 = vpack.c.b16 %v4944, %v4940
    %v5093 = vpack.c.b16 %v4949, %v4945
    %v5094 = vpack.c.b16 %v4950, %v4946
    %v5095 = vpack.c.b16 %v4951, %v4947
    %v5096 = vpack.c.b16 %v4952, %v4948
    %v5097 = vpack.c.b16 %v4957, %v4953
    %v5098 = vpack.c.b16 %v4958, %v4954
    %v5099 = vpack.c.b16 %v4959, %v4955
    %v5100 = vpack.c.b16 %v4960, %v4956
    %v5101 = vpack.c.b16 %v4965, %v4961
    %v5102 = vpack.c.b16 %v4966, %v4962
    %v5103 = vpack.c.b16 %v4967, %v4963
    %v5104 = vpack.c.b16 %v4968, %v4964
    %v5105 = vpack.c.b16 %v4973, %v4969
    %v5106 = vpack.c.b16 %v4974, %v4970
    %v5107 = vpack.c.b16 %v4975, %v4971
    %v5108 = vpack.c.b16 %v4976, %v4972
    %v5109 = vpack.c.b16 %v4981, %v4977
    %v5110 = vpack.c.b16 %v4982, %v4978
    %v5111 = vpack.c.b16 %v4983, %v4979
    %v5112 = vpack.c.b16 %v4984, %v4980
    %5241 = vmatprep.subr.bf16.mxu0 %v5014
    %5242 = vmatpush1.bf16.msra.mxu0 %v5013
    %5243 = vmatprep.subr.bf16.mxu0 %v5010
    %5244 = vmatpush1.bf16.msra.mxu0 %v5009
    %5245 = vmatprep.subr.bf16.mxu0 %v5006
    %5246 = vmatpush1.bf16.msra.mxu0 %v5005
    %5247 = vmatprep.subr.bf16.mxu0 %v5002
    %5248 = vmatpush1.bf16.msra.mxu0 %v5001
    %5249 = vmatprep.subr.bf16.mxu0 %v4998
    %5250 = vmatpush1.bf16.msra.mxu0 %v4997
    %5251 = vmatprep.subr.bf16.mxu0 %v4994
    %5252 = vmatpush1.bf16.msra.mxu0 %v4993
    %5253 = vmatprep.subr.bf16.mxu0 %v4990
    %5254 = vmatpush1.bf16.msra.mxu0 %v4989
    %5255 = vmatprep.subr.bf16.mxu0 %v4986
    %5256 = vmatpush1.bf16.msra.mxu0 %v4985
    %5257 = vmatprep.subr.bf16.mxu0 %v5046
    %5258 = vmatpush2.bf16.msra.mxu0 %v5045
    %5259 = vmatprep.subr.bf16.mxu0 %v5042
    %5260 = vmatpush2.bf16.msra.mxu0 %v5041
    %5261 = vmatprep.subr.bf16.mxu0 %v5038
    %5262 = vmatpush2.bf16.msra.mxu0 %v5037
    %5263 = vmatprep.subr.bf16.mxu0 %v5034
    %5264 = vmatpush2.bf16.msra.mxu0 %v5033
    %5265 = vmatprep.subr.bf16.mxu0 %v5030
    %5266 = vmatpush2.bf16.msra.mxu0 %v5029
    %5267 = vmatprep.subr.bf16.mxu0 %v5026
    %5268 = vmatpush2.bf16.msra.mxu0 %v5025
    %5269 = vmatprep.subr.bf16.mxu0 %v5022
    %5270 = vmatpush2.bf16.msra.mxu0 %v5021
    %5271 = vmatprep.subr.bf16.mxu0 %v5018
    %5272 = vmatpush2.bf16.msra.mxu0 %v5017
    %5273 = vmatprep.mubr.bf16.mxu0 %v4448
    %5274 = vmatmul.mubr.bf16.gmra.mxu0 %v4447
    %v5275 = vpop.f32.mrf.mxu0
    %v5276 = vadd.f32 %v4584, %v5275
    %v5277 = vpop.f32.mrf.mxu0
    %v5278 = vadd.f32 %v4588, %v5277
    %v5279 = vpop.f32.mrf.mxu0
    %v5280 = vadd.f32 %v4584, %v5279
    %v5281 = vpop.f32.mrf.mxu0
    %v5282 = vadd.f32 %v4588, %v5281
    %5283 = vdwg.mxu0
    %5284 = vmatprep.subr.bf16.mxu0 %v5078
    %5285 = vmatpush1.bf16.msra.mxu0 %v5077
    %5286 = vmatprep.subr.bf16.mxu0 %v5074
    %5287 = vmatpush1.bf16.msra.mxu0 %v5073
    %5288 = vmatprep.subr.bf16.mxu0 %v5070
    %5289 = vmatpush1.bf16.msra.mxu0 %v5069
    %5290 = vmatprep.subr.bf16.mxu0 %v5066
    %5291 = vmatpush1.bf16.msra.mxu0 %v5065
    %5292 = vmatprep.subr.bf16.mxu0 %v5062
    %5293 = vmatpush1.bf16.msra.mxu0 %v5061
    %5294 = vmatprep.subr.bf16.mxu0 %v5058
    %5295 = vmatpush1.bf16.msra.mxu0 %v5057
    %5296 = vmatprep.subr.bf16.mxu0 %v5054
    %5297 = vmatpush1.bf16.msra.mxu0 %v5053
    %5298 = vmatprep.subr.bf16.mxu0 %v5050
    %5299 = vmatpush1.bf16.msra.mxu0 %v5049
    %5300 = vmatprep.subr.bf16.mxu0 %v5110
    %5301 = vmatpush2.bf16.msra.mxu0 %v5109
    %5302 = vmatprep.subr.bf16.mxu0 %v5106
    %5303 = vmatpush2.bf16.msra.mxu0 %v5105
    %5304 = vmatprep.subr.bf16.mxu0 %v5102
    %5305 = vmatpush2.bf16.msra.mxu0 %v5101
    %5306 = vmatprep.subr.bf16.mxu0 %v5098
    %5307 = vmatpush2.bf16.msra.mxu0 %v5097
    %5308 = vmatprep.subr.bf16.mxu0 %v5094
    %5309 = vmatpush2.bf16.msra.mxu0 %v5093
    %5310 = vmatprep.subr.bf16.mxu0 %v5090
    %5311 = vmatpush2.bf16.msra.mxu0 %v5089
    %5312 = vmatprep.subr.bf16.mxu0 %v5086
    %5313 = vmatpush2.bf16.msra.mxu0 %v5085
    %5314 = vmatprep.subr.bf16.mxu0 %v5082
    %5315 = vmatpush2.bf16.msra.mxu0 %v5081
    %5316 = vmatprep.mubr.bf16.mxu0 %v4450
    %5317 = vmatmul.mubr.bf16.gmra.mxu0 %v4449
    %v5318 = vpop.f32.mrf.mxu0
    %v5319 = vadd.f32 %v5276, %v5318
    %v5320 = vpop.f32.mrf.mxu0
    %v5321 = vadd.f32 %v5278, %v5320
    %v5322 = vpop.f32.mrf.mxu0
    %v5323 = vadd.f32 %v5280, %v5322
    %v5324 = vpop.f32.mrf.mxu0
    %v5325 = vadd.f32 %v5282, %v5324
    %5326 = vdwg.mxu0
    %5327 = vmatprep.subr.bf16.mxu0 %v5016
    %5328 = vmatpush1.bf16.msra.mxu0 %v5015
    %5329 = vmatprep.subr.bf16.mxu0 %v5012
    %5330 = vmatpush1.bf16.msra.mxu0 %v5011
    %5331 = vmatprep.subr.bf16.mxu0 %v5008
    %5332 = vmatpush1.bf16.msra.mxu0 %v5007
    %5333 = vmatprep.subr.bf16.mxu0 %v5004
    %5334 = vmatpush1.bf16.msra.mxu0 %v5003
    %5335 = vmatprep.subr.bf16.mxu0 %v5000
    %5336 = vmatpush1.bf16.msra.mxu0 %v4999
    %5337 = vmatprep.subr.bf16.mxu0 %v4996
    %5338 = vmatpush1.bf16.msra.mxu0 %v4995
    %5339 = vmatprep.subr.bf16.mxu0 %v4992
    %5340 = vmatpush1.bf16.msra.mxu0 %v4991
    %5341 = vmatprep.subr.bf16.mxu0 %v4988
    %5342 = vmatpush1.bf16.msra.mxu0 %v4987
    %5343 = vmatprep.subr.bf16.mxu0 %v5048
    %5344 = vmatpush2.bf16.msra.mxu0 %v5047
    %5345 = vmatprep.subr.bf16.mxu0 %v5044
    %5346 = vmatpush2.bf16.msra.mxu0 %v5043
    %5347 = vmatprep.subr.bf16.mxu0 %v5040
    %5348 = vmatpush2.bf16.msra.mxu0 %v5039
    %5349 = vmatprep.subr.bf16.mxu0 %v5036
    %5350 = vmatpush2.bf16.msra.mxu0 %v5035
    %5351 = vmatprep.subr.bf16.mxu0 %v5032
    %5352 = vmatpush2.bf16.msra.mxu0 %v5031
    %5353 = vmatprep.subr.bf16.mxu0 %v5028
    %5354 = vmatpush2.bf16.msra.mxu0 %v5027
    %5355 = vmatprep.subr.bf16.mxu0 %v5024
    %5356 = vmatpush2.bf16.msra.mxu0 %v5023
    %5357 = vmatprep.subr.bf16.mxu0 %v5020
    %5358 = vmatpush2.bf16.msra.mxu0 %v5019
    %5359 = vmatprep.mubr.bf16.mxu0 %v4448
    %5360 = vmatmul.mubr.bf16.gmra.mxu0 %v4447
    %v5361 = vpop.f32.mrf.mxu0
    %v5362 = vadd.f32 %v4592, %v5361
    %v5363 = vpop.f32.mrf.mxu0
    %v5364 = vadd.f32 %v4596, %v5363
    %v5365 = vpop.f32.mrf.mxu0
    %v5366 = vadd.f32 %v4592, %v5365
    %v5367 = vpop.f32.mrf.mxu0
    %v5368 = vadd.f32 %v4596, %v5367
    %5369 = vdwg.mxu0
    %5370 = vmatprep.subr.bf16.mxu0 %v5080
    %5371 = vmatpush1.bf16.msra.mxu0 %v5079
    %5372 = vmatprep.subr.bf16.mxu0 %v5076
    %5373 = vmatpush1.bf16.msra.mxu0 %v5075
    %5374 = vmatprep.subr.bf16.mxu0 %v5072
    %5375 = vmatpush1.bf16.msra.mxu0 %v5071
    %5376 = vmatprep.subr.bf16.mxu0 %v5068
    %5377 = vmatpush1.bf16.msra.mxu0 %v5067
    %5378 = vmatprep.subr.bf16.mxu0 %v5064
    %5379 = vmatpush1.bf16.msra.mxu0 %v5063
    %5380 = vmatprep.subr.bf16.mxu0 %v5060
    %5381 = vmatpush1.bf16.msra.mxu0 %v5059
    %5382 = vmatprep.subr.bf16.mxu0 %v5056
    %5383 = vmatpush1.bf16.msra.mxu0 %v5055
    %5384 = vmatprep.subr.bf16.mxu0 %v5052
    %5385 = vmatpush1.bf16.msra.mxu0 %v5051
    %5386 = vmatprep.subr.bf16.mxu0 %v5112
    %5387 = vmatpush2.bf16.msra.mxu0 %v5111
    %5388 = vmatprep.subr.bf16.mxu0 %v5108
    %5389 = vmatpush2.bf16.msra.mxu0 %v5107
    %5390 = vmatprep.subr.bf16.mxu0 %v5104
    %5391 = vmatpush2.bf16.msra.mxu0 %v5103
    %5392 = vmatprep.subr.bf16.mxu0 %v5100
    %5393 = vmatpush2.bf16.msra.mxu0 %v5099
    %5394 = vmatprep.subr.bf16.mxu0 %v5096
    %5395 = vmatpush2.bf16.msra.mxu0 %v5095
    %5396 = vmatprep.subr.bf16.mxu0 %v5092
    %5397 = vmatpush2.bf16.msra.mxu0 %v5091
    %5398 = vmatprep.subr.bf16.mxu0 %v5088
    %5399 = vmatpush2.bf16.msra.mxu0 %v5087
    %5400 = vmatprep.subr.bf16.mxu0 %v5084
    %5401 = vmatpush2.bf16.msra.mxu0 %v5083
    %5402 = vmatprep.mubr.bf16.mxu0 %v4450
    %5403 = vmatmul.mubr.bf16.gmra.mxu0 %v4449
    %v5404 = vpop.f32.mrf.mxu0
    %v5405 = vadd.f32 %v5362, %v5404
    %v5406 = vpop.f32.mrf.mxu0
    %v5407 = vadd.f32 %v5364, %v5406
    %v5408 = vpop.f32.mrf.mxu0
    %v5409 = vadd.f32 %v5366, %v5408
    %v5410 = vpop.f32.mrf.mxu0
    %v5411 = vadd.f32 %v5368, %v5410
    %5412 = vdwg.mxu0
    %v5413 = vld [vmem:[#allocation25] sm:$0xf]
    %v5414 = vld [vmem:[#allocation26] sm:$0xf]
    %v5415 = vadd.f32 %v5319, %v5321
    %v5416 = vadd.f32 %v5415, %v5405
    %v5417 = vadd.f32 %v5416, %v5407
    %5418 = vadd.xlane.f32.xlu0 %v5417
    %v5419 = vpop.xlane.xlu0 %5418
    %v5420 = vadd.f32 %v5323, %v5325
    %v5421 = vadd.f32 %v5420, %v5409
    %v5422 = vadd.f32 %v5421, %v5411
    %5423 = vadd.xlane.f32.xlu0 %v5422
    %v5424 = vpop.xlane.xlu0 %5423
    %v5425 = vmul.f32 %v5419, %v2166
    %v5426 = vmul.f32 %v5424, %v2166
    %v5427 = vsub.f32 %v5319, %v5425
    %v5428 = vsub.f32 %v5321, %v5425
    %v5429 = vsub.f32 %v5405, %v5425
    %v5430 = vsub.f32 %v5407, %v5425
    %v5431 = vsub.f32 %v5323, %v5426
    %v5432 = vsub.f32 %v5325, %v5426
    %v5433 = vsub.f32 %v5409, %v5426
    %v5434 = vsub.f32 %v5411, %v5426
    %v5435 = vmul.f32 %v5427, %v5427
    %v5436 = vmul.f32 %v5428, %v5428
    %v5437 = vmul.f32 %v5429, %v5429
    %v5438 = vmul.f32 %v5430, %v5430
    %v5439 = vmul.f32 %v5431, %v5431
    %v5440 = vmul.f32 %v5432, %v5432
    %v5441 = vmul.f32 %v5433, %v5433
    %v5442 = vmul.f32 %v5434, %v5434
    %v5443 = vadd.f32 %v5435, %v5436
    %v5444 = vadd.f32 %v5443, %v5437
    %v5445 = vadd.f32 %v5444, %v5438
    %5446 = vadd.xlane.f32.xlu0 %v5445
    %v5447 = vpop.xlane.xlu0 %5446
    %v5448 = vadd.f32 %v5439, %v5440
    %v5449 = vadd.f32 %v5448, %v5441
    %v5450 = vadd.f32 %v5449, %v5442
    %5451 = vadd.xlane.f32.xlu0 %v5450
    %v5452 = vpop.xlane.xlu0 %5451
    %v5453 = vmul.f32 %v5447, %v2166
    %v5454 = vmul.f32 %v5452, %v2166
    %v5455 = vadd.f32 %v5453, 1e-05
    %v5456 = vadd.f32 %v5454, 1e-05
    %v5457 = vrsqrt.pop %v5455
    %v5458 = vrsqrt.pop %v5456
    %v5459 = vmul.f32 %v5427, %v5457
    %v5460 = vmul.f32 %v5428, %v5457
    %v5461 = vmul.f32 %v5429, %v5457
    %v5462 = vmul.f32 %v5430, %v5457
    %v5463 = vmul.f32 %v5431, %v5458
    %v5464 = vmul.f32 %v5432, %v5458
    %v5465 = vmul.f32 %v5433, %v5458
    %v5466 = vmul.f32 %v5434, %v5458
    %v5468 = vlaneseq
    %v5469 = vshrl.u32 %v5468, 7
    %v5470 = vsub.s32 0, %v5469
    %v5471 = vrot.slane %v5413, %v5470
    %v5472 = vlaneseq
    %v5473 = vshrl.u32 %v5472, 7
    %v5474 = vsub.s32 1, %v5473
    %v5475 = vrot.slane %v5413, %v5474
    %v5476 = vlaneseq
    %v5477 = vshrl.u32 %v5476, 7
    %v5478 = vsub.s32 2, %v5477
    %v5479 = vrot.slane %v5413, %v5478
    %v5480 = vlaneseq
    %v5481 = vshrl.u32 %v5480, 7
    %v5482 = vsub.s32 3, %v5481
    %v5483 = vrot.slane %v5413, %v5482
    %v5488 = vmul.f32 %v5459, %v5471
    %v5489 = vmul.f32 %v5460, %v5475
    %v5490 = vmul.f32 %v5461, %v5479
    %v5491 = vmul.f32 %v5462, %v5483
    %v5492 = vmul.f32 %v5463, %v5471
    %v5493 = vmul.f32 %v5464, %v5475
    %v5494 = vmul.f32 %v5465, %v5479
    %v5495 = vmul.f32 %v5466, %v5483
    %v5497 = vlaneseq
    %v5498 = vshrl.u32 %v5497, 7
    %v5499 = vsub.s32 0, %v5498
    %v5500 = vrot.slane %v5414, %v5499
    %v5501 = vlaneseq
    %v5502 = vshrl.u32 %v5501, 7
    %v5503 = vsub.s32 1, %v5502
    %v5504 = vrot.slane %v5414, %v5503
    %v5505 = vlaneseq
    %v5506 = vshrl.u32 %v5505, 7
    %v5507 = vsub.s32 2, %v5506
    %v5508 = vrot.slane %v5414, %v5507
    %v5509 = vlaneseq
    %v5510 = vshrl.u32 %v5509, 7
    %v5511 = vsub.s32 3, %v5510
    %v5512 = vrot.slane %v5414, %v5511
    %v5517 = vadd.f32 %v5488, %v5500
    %v5518 = vadd.f32 %v5489, %v5504
    %v5519 = vadd.f32 %v5490, %v5508
    %v5520 = vadd.f32 %v5491, %v5512
    %v5521 = vadd.f32 %v5492, %v5500
    %v5522 = vadd.f32 %v5493, %v5504
    %v5523 = vadd.f32 %v5494, %v5508
    %v5524 = vadd.f32 %v5495, %v5512
    %v5525 = vmax.f32 %v5517, 0.0
    %v5526 = vmax.f32 %v5518, 0.0
    %v5527 = vmax.f32 %v5519, 0.0
    %v5528 = vmax.f32 %v5520, 0.0
    %v5529 = vmax.f32 %v5521, 0.0
    %v5530 = vmax.f32 %v5522, 0.0
    %v5531 = vmax.f32 %v5523, 0.0
    %v5532 = vmax.f32 %v5524, 0.0
    %v5533 = vpack.c.bf16 %v5529, %v5525
    %v5534 = vpack.c.bf16 %v5530, %v5526
    %v5535 = vpack.c.bf16 %v5531, %v5527
    %v5536 = vpack.c.bf16 %v5532, %v5528
    %v5537 = vld [vmem:[#allocation28] sm:$0xf]
    %v5538 = vld [vmem:[#allocation28 + $0x4] sm:$0xf]
    %v5539 = vld [vmem:[#allocation28 + $0x8] sm:$0xf]
    %v5540 = vld [vmem:[#allocation28 + $0xc] sm:$0xf]
    %v5541 = vld [vmem:[#allocation28 + $0x10] sm:$0xf]
    %v5542 = vld [vmem:[#allocation28 + $0x14] sm:$0xf]
    %v5543 = vld [vmem:[#allocation28 + $0x18] sm:$0xf]
    %v5544 = vld [vmem:[#allocation28 + $0x1c] sm:$0xf]
    %v5545 = vld [vmem:[#allocation28 + $0x20] sm:$0xf]
    %v5546 = vld [vmem:[#allocation28 + $0x24] sm:$0xf]
    %v5547 = vld [vmem:[#allocation28 + $0x28] sm:$0xf]
    %v5548 = vld [vmem:[#allocation28 + $0x2c] sm:$0xf]
    %v5549 = vld [vmem:[#allocation28 + $0x30] sm:$0xf]
    %v5550 = vld [vmem:[#allocation28 + $0x34] sm:$0xf]
    %v5551 = vld [vmem:[#allocation28 + $0x38] sm:$0xf]
    %v5552 = vld [vmem:[#allocation28 + $0x3c] sm:$0xf]
    %v5553 = vld [vmem:[#allocation28 + $0x40] sm:$0xf]
    %v5554 = vld [vmem:[#allocation28 + $0x44] sm:$0xf]
    %v5555 = vld [vmem:[#allocation28 + $0x48] sm:$0xf]
    %v5556 = vld [vmem:[#allocation28 + $0x4c] sm:$0xf]
    %v5557 = vld [vmem:[#allocation28 + $0x50] sm:$0xf]
    %v5558 = vld [vmem:[#allocation28 + $0x54] sm:$0xf]
    %v5559 = vld [vmem:[#allocation28 + $0x58] sm:$0xf]
    %v5560 = vld [vmem:[#allocation28 + $0x5c] sm:$0xf]
    %v5561 = vld [vmem:[#allocation28 + $0x60] sm:$0xf]
    %v5562 = vld [vmem:[#allocation28 + $0x64] sm:$0xf]
    %v5563 = vld [vmem:[#allocation28 + $0x68] sm:$0xf]
    %v5564 = vld [vmem:[#allocation28 + $0x6c] sm:$0xf]
    %v5565 = vld [vmem:[#allocation28 + $0x70] sm:$0xf]
    %v5566 = vld [vmem:[#allocation28 + $0x74] sm:$0xf]
    %v5567 = vld [vmem:[#allocation28 + $0x78] sm:$0xf]
    %v5568 = vld [vmem:[#allocation28 + $0x7c] sm:$0xf]
    %v5569 = vld [vmem:[#allocation28 + $0x80] sm:$0xf]
    %v5570 = vld [vmem:[#allocation28 + $0x84] sm:$0xf]
    %v5571 = vld [vmem:[#allocation28 + $0x88] sm:$0xf]
    %v5572 = vld [vmem:[#allocation28 + $0x8c] sm:$0xf]
    %v5573 = vld [vmem:[#allocation28 + $0x90] sm:$0xf]
    %v5574 = vld [vmem:[#allocation28 + $0x94] sm:$0xf]
    %v5575 = vld [vmem:[#allocation28 + $0x98] sm:$0xf]
    %v5576 = vld [vmem:[#allocation28 + $0x9c] sm:$0xf]
    %v5577 = vld [vmem:[#allocation28 + $0xa0] sm:$0xf]
    %v5578 = vld [vmem:[#allocation28 + $0xa4] sm:$0xf]
    %v5579 = vld [vmem:[#allocation28 + $0xa8] sm:$0xf]
    %v5580 = vld [vmem:[#allocation28 + $0xac] sm:$0xf]
    %v5581 = vld [vmem:[#allocation28 + $0xb0] sm:$0xf]
    %v5582 = vld [vmem:[#allocation28 + $0xb4] sm:$0xf]
    %v5583 = vld [vmem:[#allocation28 + $0xb8] sm:$0xf]
    %v5584 = vld [vmem:[#allocation28 + $0xbc] sm:$0xf]
    %v5585 = vld [vmem:[#allocation28 + $0xc0] sm:$0xf]
    %v5586 = vld [vmem:[#allocation28 + $0xc4] sm:$0xf]
    %v5587 = vld [vmem:[#allocation28 + $0xc8] sm:$0xf]
    %v5588 = vld [vmem:[#allocation28 + $0xcc] sm:$0xf]
    %v5589 = vld [vmem:[#allocation28 + $0xd0] sm:$0xf]
    %v5590 = vld [vmem:[#allocation28 + $0xd4] sm:$0xf]
    %v5591 = vld [vmem:[#allocation28 + $0xd8] sm:$0xf]
    %v5592 = vld [vmem:[#allocation28 + $0xdc] sm:$0xf]
    %v5593 = vld [vmem:[#allocation28 + $0xe0] sm:$0xf]
    %v5594 = vld [vmem:[#allocation28 + $0xe4] sm:$0xf]
    %v5595 = vld [vmem:[#allocation28 + $0xe8] sm:$0xf]
    %v5596 = vld [vmem:[#allocation28 + $0xec] sm:$0xf]
    %v5597 = vld [vmem:[#allocation28 + $0xf0] sm:$0xf]
    %v5598 = vld [vmem:[#allocation28 + $0xf4] sm:$0xf]
    %v5599 = vld [vmem:[#allocation28 + $0xf8] sm:$0xf]
    %v5600 = vld [vmem:[#allocation28 + $0xfc] sm:$0xf]
    %v5601 = vld [vmem:[%s22] sm:$0x1]
    %v5603 = vlaneseq
    %v5604 = vshrl.u32 %v5603, 7
    %v5605 = vsub.s32 0, %v5604
    %v5606 = vrot.slane %v5601, %v5605
    %v5672 = vunpack.c.l.b16 %v5537
    %v5673 = vunpack.c.l.b16 %v5538
    %v5674 = vunpack.c.l.b16 %v5539
    %v5675 = vunpack.c.l.b16 %v5540
    %v5676 = vunpack.c.l.b16 %v5541
    %v5677 = vunpack.c.l.b16 %v5542
    %v5678 = vunpack.c.l.b16 %v5543
    %v5679 = vunpack.c.l.b16 %v5544
    %v5680 = vunpack.c.l.b16 %v5545
    %v5681 = vunpack.c.l.b16 %v5546
    %v5682 = vunpack.c.l.b16 %v5547
    %v5683 = vunpack.c.l.b16 %v5548
    %v5684 = vunpack.c.l.b16 %v5549
    %v5685 = vunpack.c.l.b16 %v5550
    %v5686 = vunpack.c.l.b16 %v5551
    %v5687 = vunpack.c.l.b16 %v5552
    %v5688 = vunpack.c.l.b16 %v5553
    %v5689 = vunpack.c.l.b16 %v5554
    %v5690 = vunpack.c.l.b16 %v5555
    %v5691 = vunpack.c.l.b16 %v5556
    %v5692 = vunpack.c.l.b16 %v5557
    %v5693 = vunpack.c.l.b16 %v5558
    %v5694 = vunpack.c.l.b16 %v5559
    %v5695 = vunpack.c.l.b16 %v5560
    %v5696 = vunpack.c.l.b16 %v5561
    %v5697 = vunpack.c.l.b16 %v5562
    %v5698 = vunpack.c.l.b16 %v5563
    %v5699 = vunpack.c.l.b16 %v5564
    %v5700 = vunpack.c.l.b16 %v5565
    %v5701 = vunpack.c.l.b16 %v5566
    %v5702 = vunpack.c.l.b16 %v5567
    %v5703 = vunpack.c.l.b16 %v5568
    %v5704 = vunpack.c.l.b16 %v5569
    %v5705 = vunpack.c.l.b16 %v5570
    %v5706 = vunpack.c.l.b16 %v5571
    %v5707 = vunpack.c.l.b16 %v5572
    %v5708 = vunpack.c.l.b16 %v5573
    %v5709 = vunpack.c.l.b16 %v5574
    %v5710 = vunpack.c.l.b16 %v5575
    %v5711 = vunpack.c.l.b16 %v5576
    %v5712 = vunpack.c.l.b16 %v5577
    %v5713 = vunpack.c.l.b16 %v5578
    %v5714 = vunpack.c.l.b16 %v5579
    %v5715 = vunpack.c.l.b16 %v5580
    %v5716 = vunpack.c.l.b16 %v5581
    %v5717 = vunpack.c.l.b16 %v5582
    %v5718 = vunpack.c.l.b16 %v5583
    %v5719 = vunpack.c.l.b16 %v5584
    %v5720 = vunpack.c.l.b16 %v5585
    %v5721 = vunpack.c.l.b16 %v5586
    %v5722 = vunpack.c.l.b16 %v5587
    %v5723 = vunpack.c.l.b16 %v5588
    %v5724 = vunpack.c.l.b16 %v5589
    %v5725 = vunpack.c.l.b16 %v5590
    %v5726 = vunpack.c.l.b16 %v5591
    %v5727 = vunpack.c.l.b16 %v5592
    %v5728 = vunpack.c.l.b16 %v5593
    %v5729 = vunpack.c.l.b16 %v5594
    %v5730 = vunpack.c.l.b16 %v5595
    %v5731 = vunpack.c.l.b16 %v5596
    %v5732 = vunpack.c.l.b16 %v5597
    %v5733 = vunpack.c.l.b16 %v5598
    %v5734 = vunpack.c.l.b16 %v5599
    %v5735 = vunpack.c.l.b16 %v5600
    %v5736 = vpack.c.b16 %v5673, %v5672
    %v5737 = vpack.c.b16 %v5675, %v5674
    %v5738 = vpack.c.b16 %v5677, %v5676
    %v5739 = vpack.c.b16 %v5679, %v5678
    %v5740 = vpack.c.b16 %v5681, %v5680
    %v5741 = vpack.c.b16 %v5683, %v5682
    %v5742 = vpack.c.b16 %v5685, %v5684
    %v5743 = vpack.c.b16 %v5687, %v5686
    %v5744 = vpack.c.b16 %v5689, %v5688
    %v5745 = vpack.c.b16 %v5691, %v5690
    %v5746 = vpack.c.b16 %v5693, %v5692
    %v5747 = vpack.c.b16 %v5695, %v5694
    %v5748 = vpack.c.b16 %v5697, %v5696
    %v5749 = vpack.c.b16 %v5699, %v5698
    %v5750 = vpack.c.b16 %v5701, %v5700
    %v5751 = vpack.c.b16 %v5703, %v5702
    %v5752 = vpack.c.b16 %v5705, %v5704
    %v5753 = vpack.c.b16 %v5707, %v5706
    %v5754 = vpack.c.b16 %v5709, %v5708
    %v5755 = vpack.c.b16 %v5711, %v5710
    %v5756 = vpack.c.b16 %v5713, %v5712
    %v5757 = vpack.c.b16 %v5715, %v5714
    %v5758 = vpack.c.b16 %v5717, %v5716
    %v5759 = vpack.c.b16 %v5719, %v5718
    %v5760 = vpack.c.b16 %v5721, %v5720
    %v5761 = vpack.c.b16 %v5723, %v5722
    %v5762 = vpack.c.b16 %v5725, %v5724
    %v5763 = vpack.c.b16 %v5727, %v5726
    %v5764 = vpack.c.b16 %v5729, %v5728
    %v5765 = vpack.c.b16 %v5731, %v5730
    %v5766 = vpack.c.b16 %v5733, %v5732
    %v5767 = vpack.c.b16 %v5735, %v5734
    %5800 = vmatprep.subr.bf16.mxu0 0
    %5801 = vmatpush1.bf16.msra.mxu0 %v5743
    %5802 = vmatprep.subr.bf16.mxu0 0
    %5803 = vmatpush1.bf16.msra.mxu0 %v5742
    %5804 = vmatprep.subr.bf16.mxu0 0
    %5805 = vmatpush1.bf16.msra.mxu0 %v5741
    %5806 = vmatprep.subr.bf16.mxu0 0
    %5807 = vmatpush1.bf16.msra.mxu0 %v5740
    %5808 = vmatprep.subr.bf16.mxu0 0
    %5809 = vmatpush1.bf16.msra.mxu0 %v5739
    %5810 = vmatprep.subr.bf16.mxu0 0
    %5811 = vmatpush1.bf16.msra.mxu0 %v5738
    %5812 = vmatprep.subr.bf16.mxu0 0
    %5813 = vmatpush1.bf16.msra.mxu0 %v5737
    %5814 = vmatprep.subr.bf16.mxu0 0
    %5815 = vmatpush1.bf16.msra.mxu0 %v5736
    %5816 = vmatprep.subr.bf16.mxu0 0
    %5817 = vmatpush2.bf16.msra.mxu0 %v5751
    %5818 = vmatprep.subr.bf16.mxu0 0
    %5819 = vmatpush2.bf16.msra.mxu0 %v5750
    %5820 = vmatprep.subr.bf16.mxu0 0
    %5821 = vmatpush2.bf16.msra.mxu0 %v5749
    %5822 = vmatprep.subr.bf16.mxu0 0
    %5823 = vmatpush2.bf16.msra.mxu0 %v5748
    %5824 = vmatprep.subr.bf16.mxu0 0
    %5825 = vmatpush2.bf16.msra.mxu0 %v5747
    %5826 = vmatprep.subr.bf16.mxu0 0
    %5827 = vmatpush2.bf16.msra.mxu0 %v5746
    %5828 = vmatprep.subr.bf16.mxu0 0
    %5829 = vmatpush2.bf16.msra.mxu0 %v5745
    %5830 = vmatprep.subr.bf16.mxu0 0
    %5831 = vmatpush2.bf16.msra.mxu0 %v5744
    %5832 = vmatprep.mubr.bf16.mxu0 %v5534
    %5833 = vmatmul.mubr.bf16.gmra.mxu0 %v5533
    %v5834 = vpop.f32.mrf.mxu0
    %v5835 = vadd.f32 %v5606, %v5834
    %v5836 = vpop.f32.mrf.mxu0
    %v5837 = vpop.f32.mrf.mxu0
    %v5838 = vadd.f32 %v5606, %v5837
    %v5839 = vpop.f32.mrf.mxu0
    %5840 = vdwg.mxu0
    %5841 = vmatprep.subr.bf16.mxu0 0
    %5842 = vmatpush1.bf16.msra.mxu0 %v5759
    %5843 = vmatprep.subr.bf16.mxu0 0
    %5844 = vmatpush1.bf16.msra.mxu0 %v5758
    %5845 = vmatprep.subr.bf16.mxu0 0
    %5846 = vmatpush1.bf16.msra.mxu0 %v5757
    %5847 = vmatprep.subr.bf16.mxu0 0
    %5848 = vmatpush1.bf16.msra.mxu0 %v5756
    %5849 = vmatprep.subr.bf16.mxu0 0
    %5850 = vmatpush1.bf16.msra.mxu0 %v5755
    %5851 = vmatprep.subr.bf16.mxu0 0
    %5852 = vmatpush1.bf16.msra.mxu0 %v5754
    %5853 = vmatprep.subr.bf16.mxu0 0
    %5854 = vmatpush1.bf16.msra.mxu0 %v5753
    %5855 = vmatprep.subr.bf16.mxu0 0
    %5856 = vmatpush1.bf16.msra.mxu0 %v5752
    %5857 = vmatprep.subr.bf16.mxu0 0
    %5858 = vmatpush2.bf16.msra.mxu0 %v5767
    %5859 = vmatprep.subr.bf16.mxu0 0
    %5860 = vmatpush2.bf16.msra.mxu0 %v5766
    %5861 = vmatprep.subr.bf16.mxu0 0
    %5862 = vmatpush2.bf16.msra.mxu0 %v5765
    %5863 = vmatprep.subr.bf16.mxu0 0
    %5864 = vmatpush2.bf16.msra.mxu0 %v5764
    %5865 = vmatprep.subr.bf16.mxu0 0
    %5866 = vmatpush2.bf16.msra.mxu0 %v5763
    %5867 = vmatprep.subr.bf16.mxu0 0
    %5868 = vmatpush2.bf16.msra.mxu0 %v5762
    %5869 = vmatprep.subr.bf16.mxu0 0
    %5870 = vmatpush2.bf16.msra.mxu0 %v5761
    %5871 = vmatprep.subr.bf16.mxu0 0
    %5872 = vmatpush2.bf16.msra.mxu0 %v5760
    %5873 = vmatprep.mubr.bf16.mxu0 %v5536
    %5874 = vmatmul.mubr.bf16.gmra.mxu0 %v5535
    %v5875 = vpop.f32.mrf.mxu0
    %v5876 = vadd.f32 %v5835, %v5875
    %v5877 = vpop.f32.mrf.mxu0
    %v5878 = vpop.f32.mrf.mxu0
    %v5879 = vadd.f32 %v5838, %v5878
    %v5880 = vpop.f32.mrf.mxu0
    %5881 = vdwg.mxu0
    %5882 = vst [vmem:[#allocation29] sm:$0xff] %v5876
    %5883 = vst [vmem:[#allocation29 + $0x8] sm:$0xff] %v5879
    // Predicated region
    $region162: #{_forward_pallas.1} parent=1 // pred_check
      _
    $region163: #{_forward_pallas.1} parent=1 // pred_check_branch
      %5885 = sbr.rel (0) target = $region165
    $region164: #{_forward_pallas.1} parent=1 // pred_region
      %s5887 = ssub.s32 256, 256
      %5888 = vsyncadd [#allocation4], %s5887
      %s5889 = sshll.u32 [#allocation29], 4
      %s5890 = int_to_ptr.vmem [resolvable:$true] %s5889
      %5895 = dma.vmem_to_hbm [thread:$0]  %s5890, 256, %s23, [#allocation4], 128, 128, 8
    $region165: #{_forward_pallas.1} parent=1 // pred_fallthru
      _
    // Predicated region
    $region166: #{_forward_pallas.1} parent=1 // pred_check
      _
    $region167: #{_forward_pallas.1} parent=1 // pred_check_branch
      %5897 = sbr.rel (0) target = $region169
    $region168: #{_forward_pallas.1} parent=1 // pred_region
      %5898 = dma.done [#allocation4], 256
    $region169: #{_forward_pallas.1} parent=1 // pred_fallthru
      _
    %5899 = vsyncpa [#allocation3], 1
    %5900 = vsyncpa [#allocation6], 1
    %5901 = vsyncpa [#allocation9], 1
    %5902 = vsyncpa [#allocation12], 1
    %5903 = vsyncpa [#allocation15], 1
    %5904 = vsyncpa [#allocation18], 1
    %5905 = vsyncpa [#allocation21], 1
    %5906 = vsyncpa [#allocation24], 1
    %5907 = vsyncpa [#allocation27], 1
    %5908 = vsyncpa [#allocation4], 1

</llo_original>
